<compile_context>
chip_gen: v5e
topology: v5e:2x2
jax: 0.10.0
libtpu: 0.0.40
codegen_flags: <defaults>
</compile_context>

<pallas_src>
import functools
import math

import numpy as np
import jax
import jax.numpy as jnp
from jax.experimental import pallas as pl
from jax.experimental.pallas import tpu as pltpu


MXU_DTYPE = jnp.bfloat16      # matmul-input / intermediate dtype (accumulation is f32)
_BN_EPS = 1e-5
_LANE = 128


def _round_up(n, m):
    return (n + m - 1) // m * m


def _mk_params(dims, *, block_bytes, scratch_bytes=0, extra_bytes=0):
    """CompilerParams with an explicit scoped-VMEM budget (inputs/outputs double-buffered)."""
    need = 2 * block_bytes + scratch_bytes + extra_bytes
    limit = int(min(max(int(need * 1.5), 32 << 20), 100 << 20))
    return pltpu.CompilerParams(dimension_semantics=dims, vmem_limit_bytes=limit)


# -----------------------------------------------------------------------------
# In-kernel exact GELU.  erf via Abramowitz & Stegun 7.1.26 (|err| < 1.5e-7);
# the divide runs on the EUP (approx reciprocal), exp also on the EUP.
# Matches nn.GELU() (approximate='none') to well within the test tolerance.
# -----------------------------------------------------------------------------
def _erf(x):
    z = jnp.maximum(x, -x)                                    # |x|
    t = pl.reciprocal(1.0 + 0.3275911 * z, approx=True)       # EUP slot, not VALU
    poly = ((((1.061405429 * t - 1.453152027) * t + 1.421413741) * t
             - 0.284496736) * t + 0.254829592) * t
    y = 1.0 - poly * jnp.exp(-(z * z))
    return jnp.where(x >= 0.0, y, -y)


def _gelu(x):
    return 0.5 * x * (1.0 + _erf(x * 0.7071067811865476))


# -----------------------------------------------------------------------------
# Fused downsampling prologue:
#   MaxPool2d(kernel=2, stride=1) -> BlurPool(filt=4, stride=2, reflect pad) -> GELU
# One kernel invocation per batch element; everything stays in VMEM.
# -----------------------------------------------------------------------------
def _down_kernel(x_ref, o_ref, mp_ref):
    _, H, W, C = x_ref.shape
    _, Ho, Wo, _ = o_ref.shape
    Hq, Wq = H - 1, W - 1                                     # maxpool output size
    Hp = Hq + 3                                               # reflect-padded height

    # MaxPool2d(2, stride 1) in two passes: one sublane-shifted max (W axis),
    # then a free leading-axis max (H axis) -- one relayout instead of three.
    x = x_ref[0].astype(jnp.float32)                          # (H, W, C)
    wm = jnp.maximum(x[:, :Wq, :], x[:, 1:, :])               # (H, Wq, C)
    m = jnp.maximum(wm[:Hq], wm[1:])                          # (Hq, Wq, C)

    # Reflect pad (left,right,top,bottom) = (1,2,1,2) built in the VMEM scratch.
    mp_ref[1:1 + Hq, 1:1 + Wq, :] = m
    mp_ref[0:1, 1:1 + Wq, :] = m[1:2]
    mp_ref[1 + Hq:2 + Hq, 1:1 + Wq, :] = m[Hq - 2:Hq - 1]
    mp_ref[2 + Hq:3 + Hq, 1:1 + Wq, :] = m[Hq - 3:Hq - 2]
    mp_ref[:, 0:1, :] = mp_ref[:, 2:3, :]
    mp_ref[:, 1 + Wq:2 + Wq, :] = mp_ref[:, Wq - 1:Wq, :]
    mp_ref[:, 2 + Wq:3 + Wq, :] = mp_ref[:, Wq - 2:Wq - 1, :]

    # Separable binomial blur ([1,3,3,1]/8 per axis), stride 2.
    f = (0.125, 0.375, 0.375, 0.125)
    # W pass: native stride-2 sublane loads from the scratch ref.
    t = f[0] * mp_ref[:, pl.ds(0, Wo, 2), :]
    for k in range(1, 4):
        t = t + f[k] * mp_ref[:, pl.ds(k, Wo, 2), :]
    # H pass: split the leading (untiled) axis into (row-pair, phase) -- free reshape.
    t = t.reshape(Hp // 2, 2, Wo, C)
    acc = (f[0] * t[0:Ho, 0] + f[1] * t[0:Ho, 1]
           + f[2] * t[1:1 + Ho, 0] + f[3] * t[1:1 + Ho, 1])
    o_ref[0] = _gelu(acc).astype(o_ref.dtype)


def fused_downsample(x):
    """NHWC f32 -> NHWC bf16, single fused Pallas pass per batch element."""
    B, H, W, C = x.shape
    assert H % 2 == 0 and W % 2 == 0 and H >= 6 and W >= 6, (H, W)
    Ho, Wo = H // 2, W // 2

    xbytes = H * W * C * x.dtype.itemsize
    obytes = Ho * Wo * C * 2
    scratch_bytes = (H + 2) * (W + 2) * C * 4
    # TODO(synk): the maxpool/reflect scratch stays f32; a bf16 scratch would halve it
    # but stride-2 sublane loads of packed bf16 are a riskier lowering path.
    params = _mk_params(("parallel",), block_bytes=xbytes + obytes,
                        scratch_bytes=scratch_bytes, extra_bytes=3 * xbytes)

    return pl.pallas_call(
        _down_kernel,
        out_shape=jax.ShapeDtypeStruct((B, Ho, Wo, C), MXU_DTYPE),
        grid_spec=pltpu.PrefetchScalarGridSpec(
            num_scalar_prefetch=0,
            grid=(B,),
            in_specs=[pl.BlockSpec((1, H, W, C), lambda b: (b, 0, 0, 0))],
            out_specs=pl.BlockSpec((1, Ho, Wo, C), lambda b: (b, 0, 0, 0)),
            scratch_shapes=[pltpu.VMEM((H + 2, W + 2, C), jnp.float32)],
        ),
        compiler_params=params,
    )(x)


# -----------------------------------------------------------------------------
# Fused 3x3 conv (stride 1, pad 1) + folded BatchNorm (+ optional GELU).
# The kx taps are folded into the contraction dim: a (H+2, W, 3*Cin) bf16 slab
# (with the zero padding built in) lives in a VMEM scratch, built once per batch
# element and reused across Cout tiles; each ky tap is then a free leading-axis
# slice and ONE MXU matmul with K = 3*Cin.
# -----------------------------------------------------------------------------
def _conv_kernel(x_ref, w_ref, b_ref, o_ref, slab_ref, *, H, W, apply_gelu):
    Cin = x_ref.shape[-1]
    K3 = slab_ref.shape[-1]                                   # 3 * Cin
    tn = o_ref.shape[-1]

    @pl.when(pl.program_id(1) == 0)                           # build once per batch elem
    def _build_slab():
        dt = slab_ref.dtype
        xv = x_ref[0].astype(dt)                              # (H, W, Cin)
        zc = jnp.zeros((H, 1, Cin), dt)
        left = jnp.concatenate([zc, xv[:, :W - 1, :]], axis=1)    # kx = 0 tap (zero-padded)
        right = jnp.concatenate([xv[:, 1:, :], zc], axis=1)       # kx = 2 tap (zero-padded)
        slab_ref[1:H + 1] = jnp.concatenate([left, xv, right], axis=-1)
        zrow = jnp.zeros((1, W, K3), dt)
        slab_ref[0:1] = zrow                                  # top zero-pad row
        slab_ref[H + 1:H + 2] = zrow                          # bottom zero-pad row

    wv = w_ref[...]                                           # (3, 3*Cin, tn) bf16
    acc = jnp.zeros((H * W, tn), jnp.float32)
    for ky in range(3):                                       # 3 MXU matmuls, K = 3*Cin
        xs = slab_ref[ky:ky + H].reshape(H * W, K3)
        acc = acc + jnp.dot(xs, wv[ky], preferred_element_type=jnp.float32)
    y = acc + b_ref[...]                                      # folded BN bias, f32
    if apply_gelu:
        y = _gelu(y)                                          # epilogue GELU
    o_ref[0] = y.astype(o_ref.dtype)


def conv3x3_bn_act(x, w, b, *, apply_gelu, out_dtype):
    """x: (B,H,W,Cin) NHWC; w: (3, 3*Cin, Coutp) bf16 (BN folded, Coutp % 128 == 0);
    b: (1, Coutp) f32.  Zero padding + kx folding happen in-kernel (no wrapper pads)."""
    B, H, W, Cin = x.shape
    _, K3, Coutp = w.shape
    assert K3 == 3 * Cin and Coutp % _LANE == 0, (w.shape, Cin)

    # Lane-dense Cout tiling (Coutp already padded to a 128 multiple).
    tn = 256 if (Coutp % 256 == 0 and H * W * 256 * 4 <= (12 << 20)) else _LANE
    ncout = Coutp // tn

    xbytes = H * W * Cin * x.dtype.itemsize
    wbytes = 3 * K3 * tn * 2
    obytes = H * W * tn * jnp.dtype(out_dtype).itemsize
    slab_bytes = (H + 2) * W * K3 * 2
    acc_bytes = H * W * tn * 4
    params = _mk_params(
        ("parallel", "arbitrary"),            # "arbitrary": slab scratch carried across Cout tiles
        block_bytes=xbytes + wbytes + obytes + tn * 4,
        scratch_bytes=slab_bytes,
        extra_bytes=acc_bytes + slab_bytes)

    kern = functools.partial(_conv_kernel, H=H, W=W, apply_gelu=apply_gelu)
    out = pl.pallas_call(
        kern,
        out_shape=jax.ShapeDtypeStruct((B, H * W, Coutp), out_dtype),
        grid_spec=pltpu.PrefetchScalarGridSpec(
            num_scalar_prefetch=0,
            grid=(B, ncout),
            in_specs=[
                pl.BlockSpec((1, H, W, Cin), lambda bi, n: (bi, 0, 0, 0)),
                pl.BlockSpec((3, K3, tn), lambda bi, n: (0, 0, n)),
                pl.BlockSpec((1, tn), lambda bi, n: (0, n)),
            ],
            out_specs=pl.BlockSpec((1, H * W, tn), lambda bi, n: (bi, 0, n)),
            scratch_shapes=[pltpu.VMEM((H + 2, W, K3), MXU_DTYPE)],
        ),
        compiler_params=params,
    )(x, w, b)
    return out.reshape(B, H, W, Coutp)


# -----------------------------------------------------------------------------
# Parameters: PyTorch-default conv init, eval-mode BN folded into the conv,
# channels zero-padded to lane-dense multiples of 128, weights pre-reshaped to
# the kernel's kx-folded layout (3, 3*Cin_pad, Cout_pad).
# -----------------------------------------------------------------------------
def _fold_bn_pad_reshape(w_oihw, b, bn, *, cin_pad, cout_pad, eps=_BN_EPS):
    scale = bn["gamma"] / jnp.sqrt(bn["var"] + eps)
    w = w_oihw * scale[:, None, None, None]
    bias = (b - bn["mean"]) * scale + bn["beta"]
    w_hwio = jnp.transpose(w, (2, 3, 1, 0))                   # (3, 3, Cin, Cout)
    kh, kw, cin, cout = w_hwio.shape
    w_hwio = jnp.pad(w_hwio, ((0, 0), (0, 0), (0, cin_pad - cin), (0, cout_pad - cout)))
    bias = jnp.pad(bias, (0, cout_pad - cout))
    w_fold = w_hwio.reshape(kh, kw * cin_pad, cout_pad).astype(MXU_DTYPE)
    return w_fold, bias.reshape(1, -1).astype(jnp.float32)


def init_convblock_down_params(key, in_ch, hid_ch, out_ch, ksize=3):
    ks = jax.random.split(key, 4)

    def conv_init(kw, kb, cin, cout):
        fan_in = cin * ksize * ksize
        bound = 1.0 / math.sqrt(fan_in)
        w = jax.random.uniform(kw, (cout, cin, ksize, ksize), jnp.float32, -bound, bound)
        b = jax.random.uniform(kb, (cout,), jnp.float32, -bound, bound)
        return w, b

    def bn_fresh(c):
        # TODO(synk): BatchNorm2d is modeled in eval mode with fresh-module running stats
        # (mean=0, var=1, gamma=1, beta=0); train-mode batch statistics are not modeled
        # (they would prevent the static BN -> conv folding).
        return {"gamma": jnp.ones((c,), jnp.float32), "beta": jnp.zeros((c,), jnp.float32),
                "mean": jnp.zeros((c,), jnp.float32), "var": jnp.ones((c,), jnp.float32)}

    hid_pad = _round_up(hid_ch, _LANE)
    out_pad = _round_up(out_ch, _LANE)
    w1, b1 = conv_init(ks[0], ks[1], in_ch, hid_ch)
    w2, b2 = conv_init(ks[2], ks[3], hid_ch, out_ch)
    fw1, fb1 = _fold_bn_pad_reshape(w1, b1, bn_fresh(hid_ch), cin_pad=in_ch, cout_pad=hid_pad)
    fw2, fb2 = _fold_bn_pad_reshape(w2, b2, bn_fresh(out_ch), cin_pad=hid_pad, cout_pad=out_pad)
    return {"w1": fw1, "b1": fb1, "w2": fw2, "b2": fb2}


# -----------------------------------------------------------------------------
# ConvBlock_down forward
# -----------------------------------------------------------------------------
@functools.partial(jax.jit, static_argnames=("if_down", "out_ch"))
def convblock_down(params, x_nchw, if_down=True, out_ch=None):
    x = jnp.transpose(x_nchw, (0, 2, 3, 1))                    # NCHW -> NHWC (once)
    if if_down:
        x = fused_downsample(x)                                # maxpool + blurpool + GELU
    h = conv3x3_bn_act(x, params["w1"], params["b1"],
                       apply_gelu=False, out_dtype=MXU_DTYPE)  # conv1 + bn1 (folded), bf16
    y = conv3x3_bn_act(h, params["w2"], params["b2"],
                       apply_gelu=True, out_dtype=jnp.float32)  # conv2 + bn2 + GELU
    if out_ch is not None and out_ch != y.shape[-1]:
        y = y[..., :out_ch]                                    # strip lane padding
    return jnp.transpose(y, (0, 3, 1, 2))                      # NHWC -> NCHW


# -----------------------------------------------------------------------------
# Pure-JAX (XLA) reference with the same folded/padded weights and bf16 cast
# points, used only as a numerical cross-check.
# -----------------------------------------------------------------------------
def _reference_forward(params, x_nchw, if_down, out_ch):
    x = jnp.transpose(x_nchw, (0, 2, 3, 1)).astype(jnp.float32)
    if if_down:
        m = jnp.maximum(jnp.maximum(x[:, :-1, :-1, :], x[:, :-1, 1:, :]),
                        jnp.maximum(x[:, 1:, :-1, :], x[:, 1:, 1:, :]))
        mp = jnp.pad(m, ((0, 0), (1, 2), (1, 2), (0, 0)), mode="reflect")
        filt = np.outer([1., 3., 3., 1.], [1., 3., 3., 1.])
        filt = filt / filt.sum()
        Hq, Wq = m.shape[1], m.shape[2]
        Ho, Wo = (Hq - 1) // 2 + 1, (Wq - 1) // 2 + 1
        y = jnp.zeros((m.shape[0], Ho, Wo, m.shape[3]), jnp.float32)
        for a in range(4):
            for c in range(4):
                y = y + float(filt[a, c]) * mp[:, a:a + 2 * Ho:2, c:c + 2 * Wo:2, :]
        x = jax.nn.gelu(y, approximate=False).astype(MXU_DTYPE)

    def conv(z, w_fold, bias):
        kh, K3, coutp = w_fold.shape
        cin = K3 // 3
        w_hwio = w_fold.reshape(kh, 3, cin, coutp)
        out = jax.lax.conv_general_dilated(
            z.astype(MXU_DTYPE), w_hwio, window_strides=(1, 1), padding=((1, 1), (1, 1)),
            dimension_numbers=("NHWC", "HWIO", "NHWC"),
            preferred_element_type=jnp.float32)
        return out + bias.reshape(1, 1, 1, -1)

    z1 = conv(x, params["w1"], params["b1"]).astype(MXU_DTYPE)
    z2 = conv(z1, params["w2"], params["b2"])
    y = jax.nn.gelu(z2, approximate=False)[..., :out_ch]
    return jnp.transpose(y, (0, 3, 1, 2))


# -----------------------------------------------------------------------------
if __name__ == "__main__":
    B, in_ch, hid_ch, out_ch, H, W = 2, 8, 16, 32, 16, 16
    kp, kx = jax.random.split(jax.random.PRNGKey(0))
    params = init_convblock_down_params(kp, in_ch, hid_ch, out_ch)
    x = jax.random.normal(kx, (B, in_ch, H, W), jnp.float32)

    y_down = jax.block_until_ready(convblock_down(params, x, if_down=True, out_ch=out_ch))
    y_flat = jax.block_until_ready(convblock_down(params, x, if_down=False, out_ch=out_ch))

    assert y_down.shape == (B, out_ch, H // 2, W // 2), y_down.shape
    assert y_flat.shape == (B, out_ch, H, W), y_flat.shape
    assert bool(jnp.isfinite(y_down).all()) and bool(jnp.isfinite(y_flat).all())

    ref_down = jax.block_until_ready(_reference_forward(params, x, True, out_ch))
    ref_flat = jax.block_until_ready(_reference_forward(params, x, False, out_ch))
    np.testing.assert_allclose(np.asarray(y_down), np.asarray(ref_down), rtol=2e-2, atol=2e-2)
    np.testing.assert_allclose(np.asarray(y_flat), np.asarray(ref_flat), rtol=2e-2, atol=2e-2)

    print("KERNEL_OK")
</pallas_src>

<mosaic_0001>
module attributes {stable_mosaic.version = 11 : i64} {
  func.func @_conv_kernel(%arg0: i32, %arg1: i32, %arg2: memref<1x8x8x128xbf16, #tpu.memory_space<vmem>>, %arg3: memref<3x384x128xbf16, #tpu.memory_space<vmem>>, %arg4: memref<1x128xf32, #tpu.memory_space<vmem>>, %arg5: memref<1x64x128xf32, #tpu.memory_space<vmem>>, %arg6: memref<10x8x384xbf16, #tpu.memory_space<vmem>>) attributes {dimension_semantics = [#tpu.dimension_semantics<parallel>, #tpu.dimension_semantics<arbitrary>], iteration_bounds = array<i64: 2, 1>, scalar_prefetch = 0 : i64, scratch_operands = 1 : i64, tpu.core_type = #tpu.core_type<tc>, window_params = [{transform_indices = @transform_0, window_bounds = array<i64: 1, 8, 8, 128>}, {transform_indices = @transform_1, window_bounds = array<i64: 3, 384, 128>}, {transform_indices = @transform_2, window_bounds = array<i64: 1, 128>}, {transform_indices = @transform_3, window_bounds = array<i64: 1, 64, 128>}]} {
    %c0_i32 = arith.constant 0 : i32
    %0 = arith.cmpi eq, %arg1, %c0_i32 : i32
    %1 = arith.extui %0 : i1 to i32
    %c0_i32_0 = arith.constant 0 : i32
    %2 = arith.cmpi ne, %1, %c0_i32_0 : i32
    scf.if %2 {
      %c0_33 = arith.constant 0 : index
      %c0_34 = arith.constant 0 : index
      %c0_35 = arith.constant 0 : index
      %c0_36 = arith.constant 0 : index
      %70 = vector.load %arg2[%c0_33, %c0_34, %c0_35, %c0_36] : memref<1x8x8x128xbf16, #tpu.memory_space<vmem>>, vector<1x8x8x128xbf16>
      %71 = vector.shape_cast %70 : vector<1x8x8x128xbf16> to vector<8x8x128xbf16>
      %cst_37 = arith.constant 0.000000e+00 : bf16
      %72 = vector.broadcast %cst_37 : bf16 to vector<8x1x128xbf16>
      %73 = vector.extract_strided_slice %71 {offsets = [0, 0, 0], sizes = [8, 7, 128], strides = [1, 1, 1]} : vector<8x8x128xbf16> to vector<8x7x128xbf16>
      %74 = tpu.concatenate %72, %73 in 1 : vector<8x1x128xbf16>, vector<8x7x128xbf16> -> vector<8x8x128xbf16>
      %75 = vector.extract_strided_slice %71 {offsets = [0, 1, 0], sizes = [8, 7, 128], strides = [1, 1, 1]} : vector<8x8x128xbf16> to vector<8x7x128xbf16>
      %76 = tpu.concatenate %75, %72 in 1 : vector<8x7x128xbf16>, vector<8x1x128xbf16> -> vector<8x8x128xbf16>
      %77 = tpu.concatenate %74, %71, %76 in 2 : vector<8x8x128xbf16>, vector<8x8x128xbf16>, vector<8x8x128xbf16> -> vector<8x8x384xbf16>
      %c1_38 = arith.constant 1 : index
      %c0_39 = arith.constant 0 : index
      %c0_40 = arith.constant 0 : index
      %78 = vector.load %arg6[%c1_38, %c0_39, %c0_40] : memref<10x8x384xbf16, #tpu.memory_space<vmem>>, vector<8x8x384xbf16>
      tpu.vector_store %arg6[%c1_38, %c0_39, %c0_40], %77 {strides = array<i32>} : memref<10x8x384xbf16, #tpu.memory_space<vmem>>, vector<8x8x384xbf16>,
      %cst_41 = arith.constant 0.000000e+00 : bf16
      %79 = vector.broadcast %cst_41 : bf16 to vector<1x8x384xbf16>
      %c0_42 = arith.constant 0 : index
      %c0_43 = arith.constant 0 : index
      %c0_44 = arith.constant 0 : index
      %80 = vector.load %arg6[%c0_42, %c0_43, %c0_44] : memref<10x8x384xbf16, #tpu.memory_space<vmem>>, vector<1x8x384xbf16>
      tpu.vector_store %arg6[%c0_42, %c0_43, %c0_44], %79 {strides = array<i32>} : memref<10x8x384xbf16, #tpu.memory_space<vmem>>, vector<1x8x384xbf16>,
      %c9 = arith.constant 9 : index
      %c0_45 = arith.constant 0 : index
      %c0_46 = arith.constant 0 : index
      %81 = vector.load %arg6[%c9, %c0_45, %c0_46] : memref<10x8x384xbf16, #tpu.memory_space<vmem>>, vector<1x8x384xbf16>
      tpu.vector_store %arg6[%c9, %c0_45, %c0_46], %79 {strides = array<i32>} : memref<10x8x384xbf16, #tpu.memory_space<vmem>>, vector<1x8x384xbf16>,
    } else {
    }
    %c0 = arith.constant 0 : index
    %c0_1 = arith.constant 0 : index
    %c0_2 = arith.constant 0 : index
    %3 = vector.load %arg3[%c0, %c0_1, %c0_2] : memref<3x384x128xbf16, #tpu.memory_space<vmem>>, vector<3x384x128xbf16>
    %cst = arith.constant 0.000000e+00 : f32
    %4 = vector.broadcast %cst : f32 to vector<64x128xf32>
    %c0_3 = arith.constant 0 : index
    %c0_4 = arith.constant 0 : index
    %c0_5 = arith.constant 0 : index
    %5 = vector.load %arg6[%c0_3, %c0_4, %c0_5] : memref<10x8x384xbf16, #tpu.memory_space<vmem>>, vector<8x8x384xbf16>
    %6 = vector.shape_cast %5 : vector<8x8x384xbf16> to vector<64x384xbf16>
    %7 = vector.extract_strided_slice %3 {offsets = [0, 0, 0], sizes = [1, 384, 128], strides = [1, 1, 1]} : vector<3x384x128xbf16> to vector<1x384x128xbf16>
    %8 = vector.shape_cast %7 : vector<1x384x128xbf16> to vector<384x128xbf16>
    %cst_6 = arith.constant dense<0.000000e+00> : vector<64x128xf32>
    %9 = tpu.matmul %6, %8, %cst_6 {dimension_numbers = #tpu.dot_dimension_numbers<[1], [0], [0], [1], [0, 0, 1, 1], [], []>} : vector<64x384xbf16>, vector<384x128xbf16>, vector<64x128xf32> -> vector<64x128xf32>
    %10 = arith.addf %4, %9 : vector<64x128xf32>
    %c1 = arith.constant 1 : index
    %c0_7 = arith.constant 0 : index
    %c0_8 = arith.constant 0 : index
    %11 = vector.load %arg6[%c1, %c0_7, %c0_8] : memref<10x8x384xbf16, #tpu.memory_space<vmem>>, vector<8x8x384xbf16>
    %12 = vector.shape_cast %11 : vector<8x8x384xbf16> to vector<64x384xbf16>
    %13 = vector.extract_strided_slice %3 {offsets = [1, 0, 0], sizes = [1, 384, 128], strides = [1, 1, 1]} : vector<3x384x128xbf16> to vector<1x384x128xbf16>
    %14 = vector.shape_cast %13 : vector<1x384x128xbf16> to vector<384x128xbf16>
    %cst_9 = arith.constant dense<0.000000e+00> : vector<64x128xf32>
    %15 = tpu.matmul %12, %14, %cst_9 {dimension_numbers = #tpu.dot_dimension_numbers<[1], [0], [0], [1], [0, 0, 1, 1], [], []>} : vector<64x384xbf16>, vector<384x128xbf16>, vector<64x128xf32> -> vector<64x128xf32>
    %16 = arith.addf %10, %15 : vector<64x128xf32>
    %c2 = arith.constant 2 : index
    %c0_10 = arith.constant 0 : index
    %c0_11 = arith.constant 0 : index
    %17 = vector.load %arg6[%c2, %c0_10, %c0_11] : memref<10x8x384xbf16, #tpu.memory_space<vmem>>, vector<8x8x384xbf16>
    %18 = vector.shape_cast %17 : vector<8x8x384xbf16> to vector<64x384xbf16>
    %19 = vector.extract_strided_slice %3 {offsets = [2, 0, 0], sizes = [1, 384, 128], strides = [1, 1, 1]} : vector<3x384x128xbf16> to vector<1x384x128xbf16>
    %20 = vector.shape_cast %19 : vector<1x384x128xbf16> to vector<384x128xbf16>
    %cst_12 = arith.constant dense<0.000000e+00> : vector<64x128xf32>
    %21 = tpu.matmul %18, %20, %cst_12 {dimension_numbers = #tpu.dot_dimension_numbers<[1], [0], [0], [1], [0, 0, 1, 1], [], []>} : vector<64x384xbf16>, vector<384x128xbf16>, vector<64x128xf32> -> vector<64x128xf32>
    %22 = arith.addf %16, %21 : vector<64x128xf32>
    %c0_13 = arith.constant 0 : index
    %c0_14 = arith.constant 0 : index
    %23 = vector.load %arg4[%c0_13, %c0_14] : memref<1x128xf32, #tpu.memory_space<vmem>>, vector<1x128xf32>
    %24 = vector.broadcast %23 : vector<1x128xf32> to vector<64x128xf32>
    %25 = arith.addf %22, %24 : vector<64x128xf32>
    %cst_15 = arith.constant 5.000000e-01 : f32
    %26 = vector.broadcast %cst_15 : f32 to vector<64x128xf32>
    %27 = arith.mulf %26, %25 : vector<64x128xf32>
    %cst_16 = arith.constant 0.707106769 : f32
    %28 = vector.broadcast %cst_16 : f32 to vector<64x128xf32>
    %29 = arith.mulf %25, %28 : vector<64x128xf32>
    %cst_17 = arith.constant 0.000000e+00 : f32
    %30 = vector.broadcast %cst_17 : f32 to vector<64x128xf32>
    %31 = arith.subf %30, %29 : vector<64x128xf32>
    %32 = arith.maximumf %29, %31 : vector<64x128xf32>
    %cst_18 = arith.constant 0.327591091 : f32
    %33 = vector.broadcast %cst_18 : f32 to vector<64x128xf32>
    %34 = arith.mulf %33, %32 : vector<64x128xf32>
    %cst_19 = arith.constant 1.000000e+00 : f32
    %35 = vector.broadcast %cst_19 : f32 to vector<64x128xf32>
    %36 = arith.addf %35, %34 : vector<64x128xf32>
    %37 = tpu.reciprocal %36 {approx = true} : vector<64x128xf32> -> vector<64x128xf32>
    %cst_20 = arith.constant 1.06140542 : f32
    %38 = vector.broadcast %cst_20 : f32 to vector<64x128xf32>
    %39 = arith.mulf %38, %37 : vector<64x128xf32>
    %cst_21 = arith.constant 1.45315206 : f32
    %40 = vector.broadcast %cst_21 : f32 to vector<64x128xf32>
    %41 = arith.subf %39, %40 : vector<64x128xf32>
    %42 = arith.mulf %41, %37 : vector<64x128xf32>
    %cst_22 = arith.constant 1.42141378 : f32
    %43 = vector.broadcast %cst_22 : f32 to vector<64x128xf32>
    %44 = arith.addf %42, %43 : vector<64x128xf32>
    %45 = arith.mulf %44, %37 : vector<64x128xf32>
    %cst_23 = arith.constant 0.284496725 : f32
    %46 = vector.broadcast %cst_23 : f32 to vector<64x128xf32>
    %47 = arith.subf %45, %46 : vector<64x128xf32>
    %48 = arith.mulf %47, %37 : vector<64x128xf32>
    %cst_24 = arith.constant 0.254829586 : f32
    %49 = vector.broadcast %cst_24 : f32 to vector<64x128xf32>
    %50 = arith.addf %48, %49 : vector<64x128xf32>
    %51 = arith.mulf %50, %37 : vector<64x128xf32>
    %52 = arith.mulf %32, %32 : vector<64x128xf32>
    %cst_25 = arith.constant 0.000000e+00 : f32
    %53 = vector.broadcast %cst_25 : f32 to vector<64x128xf32>
    %54 = arith.subf %53, %52 : vector<64x128xf32>
    %55 = math.exp %54 : vector<64x128xf32>
    %56 = arith.mulf %51, %55 : vector<64x128xf32>
    %cst_26 = arith.constant 1.000000e+00 : f32
    %57 = vector.broadcast %cst_26 : f32 to vector<64x128xf32>
    %58 = arith.subf %57, %56 : vector<64x128xf32>
    %cst_27 = arith.constant 0.000000e+00 : f32
    %59 = vector.broadcast %cst_27 : f32 to vector<64x128xf32>
    %60 = arith.cmpf oge, %29, %59 : vector<64x128xf32>
    %cst_28 = arith.constant 0.000000e+00 : f32
    %61 = vector.broadcast %cst_28 : f32 to vector<64x128xf32>
    %62 = arith.subf %61, %58 : vector<64x128xf32>
    %63 = arith.select %60, %58, %62 : vector<64x128xi1>, vector<64x128xf32>
    %cst_29 = arith.constant 1.000000e+00 : f32
    %64 = vector.broadcast %cst_29 : f32 to vector<64x128xf32>
    %65 = arith.addf %64, %63 : vector<64x128xf32>
    %66 = arith.mulf %27, %65 : vector<64x128xf32>
    %c0_30 = arith.constant 0 : index
    %c0_31 = arith.constant 0 : index
    %c0_32 = arith.constant 0 : index
    %67 = vector.load %arg5[%c0_30, %c0_31, %c0_32] : memref<1x64x128xf32, #tpu.memory_space<vmem>>, vector<1x64x128xf32>
    %68 = vector.shape_cast %67 : vector<1x64x128xf32> to vector<64x128xf32>
    %69 = vector.shape_cast %66 : vector<64x128xf32> to vector<1x64x128xf32>
    tpu.vector_store %arg5[%c0_30, %c0_31, %c0_32], %69 {strides = array<i32>} : memref<1x64x128xf32, #tpu.memory_space<vmem>>, vector<1x64x128xf32>,
    return
  }
  func.func @transform_0(%arg0: i32, %arg1: i32) -> (i32, i32, i32, i32) {
    %c0_i32 = arith.constant 0 : i32
    %c0_i32_0 = arith.constant 0 : i32
    %c0_i32_1 = arith.constant 0 : i32
    %c0_i32_2 = arith.constant 0 : i32
    return %arg0, %c0_i32, %c0_i32_0, %c0_i32_1 : i32, i32, i32, i32
  }
  func.func @transform_1(%arg0: i32, %arg1: i32) -> (i32, i32, i32) {
    %c0_i32 = arith.constant 0 : i32
    %c0_i32_0 = arith.constant 0 : i32
    %c0_i32_1 = arith.constant 0 : i32
    return %c0_i32, %c0_i32_0, %arg1 : i32, i32, i32
  }
  func.func @transform_2(%arg0: i32, %arg1: i32) -> (i32, i32) {
    %c0_i32 = arith.constant 0 : i32
    %c0_i32_0 = arith.constant 0 : i32
    return %c0_i32, %arg1 : i32, i32
  }
  func.func @transform_3(%arg0: i32, %arg1: i32) -> (i32, i32, i32) {
    %c0_i32 = arith.constant 0 : i32
    %c0_i32_0 = arith.constant 0 : i32
    return %arg0, %c0_i32, %arg1 : i32, i32, i32
  }
}

module attributes {stable_mosaic.version = 11 : i64} {
  func.func @_down_kernel(%arg0: i32, %arg1: memref<1x16x16x8xf32, #tpu.memory_space<vmem>>, %arg2: memref<1x8x8x8xbf16, #tpu.memory_space<vmem>>, %arg3: memref<18x18x8xf32, #tpu.memory_space<vmem>>) attributes {dimension_semantics = [#tpu.dimension_semantics<parallel>], iteration_bounds = array<i64: 2>, scalar_prefetch = 0 : i64, scratch_operands = 1 : i64, tpu.core_type = #tpu.core_type<tc>, window_params = [{transform_indices = @transform_0, window_bounds = array<i64: 1, 16, 16, 8>}, {transform_indices = @transform_1, window_bounds = array<i64: 1, 8, 8, 8>}]} {
    %c0 = arith.constant 0 : index
    %c0_0 = arith.constant 0 : index
    %c0_1 = arith.constant 0 : index
    %c0_2 = arith.constant 0 : index
    %0 = vector.load %arg1[%c0, %c0_0, %c0_1, %c0_2] : memref<1x16x16x8xf32, #tpu.memory_space<vmem>>, vector<1x16x16x8xf32>
    %1 = vector.shape_cast %0 : vector<1x16x16x8xf32> to vector<16x16x8xf32>
    %2 = vector.extract_strided_slice %1 {offsets = [0, 0, 0], sizes = [16, 15, 8], strides = [1, 1, 1]} : vector<16x16x8xf32> to vector<16x15x8xf32>
    %3 = vector.extract_strided_slice %1 {offsets = [0, 1, 0], sizes = [16, 15, 8], strides = [1, 1, 1]} : vector<16x16x8xf32> to vector<16x15x8xf32>
    %4 = arith.maximumf %2, %3 : vector<16x15x8xf32>
    %5 = vector.extract_strided_slice %4 {offsets = [0, 0, 0], sizes = [15, 15, 8], strides = [1, 1, 1]} : vector<16x15x8xf32> to vector<15x15x8xf32>
    %6 = vector.extract_strided_slice %4 {offsets = [1, 0, 0], sizes = [15, 15, 8], strides = [1, 1, 1]} : vector<16x15x8xf32> to vector<15x15x8xf32>
    %7 = arith.maximumf %5, %6 : vector<15x15x8xf32>
    %c1 = arith.constant 1 : index
    %c1_3 = arith.constant 1 : index
    %c0_4 = arith.constant 0 : index
    %8 = vector.load %arg3[%c1, %c1_3, %c0_4] : memref<18x18x8xf32, #tpu.memory_space<vmem>>, vector<15x15x8xf32>
    tpu.vector_store %arg3[%c1, %c1_3, %c0_4], %7 {strides = array<i32>} : memref<18x18x8xf32, #tpu.memory_space<vmem>>, vector<15x15x8xf32>,
    %9 = vector.extract_strided_slice %7 {offsets = [1, 0, 0], sizes = [1, 15, 8], strides = [1, 1, 1]} : vector<15x15x8xf32> to vector<1x15x8xf32>
    %c0_5 = arith.constant 0 : index
    %c1_6 = arith.constant 1 : index
    %c0_7 = arith.constant 0 : index
    %10 = vector.load %arg3[%c0_5, %c1_6, %c0_7] : memref<18x18x8xf32, #tpu.memory_space<vmem>>, vector<1x15x8xf32>
    tpu.vector_store %arg3[%c0_5, %c1_6, %c0_7], %9 {strides = array<i32>} : memref<18x18x8xf32, #tpu.memory_space<vmem>>, vector<1x15x8xf32>,
    %11 = vector.extract_strided_slice %7 {offsets = [13, 0, 0], sizes = [1, 15, 8], strides = [1, 1, 1]} : vector<15x15x8xf32> to vector<1x15x8xf32>
    %c16 = arith.constant 16 : index
    %c1_8 = arith.constant 1 : index
    %c0_9 = arith.constant 0 : index
    %12 = vector.load %arg3[%c16, %c1_8, %c0_9] : memref<18x18x8xf32, #tpu.memory_space<vmem>>, vector<1x15x8xf32>
    tpu.vector_store %arg3[%c16, %c1_8, %c0_9], %11 {strides = array<i32>} : memref<18x18x8xf32, #tpu.memory_space<vmem>>, vector<1x15x8xf32>,
    %13 = vector.extract_strided_slice %7 {offsets = [12, 0, 0], sizes = [1, 15, 8], strides = [1, 1, 1]} : vector<15x15x8xf32> to vector<1x15x8xf32>
    %c17 = arith.constant 17 : index
    %c1_10 = arith.constant 1 : index
    %c0_11 = arith.constant 0 : index
    %14 = vector.load %arg3[%c17, %c1_10, %c0_11] : memref<18x18x8xf32, #tpu.memory_space<vmem>>, vector<1x15x8xf32>
    tpu.vector_store %arg3[%c17, %c1_10, %c0_11], %13 {strides = array<i32>} : memref<18x18x8xf32, #tpu.memory_space<vmem>>, vector<1x15x8xf32>,
    %c0_12 = arith.constant 0 : index
    %c2 = arith.constant 2 : index
    %c0_13 = arith.constant 0 : index
    %15 = vector.load %arg3[%c0_12, %c2, %c0_13] : memref<18x18x8xf32, #tpu.memory_space<vmem>>, vector<18x1x8xf32>
    %c0_14 = arith.constant 0 : index
    %c0_15 = arith.constant 0 : index
    %c0_16 = arith.constant 0 : index
    %16 = vector.load %arg3[%c0_14, %c0_15, %c0_16] : memref<18x18x8xf32, #tpu.memory_space<vmem>>, vector<18x1x8xf32>
    tpu.vector_store %arg3[%c0_14, %c0_15, %c0_16], %15 {strides = array<i32>} : memref<18x18x8xf32, #tpu.memory_space<vmem>>, vector<18x1x8xf32>,
    %c0_17 = arith.constant 0 : index
    %c14 = arith.constant 14 : index
    %c0_18 = arith.constant 0 : index
    %17 = vector.load %arg3[%c0_17, %c14, %c0_18] : memref<18x18x8xf32, #tpu.memory_space<vmem>>, vector<18x1x8xf32>
    %c0_19 = arith.constant 0 : index
    %c16_20 = arith.constant 16 : index
    %c0_21 = arith.constant 0 : index
    %18 = vector.load %arg3[%c0_19, %c16_20, %c0_21] : memref<18x18x8xf32, #tpu.memory_space<vmem>>, vector<18x1x8xf32>
    tpu.vector_store %arg3[%c0_19, %c16_20, %c0_21], %17 {strides = array<i32>} : memref<18x18x8xf32, #tpu.memory_space<vmem>>, vector<18x1x8xf32>,
    %c0_22 = arith.constant 0 : index
    %c13 = arith.constant 13 : index
    %c0_23 = arith.constant 0 : index
    %19 = vector.load %arg3[%c0_22, %c13, %c0_23] : memref<18x18x8xf32, #tpu.memory_space<vmem>>, vector<18x1x8xf32>
    %c0_24 = arith.constant 0 : index
    %c17_25 = arith.constant 17 : index
    %c0_26 = arith.constant 0 : index
    %20 = vector.load %arg3[%c0_24, %c17_25, %c0_26] : memref<18x18x8xf32, #tpu.memory_space<vmem>>, vector<18x1x8xf32>
    tpu.vector_store %arg3[%c0_24, %c17_25, %c0_26], %19 {strides = array<i32>} : memref<18x18x8xf32, #tpu.memory_space<vmem>>, vector<18x1x8xf32>,
    %c0_27 = arith.constant 0 : index
    %c0_28 = arith.constant 0 : index
    %c0_29 = arith.constant 0 : index
    %21 = tpu.strided_load %arg3[%c0_27, %c0_28, %c0_29] {strides = array<i32: 1, 2, 1>} : memref<18x18x8xf32, #tpu.memory_space<vmem>>, vector<18x8x8xf32>
    %cst = arith.constant 1.250000e-01 : f32
    %22 = vector.broadcast %cst : f32 to vector<18x8x8xf32>
    %23 = arith.mulf %22, %21 : vector<18x8x8xf32>
    %c0_30 = arith.constant 0 : index
    %c1_31 = arith.constant 1 : index
    %c0_32 = arith.constant 0 : index
    %24 = tpu.strided_load %arg3[%c0_30, %c1_31, %c0_32] {strides = array<i32: 1, 2, 1>} : memref<18x18x8xf32, #tpu.memory_space<vmem>>, vector<18x8x8xf32>
    %cst_33 = arith.constant 3.750000e-01 : f32
    %25 = vector.broadcast %cst_33 : f32 to vector<18x8x8xf32>
    %26 = arith.mulf %25, %24 : vector<18x8x8xf32>
    %27 = arith.addf %23, %26 : vector<18x8x8xf32>
    %c0_34 = arith.constant 0 : index
    %c2_35 = arith.constant 2 : index
    %c0_36 = arith.constant 0 : index
    %28 = tpu.strided_load %arg3[%c0_34, %c2_35, %c0_36] {strides = array<i32: 1, 2, 1>} : memref<18x18x8xf32, #tpu.memory_space<vmem>>, vector<18x8x8xf32>
    %cst_37 = arith.constant 3.750000e-01 : f32
    %29 = vector.broadcast %cst_37 : f32 to vector<18x8x8xf32>
    %30 = arith.mulf %29, %28 : vector<18x8x8xf32>
    %31 = arith.addf %27, %30 : vector<18x8x8xf32>
    %c0_38 = arith.constant 0 : index
    %c3 = arith.constant 3 : index
    %c0_39 = arith.constant 0 : index
    %32 = tpu.strided_load %arg3[%c0_38, %c3, %c0_39] {strides = array<i32: 1, 2, 1>} : memref<18x18x8xf32, #tpu.memory_space<vmem>>, vector<18x8x8xf32>
    %cst_40 = arith.constant 1.250000e-01 : f32
    %33 = vector.broadcast %cst_40 : f32 to vector<18x8x8xf32>
    %34 = arith.mulf %33, %32 : vector<18x8x8xf32>
    %35 = arith.addf %31, %34 : vector<18x8x8xf32>
    %36 = vector.shape_cast %35 : vector<18x8x8xf32> to vector<9x2x8x8xf32>
    %37 = vector.extract_strided_slice %36 {offsets = [0, 0, 0, 0], sizes = [8, 1, 8, 8], strides = [1, 1, 1, 1]} : vector<9x2x8x8xf32> to vector<8x1x8x8xf32>
    %38 = vector.shape_cast %37 : vector<8x1x8x8xf32> to vector<8x8x8xf32>
    %cst_41 = arith.constant 1.250000e-01 : f32
    %39 = vector.broadcast %cst_41 : f32 to vector<8x8x8xf32>
    %40 = arith.mulf %39, %38 : vector<8x8x8xf32>
    %41 = vector.extract_strided_slice %36 {offsets = [0, 1, 0, 0], sizes = [8, 1, 8, 8], strides = [1, 1, 1, 1]} : vector<9x2x8x8xf32> to vector<8x1x8x8xf32>
    %42 = vector.shape_cast %41 : vector<8x1x8x8xf32> to vector<8x8x8xf32>
    %cst_42 = arith.constant 3.750000e-01 : f32
    %43 = vector.broadcast %cst_42 : f32 to vector<8x8x8xf32>
    %44 = arith.mulf %43, %42 : vector<8x8x8xf32>
    %45 = arith.addf %40, %44 : vector<8x8x8xf32>
    %46 = vector.extract_strided_slice %36 {offsets = [1, 0, 0, 0], sizes = [8, 1, 8, 8], strides = [1, 1, 1, 1]} : vector<9x2x8x8xf32> to vector<8x1x8x8xf32>
    %47 = vector.shape_cast %46 : vector<8x1x8x8xf32> to vector<8x8x8xf32>
    %cst_43 = arith.constant 3.750000e-01 : f32
    %48 = vector.broadcast %cst_43 : f32 to vector<8x8x8xf32>
    %49 = arith.mulf %48, %47 : vector<8x8x8xf32>
    %50 = arith.addf %45, %49 : vector<8x8x8xf32>
    %51 = vector.extract_strided_slice %36 {offsets = [1, 1, 0, 0], sizes = [8, 1, 8, 8], strides = [1, 1, 1, 1]} : vector<9x2x8x8xf32> to vector<8x1x8x8xf32>
    %52 = vector.shape_cast %51 : vector<8x1x8x8xf32> to vector<8x8x8xf32>
    %cst_44 = arith.constant 1.250000e-01 : f32
    %53 = vector.broadcast %cst_44 : f32 to vector<8x8x8xf32>
    %54 = arith.mulf %53, %52 : vector<8x8x8xf32>
    %55 = arith.addf %50, %54 : vector<8x8x8xf32>
    %cst_45 = arith.constant 5.000000e-01 : f32
    %56 = vector.broadcast %cst_45 : f32 to vector<8x8x8xf32>
    %57 = arith.mulf %56, %55 : vector<8x8x8xf32>
    %cst_46 = arith.constant 0.707106769 : f32
    %58 = vector.broadcast %cst_46 : f32 to vector<8x8x8xf32>
    %59 = arith.mulf %55, %58 : vector<8x8x8xf32>
    %cst_47 = arith.constant 0.000000e+00 : f32
    %60 = vector.broadcast %cst_47 : f32 to vector<8x8x8xf32>
    %61 = arith.subf %60, %59 : vector<8x8x8xf32>
    %62 = arith.maximumf %59, %61 : vector<8x8x8xf32>
    %cst_48 = arith.constant 0.327591091 : f32
    %63 = vector.broadcast %cst_48 : f32 to vector<8x8x8xf32>
    %64 = arith.mulf %63, %62 : vector<8x8x8xf32>
    %cst_49 = arith.constant 1.000000e+00 : f32
    %65 = vector.broadcast %cst_49 : f32 to vector<8x8x8xf32>
    %66 = arith.addf %65, %64 : vector<8x8x8xf32>
    %67 = tpu.reciprocal %66 {approx = true} : vector<8x8x8xf32> -> vector<8x8x8xf32>
    %cst_50 = arith.constant 1.06140542 : f32
    %68 = vector.broadcast %cst_50 : f32 to vector<8x8x8xf32>
    %69 = arith.mulf %68, %67 : vector<8x8x8xf32>
    %cst_51 = arith.constant 1.45315206 : f32
    %70 = vector.broadcast %cst_51 : f32 to vector<8x8x8xf32>
    %71 = arith.subf %69, %70 : vector<8x8x8xf32>
    %72 = arith.mulf %71, %67 : vector<8x8x8xf32>
    %cst_52 = arith.constant 1.42141378 : f32
    %73 = vector.broadcast %cst_52 : f32 to vector<8x8x8xf32>
    %74 = arith.addf %72, %73 : vector<8x8x8xf32>
    %75 = arith.mulf %74, %67 : vector<8x8x8xf32>
    %cst_53 = arith.constant 0.284496725 : f32
    %76 = vector.broadcast %cst_53 : f32 to vector<8x8x8xf32>
    %77 = arith.subf %75, %76 : vector<8x8x8xf32>
    %78 = arith.mulf %77, %67 : vector<8x8x8xf32>
    %cst_54 = arith.constant 0.254829586 : f32
    %79 = vector.broadcast %cst_54 : f32 to vector<8x8x8xf32>
    %80 = arith.addf %78, %79 : vector<8x8x8xf32>
    %81 = arith.mulf %80, %67 : vector<8x8x8xf32>
    %82 = arith.mulf %62, %62 : vector<8x8x8xf32>
    %cst_55 = arith.constant 0.000000e+00 : f32
    %83 = vector.broadcast %cst_55 : f32 to vector<8x8x8xf32>
    %84 = arith.subf %83, %82 : vector<8x8x8xf32>
    %85 = math.exp %84 : vector<8x8x8xf32>
    %86 = arith.mulf %81, %85 : vector<8x8x8xf32>
    %cst_56 = arith.constant 1.000000e+00 : f32
    %87 = vector.broadcast %cst_56 : f32 to vector<8x8x8xf32>
    %88 = arith.subf %87, %86 : vector<8x8x8xf32>
    %cst_57 = arith.constant 0.000000e+00 : f32
    %89 = vector.broadcast %cst_57 : f32 to vector<8x8x8xf32>
    %90 = arith.cmpf oge, %59, %89 : vector<8x8x8xf32>
    %cst_58 = arith.constant 0.000000e+00 : f32
    %91 = vector.broadcast %cst_58 : f32 to vector<8x8x8xf32>
    %92 = arith.subf %91, %88 : vector<8x8x8xf32>
    %93 = arith.select %90, %88, %92 : vector<8x8x8xi1>, vector<8x8x8xf32>
    %cst_59 = arith.constant 1.000000e+00 : f32
    %94 = vector.broadcast %cst_59 : f32 to vector<8x8x8xf32>
    %95 = arith.addf %94, %93 : vector<8x8x8xf32>
    %96 = arith.mulf %57, %95 : vector<8x8x8xf32>
    %97 = arith.truncf %96 : vector<8x8x8xf32> to vector<8x8x8xbf16>
    %c0_60 = arith.constant 0 : index
    %c0_61 = arith.constant 0 : index
    %c0_62 = arith.constant 0 : index
    %c0_63 = arith.constant 0 : index
    %98 = vector.load %arg2[%c0_60, %c0_61, %c0_62, %c0_63] : memref<1x8x8x8xbf16, #tpu.memory_space<vmem>>, vector<1x8x8x8xbf16>
    %99 = vector.shape_cast %98 : vector<1x8x8x8xbf16> to vector<8x8x8xbf16>
    %100 = vector.shape_cast %97 : vector<8x8x8xbf16> to vector<1x8x8x8xbf16>
    tpu.vector_store %arg2[%c0_60, %c0_61, %c0_62, %c0_63], %100 {strides = array<i32>} : memref<1x8x8x8xbf16, #tpu.memory_space<vmem>>, vector<1x8x8x8xbf16>,
    return
  }
  func.func @transform_0(%arg0: i32) -> (i32, i32, i32, i32) {
    %c0_i32 = arith.constant 0 : i32
    %c0_i32_0 = arith.constant 0 : i32
    %c0_i32_1 = arith.constant 0 : i32
    %c0_i32_2 = arith.constant 0 : i32
    return %arg0, %c0_i32, %c0_i32_0, %c0_i32_1 : i32, i32, i32, i32
  }
  func.func @transform_1(%arg0: i32) -> (i32, i32, i32, i32) {
    %c0_i32 = arith.constant 0 : i32
    %c0_i32_0 = arith.constant 0 : i32
    %c0_i32_1 = arith.constant 0 : i32
    %c0_i32_2 = arith.constant 0 : i32
    return %arg0, %c0_i32, %c0_i32_0, %c0_i32_1 : i32, i32, i32, i32
  }
}

module attributes {stable_mosaic.version = 11 : i64} {
  func.func @_conv_kernel(%arg0: i32, %arg1: i32, %arg2: memref<1x8x8x8xbf16, #tpu.memory_space<vmem>>, %arg3: memref<3x24x128xbf16, #tpu.memory_space<vmem>>, %arg4: memref<1x128xf32, #tpu.memory_space<vmem>>, %arg5: memref<1x64x128xbf16, #tpu.memory_space<vmem>>, %arg6: memref<10x8x24xbf16, #tpu.memory_space<vmem>>) attributes {dimension_semantics = [#tpu.dimension_semantics<parallel>, #tpu.dimension_semantics<arbitrary>], iteration_bounds = array<i64: 2, 1>, scalar_prefetch = 0 : i64, scratch_operands = 1 : i64, tpu.core_type = #tpu.core_type<tc>, window_params = [{transform_indices = @transform_0, window_bounds = array<i64: 1, 8, 8, 8>}, {transform_indices = @transform_1, window_bounds = array<i64: 3, 24, 128>}, {transform_indices = @transform_2, window_bounds = array<i64: 1, 128>}, {transform_indices = @transform_3, window_bounds = array<i64: 1, 64, 128>}]} {
    %c0_i32 = arith.constant 0 : i32
    %0 = arith.cmpi eq, %arg1, %c0_i32 : i32
    %1 = arith.extui %0 : i1 to i32
    %c0_i32_0 = arith.constant 0 : i32
    %2 = arith.cmpi ne, %1, %c0_i32_0 : i32
    scf.if %2 {
      %c0_18 = arith.constant 0 : index
      %c0_19 = arith.constant 0 : index
      %c0_20 = arith.constant 0 : index
      %c0_21 = arith.constant 0 : index
      %30 = vector.load %arg2[%c0_18, %c0_19, %c0_20, %c0_21] : memref<1x8x8x8xbf16, #tpu.memory_space<vmem>>, vector<1x8x8x8xbf16>
      %31 = vector.shape_cast %30 : vector<1x8x8x8xbf16> to vector<8x8x8xbf16>
      %cst_22 = arith.constant 0.000000e+00 : bf16
      %32 = vector.broadcast %cst_22 : bf16 to vector<8x1x8xbf16>
      %33 = vector.extract_strided_slice %31 {offsets = [0, 0, 0], sizes = [8, 7, 8], strides = [1, 1, 1]} : vector<8x8x8xbf16> to vector<8x7x8xbf16>
      %34 = tpu.concatenate %32, %33 in 1 : vector<8x1x8xbf16>, vector<8x7x8xbf16> -> vector<8x8x8xbf16>
      %35 = vector.extract_strided_slice %31 {offsets = [0, 1, 0], sizes = [8, 7, 8], strides = [1, 1, 1]} : vector<8x8x8xbf16> to vector<8x7x8xbf16>
      %36 = tpu.concatenate %35, %32 in 1 : vector<8x7x8xbf16>, vector<8x1x8xbf16> -> vector<8x8x8xbf16>
      %37 = tpu.concatenate %34, %31, %36 in 2 : vector<8x8x8xbf16>, vector<8x8x8xbf16>, vector<8x8x8xbf16> -> vector<8x8x24xbf16>
      %c1_23 = arith.constant 1 : index
      %c0_24 = arith.constant 0 : index
      %c0_25 = arith.constant 0 : index
      %38 = vector.load %arg6[%c1_23, %c0_24, %c0_25] : memref<10x8x24xbf16, #tpu.memory_space<vmem>>, vector<8x8x24xbf16>
      tpu.vector_store %arg6[%c1_23, %c0_24, %c0_25], %37 {strides = array<i32>} : memref<10x8x24xbf16, #tpu.memory_space<vmem>>, vector<8x8x24xbf16>,
      %cst_26 = arith.constant 0.000000e+00 : bf16
      %39 = vector.broadcast %cst_26 : bf16 to vector<1x8x24xbf16>
      %c0_27 = arith.constant 0 : index
      %c0_28 = arith.constant 0 : index
      %c0_29 = arith.constant 0 : index
      %40 = vector.load %arg6[%c0_27, %c0_28, %c0_29] : memref<10x8x24xbf16, #tpu.memory_space<vmem>>, vector<1x8x24xbf16>
      tpu.vector_store %arg6[%c0_27, %c0_28, %c0_29], %39 {strides = array<i32>} : memref<10x8x24xbf16, #tpu.memory_space<vmem>>, vector<1x8x24xbf16>,
      %c9 = arith.constant 9 : index
      %c0_30 = arith.constant 0 : index
      %c0_31 = arith.constant 0 : index
      %41 = vector.load %arg6[%c9, %c0_30, %c0_31] : memref<10x8x24xbf16, #tpu.memory_space<vmem>>, vector<1x8x24xbf16>
      tpu.vector_store %arg6[%c9, %c0_30, %c0_31], %39 {strides = array<i32>} : memref<10x8x24xbf16, #tpu.memory_space<vmem>>, vector<1x8x24xbf16>,
    } else {
    }
    %c0 = arith.constant 0 : index
    %c0_1 = arith.constant 0 : index
    %c0_2 = arith.constant 0 : index
    %3 = vector.load %arg3[%c0, %c0_1, %c0_2] : memref<3x24x128xbf16, #tpu.memory_space<vmem>>, vector<3x24x128xbf16>
    %cst = arith.constant 0.000000e+00 : f32
    %4 = vector.broadcast %cst : f32 to vector<64x128xf32>
    %c0_3 = arith.constant 0 : index
    %c0_4 = arith.constant 0 : index
    %c0_5 = arith.constant 0 : index
    %5 = vector.load %arg6[%c0_3, %c0_4, %c0_5] : memref<10x8x24xbf16, #tpu.memory_space<vmem>>, vector<8x8x24xbf16>
    %6 = vector.shape_cast %5 : vector<8x8x24xbf16> to vector<64x24xbf16>
    %7 = vector.extract_strided_slice %3 {offsets = [0, 0, 0], sizes = [1, 24, 128], strides = [1, 1, 1]} : vector<3x24x128xbf16> to vector<1x24x128xbf16>
    %8 = vector.shape_cast %7 : vector<1x24x128xbf16> to vector<24x128xbf16>
    %cst_6 = arith.constant dense<0.000000e+00> : vector<64x128xf32>
    %9 = tpu.matmul %6, %8, %cst_6 {dimension_numbers = #tpu.dot_dimension_numbers<[1], [0], [0], [1], [0, 0, 1, 1], [], []>} : vector<64x24xbf16>, vector<24x128xbf16>, vector<64x128xf32> -> vector<64x128xf32>
    %10 = arith.addf %4, %9 : vector<64x128xf32>
    %c1 = arith.constant 1 : index
    %c0_7 = arith.constant 0 : index
    %c0_8 = arith.constant 0 : index
    %11 = vector.load %arg6[%c1, %c0_7, %c0_8] : memref<10x8x24xbf16, #tpu.memory_space<vmem>>, vector<8x8x24xbf16>
    %12 = vector.shape_cast %11 : vector<8x8x24xbf16> to vector<64x24xbf16>
    %13 = vector.extract_strided_slice %3 {offsets = [1, 0, 0], sizes = [1, 24, 128], strides = [1, 1, 1]} : vector<3x24x128xbf16> to vector<1x24x128xbf16>
    %14 = vector.shape_cast %13 : vector<1x24x128xbf16> to vector<24x128xbf16>
    %cst_9 = arith.constant dense<0.000000e+00> : vector<64x128xf32>
    %15 = tpu.matmul %12, %14, %cst_9 {dimension_numbers = #tpu.dot_dimension_numbers<[1], [0], [0], [1], [0, 0, 1, 1], [], []>} : vector<64x24xbf16>, vector<24x128xbf16>, vector<64x128xf32> -> vector<64x128xf32>
    %16 = arith.addf %10, %15 : vector<64x128xf32>
    %c2 = arith.constant 2 : index
    %c0_10 = arith.constant 0 : index
    %c0_11 = arith.constant 0 : index
    %17 = vector.load %arg6[%c2, %c0_10, %c0_11] : memref<10x8x24xbf16, #tpu.memory_space<vmem>>, vector<8x8x24xbf16>
    %18 = vector.shape_cast %17 : vector<8x8x24xbf16> to vector<64x24xbf16>
    %19 = vector.extract_strided_slice %3 {offsets = [2, 0, 0], sizes = [1, 24, 128], strides = [1, 1, 1]} : vector<3x24x128xbf16> to vector<1x24x128xbf16>
    %20 = vector.shape_cast %19 : vector<1x24x128xbf16> to vector<24x128xbf16>
    %cst_12 = arith.constant dense<0.000000e+00> : vector<64x128xf32>
    %21 = tpu.matmul %18, %20, %cst_12 {dimension_numbers = #tpu.dot_dimension_numbers<[1], [0], [0], [1], [0, 0, 1, 1], [], []>} : vector<64x24xbf16>, vector<24x128xbf16>, vector<64x128xf32> -> vector<64x128xf32>
    %22 = arith.addf %16, %21 : vector<64x128xf32>
    %c0_13 = arith.constant 0 : index
    %c0_14 = arith.constant 0 : index
    %23 = vector.load %arg4[%c0_13, %c0_14] : memref<1x128xf32, #tpu.memory_space<vmem>>, vector<1x128xf32>
    %24 = vector.broadcast %23 : vector<1x128xf32> to vector<64x128xf32>
    %25 = arith.addf %22, %24 : vector<64x128xf32>
    %26 = arith.truncf %25 : vector<64x128xf32> to vector<64x128xbf16>
    %c0_15 = arith.constant 0 : index
    %c0_16 = arith.constant 0 : index
    %c0_17 = arith.constant 0 : index
    %27 = vector.load %arg5[%c0_15, %c0_16, %c0_17] : memref<1x64x128xbf16, #tpu.memory_space<vmem>>, vector<1x64x128xbf16>
    %28 = vector.shape_cast %27 : vector<1x64x128xbf16> to vector<64x128xbf16>
    %29 = vector.shape_cast %26 : vector<64x128xbf16> to vector<1x64x128xbf16>
    tpu.vector_store %arg5[%c0_15, %c0_16, %c0_17], %29 {strides = array<i32>} : memref<1x64x128xbf16, #tpu.memory_space<vmem>>, vector<1x64x128xbf16>,
    return
  }
  func.func @transform_0(%arg0: i32, %arg1: i32) -> (i32, i32, i32, i32) {
    %c0_i32 = arith.constant 0 : i32
    %c0_i32_0 = arith.constant 0 : i32
    %c0_i32_1 = arith.constant 0 : i32
    %c0_i32_2 = arith.constant 0 : i32
    return %arg0, %c0_i32, %c0_i32_0, %c0_i32_1 : i32, i32, i32, i32
  }
  func.func @transform_1(%arg0: i32, %arg1: i32) -> (i32, i32, i32) {
    %c0_i32 = arith.constant 0 : i32
    %c0_i32_0 = arith.constant 0 : i32
    %c0_i32_1 = arith.constant 0 : i32
    return %c0_i32, %c0_i32_0, %arg1 : i32, i32, i32
  }
  func.func @transform_2(%arg0: i32, %arg1: i32) -> (i32, i32) {
    %c0_i32 = arith.constant 0 : i32
    %c0_i32_0 = arith.constant 0 : i32
    return %c0_i32, %arg1 : i32, i32
  }
  func.func @transform_3(%arg0: i32, %arg1: i32) -> (i32, i32, i32) {
    %c0_i32 = arith.constant 0 : i32
    %c0_i32_0 = arith.constant 0 : i32
    return %arg0, %c0_i32, %arg1 : i32, i32, i32
  }
}

</mosaic_0001>

<llo_original>
// kernel: convblock_down.4
$region0: #{convblock_down.4}
  #allocation0 [shape = 'u32[]', space=smem, size = 0x4, offset = 0x4, fixed_abs, tag = 'smem constant byte address 0x4 - core index']
  #allocation1 [shape = 'u32[72,128]{1,0:T(1,128)}', space=vmem, size = 0x9000, scoped, tag = 'internal scratch']
  #allocation2 [shape = 'bf16[10,8,24]{2,1,0:T(8,128)(2,1)}', space=vmem, size = 0x5000, scoped, tag = 'scratch operand']
  %s0 = inlined_call_operand.vmem [shape: bf16[2,8,8,8], index: 0, kind: input, shape index: {}]
  %s1 = inlined_call_operand.vmem [shape: bf16[3,24,128], index: 1, kind: input, shape index: {}]
  %s2 = inlined_call_operand.vmem [shape: f32[1,128], index: 2, kind: input, shape index: {}]
  %s3 = inlined_call_operand.vmem [shape: bf16[2,64,128], index: 3, kind: output, shape index: {}]
  %s4 = sld [smem:[#allocation0]]
  $region49: #{convblock_down.4} parent=0
    _
  %s6 = ssub.s32 1, %s4
  %s7 = scalar_select 0, %s6, %s4
  loop: start=0, step=1, limit=4
  $region2: #{convblock_down.4} parent=0 // loop_pre_header
    _
  $region3: #{convblock_down.4} parent=0 // loop_header
    %s9 = sphi 0, %s13
    %p10 = scmp.ge.s32.totalorder %s9, 4
    %s16 = sphi 0, %s28
    %s17 = sphi 0, %s24
    %s18 = sphi 0, %s16
    %s19 = sphi 0, %s17
    %s20 = sphi 0, %s18
    %s21 = sphi 0, %s19
    %s31 = sphi 0, %s33
    %s34 = sphi 0, %s31
    %s35 = sphi 0, %s34
    %s51 = sphi 0, %s35
    %s57 = sphi 0, %s59
    %s60 = sphi 0, %s57
    %s61 = sphi 0, %s60
    %s77 = sphi 0, %s61
    %s83 = sphi 0, %s85
    %s86 = sphi 0, %s83
    %s87 = sphi 0, %s86
    %s103 = sphi 0, %s87
    %s111 = sphi 0, %s113
    %s114 = sphi 0, %s111
    %s115 = sphi 0, %s114
    %s131 = sphi 0, %s115
  $region4: #{convblock_down.4} parent=0 // loop_header_branch
    %12 = sbr.rel (%p10) target = $region8
  $region5: #{convblock_down.4} parent=0 // loop_body
    %s14 = ssub.s32 %s9, 1
    %s15 = ssub.s32 %s9, 2
    %s22 = sadd.s32 1, %s17
    %p23 = scmp.ge.s32.totalorder %s22, 1
    %s24 = scalar_select %p23, 0, %s22
    %s25 = sadd.s32 1, %s16
    %s26 = scalar_select %p23, %s25, %s16
    %p27 = scmp.ge.s32.totalorder %s26, 2
    %s28 = scalar_select %p27, 0, %s26
    %s29 = ssub.s32 %s16, %s28
    %p30 = scmp.eq.s32.totalorder %s29, 0
    %s32 = sadd.s32 %s31, 1
    %s33 = scalar_select %p30, %s31, %s32
    %p36 = pneg %p30
    %p37 = scmp.eq.s32.totalorder %s9, 1
    %p38 = por %p36, %p37
    %p39 = scmp.ne.s32.totalorder %s31, %s34
    %p40 = scmp.eq.s32.totalorder %s9, 0
    %p41 = por %p39, %p40
    %p42 = scmp.ne.s32.totalorder %s31, %s34
    %p43 = scmp.eq.s32.totalorder %s14, 1
    %p44 = por %p42, %p43
    %p45 = scmp.ne.s32.totalorder %s34, %s35
    %p46 = scmp.eq.s32.totalorder %s14, 0
    %p47 = por %p45, %p46
    %p48 = scmp.ne.s32.totalorder %s34, %s35
    %p49 = scmp.eq.s32.totalorder %s15, 1
    %p50 = por %p48, %p49
    %p52 = scmp.ne.s32.totalorder %s35, %s51
    %p53 = scmp.eq.s32.totalorder %s15, 0
    %p54 = por %p52, %p53
    %s55 = ssub.s32 %s17, %s24
    %p56 = scmp.eq.s32.totalorder %s55, 0
    %s58 = sadd.s32 %s57, 1
    %s59 = scalar_select %p56, %s57, %s58
    %p62 = pneg %p56
    %p63 = scmp.eq.s32.totalorder %s9, 1
    %p64 = por %p62, %p63
    %p65 = scmp.ne.s32.totalorder %s57, %s60
    %p66 = scmp.eq.s32.totalorder %s9, 0
    %p67 = por %p65, %p66
    %p68 = scmp.ne.s32.totalorder %s57, %s60
    %p69 = scmp.eq.s32.totalorder %s14, 1
    %p70 = por %p68, %p69
    %p71 = scmp.ne.s32.totalorder %s60, %s61
    %p72 = scmp.eq.s32.totalorder %s14, 0
    %p73 = por %p71, %p72
    %p74 = scmp.ne.s32.totalorder %s60, %s61
    %p75 = scmp.eq.s32.totalorder %s15, 1
    %p76 = por %p74, %p75
    %p78 = scmp.ne.s32.totalorder %s61, %s77
    %p79 = scmp.eq.s32.totalorder %s15, 0
    %p80 = por %p78, %p79
    %s81 = ssub.s32 %s17, %s24
    %p82 = scmp.eq.s32.totalorder %s81, 0
    %s84 = sadd.s32 %s83, 1
    %s85 = scalar_select %p82, %s83, %s84
    %p88 = pneg %p82
    %p89 = scmp.eq.s32.totalorder %s9, 1
    %p90 = por %p88, %p89
    %p91 = scmp.ne.s32.totalorder %s83, %s86
    %p92 = scmp.eq.s32.totalorder %s9, 0
    %p93 = por %p91, %p92
    %p94 = scmp.ne.s32.totalorder %s83, %s86
    %p95 = scmp.eq.s32.totalorder %s14, 1
    %p96 = por %p94, %p95
    %p97 = scmp.ne.s32.totalorder %s86, %s87
    %p98 = scmp.eq.s32.totalorder %s14, 0
    %p99 = por %p97, %p98
    %p100 = scmp.ne.s32.totalorder %s86, %s87
    %p101 = scmp.eq.s32.totalorder %s15, 1
    %p102 = por %p100, %p101
    %p104 = scmp.ne.s32.totalorder %s87, %s103
    %p105 = scmp.eq.s32.totalorder %s15, 0
    %p106 = por %p104, %p105
    %s107 = ssub.s32 %s16, %s28
    %s108 = ssub.s32 %s17, %s24
    %s109 = sor.u32 %s107, %s108
    %p110 = scmp.eq.s32.totalorder %s109, 0
    %s112 = sadd.s32 %s111, 1
    %s113 = scalar_select %p110, %s111, %s112
    %p116 = pneg %p110
    %p117 = scmp.eq.s32.totalorder %s9, 1
    %p118 = por %p116, %p117
    %p119 = scmp.ne.s32.totalorder %s111, %s114
    %p120 = scmp.eq.s32.totalorder %s9, 0
    %p121 = por %p119, %p120
    %p122 = scmp.ne.s32.totalorder %s111, %s114
    %p123 = scmp.eq.s32.totalorder %s14, 1
    %p124 = por %p122, %p123
    %p125 = scmp.ne.s32.totalorder %s114, %s115
    %p126 = scmp.eq.s32.totalorder %s14, 0
    %p127 = por %p125, %p126
    %p128 = scmp.ne.s32.totalorder %s114, %s115
    %p129 = scmp.eq.s32.totalorder %s15, 1
    %p130 = por %p128, %p129
    %p132 = scmp.ne.s32.totalorder %s115, %s131
    %p133 = scmp.eq.s32.totalorder %s15, 0
    %p134 = por %p132, %p133
    %p135 = scmp.le.s32.totalorder 1, %s9
    %p136 = scmp.lt.s32.totalorder %s9, 3
    %p137 = pnand %p135, %p136
    %p138 = pneg %p137
    // Predicated region
    $region9: #{convblock_down.4} parent=5 // pred_check
      _
    $region10: #{convblock_down.4} parent=5 // pred_check_branch
      %140 = sbr.rel (%p137) target = $region12
    $region11: #{convblock_down.4} parent=5 // pred_region
      %s141 = ssub.s32 %s9, 1
      // Predicated region
      $region13: #{convblock_down.4} parent=11 // pred_check
        %p142 = pneg %p73
      $region14: #{convblock_down.4} parent=11 // pred_check_branch
        %144 = sbr.rel (%p142) target = $region16
      $region15: #{convblock_down.4} parent=11 // pred_region
        %p145 = scmp.lt.s32.totalorder %s19, 0
        %s146 = scalar_select %p145, %s19, 0
        %s147 = smul.addr %s146, 4
        %s148 = scalar_lea.vmem %s1, %s147
      $region16: #{convblock_down.4} parent=11 // pred_fallthru
        _
      // Predicated region
      $region17: #{convblock_down.4} parent=11 // pred_check
        %p149 = pneg %p99
      $region18: #{convblock_down.4} parent=11 // pred_check_branch
        %151 = sbr.rel (%p149) target = $region20
      $region19: #{convblock_down.4} parent=11 // pred_region
        %p152 = scmp.lt.s32.totalorder %s19, 0
        %s153 = scalar_select %p152, %s19, 0
        %s154 = scalar_lea.vmem %s2, %s153
      $region20: #{convblock_down.4} parent=11 // pred_fallthru
        _
    $region12: #{convblock_down.4} parent=5 // pred_fallthru
      _
    %p155 = scmp.lt.s32.totalorder %s9, 2
    // Predicated region
    $region21: #{convblock_down.4} parent=5 // pred_check
      %p156 = pneg %p155
    $region22: #{convblock_down.4} parent=5 // pred_check_branch
      %158 = sbr.rel (%p156) target = $region24
    $region23: #{convblock_down.4} parent=5 // pred_region
      // Predicated region
      $region25: #{convblock_down.4} parent=23 // pred_check
        %p159 = pneg %p41
      $region26: #{convblock_down.4} parent=23 // pred_check_branch
        %161 = sbr.rel (%p159) target = $region28
      $region27: #{convblock_down.4} parent=23 // pred_region
        %p162 = scmp.lt.s32.totalorder %s16, 1
        %s163 = scalar_select %p162, %s16, 1
        %s164 = smul.addr %s163, 8
        %s165 = smul.addr %s164, 4
        %s166 = scalar_lea.vmem %s0, %s165
      $region28: #{convblock_down.4} parent=23 // pred_fallthru
        _
    $region24: #{convblock_down.4} parent=5 // pred_fallthru
      _
    %p167 = scmp.le.s32.totalorder 1, %s9
    %p168 = scmp.lt.s32.totalorder %s9, 3
    %p169 = pnand %p167, %p168
    %p170 = pneg %p169
    // Predicated region
    $region29: #{convblock_down.4} parent=5 // pred_check
      _
    $region30: #{convblock_down.4} parent=5 // pred_check_branch
      %172 = sbr.rel (%p169) target = $region32
    $region31: #{convblock_down.4} parent=5 // pred_region
      %s173 = ssub.s32 %s9, 1
      %p174 = scmp.lt.s32.totalorder %s18, 1
      %s175 = scalar_select %p174, %s18, 1
      %s176 = smul.addr %s175, 8
      %s177 = smul.addr %s176, 4
      %s178 = scalar_lea.vmem %s0, %s177
      %p179 = pneg %p47
      %p180 = pneg %p44
      %p181 = scmp.lt.s32.totalorder %s19, 0
      %s182 = scalar_select %p181, %s19, 0
      %s183 = smul.addr %s182, 4
      %s184 = scalar_lea.vmem %s1, %s183
      %p185 = pneg %p73
      %p186 = pneg %p70
      %p187 = scmp.lt.s32.totalorder %s19, 0
      %s188 = scalar_select %p187, %s19, 0
      %s189 = scalar_lea.vmem %s2, %s188
      %p190 = pneg %p99
      %p191 = pneg %p96
      %p192 = pneg %p127
      %p193 = pneg %p124
      %p194 = scmp.lt.s32.totalorder %s18, 1
      %s195 = scalar_select %p194, %s18, 1
      %p196 = scmp.lt.s32.totalorder %s19, 0
      %s197 = scalar_select %p196, %s19, 0
      %s198 = smul.addr %s195, 8
      %s199 = sadd.s32 %s197, %s198
      %s200 = smul.addr %s199, 4
      %s201 = scalar_lea.vmem %s3, %s200
      %p202 = scmp.lt.s32.totalorder %s18, 1
      %s203 = scalar_select %p202, %s18, 1
      %s204 = smul.addr %s203, 8
      %s205 = smul.addr %s204, 4
      %s206 = scalar_lea.vmem %s0, %s205
      %p207 = scmp.lt.s32.totalorder %s19, 0
      %s208 = scalar_select %p207, %s19, 0
      %s209 = smul.addr %s208, 4
      %s210 = scalar_lea.vmem %s1, %s209
      %p211 = scmp.lt.s32.totalorder %s19, 0
      %s212 = scalar_select %p211, %s19, 0
      %s213 = scalar_lea.vmem %s2, %s212
      %p214 = scmp.lt.s32.totalorder %s18, 1
      %s215 = scalar_select %p214, %s18, 1
      %p216 = scmp.lt.s32.totalorder %s19, 0
      %s217 = scalar_select %p216, %s19, 0
      %s218 = smul.addr %s215, 8
      %s219 = sadd.s32 %s217, %s218
      %s220 = smul.addr %s219, 4
      %s221 = scalar_lea.vmem %s3, %s220
      %p223 = scmp.eq.s32.totalorder %s19, 0
      // Predicated region
      $region33: #{convblock_down.4} parent=31 // pred_check
        %p224 = pneg %p223
      $region34: #{convblock_down.4} parent=31 // pred_check_branch
        %226 = sbr.rel (%p224) target = $region36
      $region35: #{convblock_down.4} parent=31 // pred_region
        %v227 = vld [vmem:[%s206] sm:$0xf]
        %v228 = vld [vmem:[%s206 + $0x4] sm:$0xf]
        %v229 = vld [vmem:[%s206 + $0x8] sm:$0xf]
        %v230 = vld [vmem:[%s206 + $0xc] sm:$0xf]
        %v231 = vld [vmem:[%s206 + $0x10] sm:$0xf]
        %v232 = vld [vmem:[%s206 + $0x14] sm:$0xf]
        %v233 = vld [vmem:[%s206 + $0x18] sm:$0xf]
        %v234 = vld [vmem:[%s206 + $0x1c] sm:$0xf]
        %v243 = vunpack.c.l.b16 %v227
        %v244 = vunpack.c.l.b16 %v228
        %v245 = vunpack.c.l.b16 %v229
        %v246 = vunpack.c.l.b16 %v230
        %v247 = vunpack.c.l.b16 %v231
        %v248 = vunpack.c.l.b16 %v232
        %v249 = vunpack.c.l.b16 %v233
        %v250 = vunpack.c.l.b16 %v234
        %v251 = vpack.c.b16 %v243, %v243
        %v252 = vpack.c.b16 %v244, %v244
        %v253 = vpack.c.b16 %v245, %v245
        %v254 = vpack.c.b16 %v246, %v246
        %v255 = vpack.c.b16 %v247, %v247
        %v256 = vpack.c.b16 %v248, %v248
        %v257 = vpack.c.b16 %v249, %v249
        %v258 = vpack.c.b16 %v250, %v250
        %v260 = vshrl.u32 %v251, 16
        %v262 = vrot.slane %v260, 7
        %v263 = vshll.u32 %v251, 16
        %v265 = vor.u32 %v262, %v263
        %v267 = vshrl.u32 %v252, 16
        %v269 = vrot.slane %v267, 7
        %v270 = vshll.u32 %v252, 16
        %v272 = vor.u32 %v269, %v270
        %v274 = vshrl.u32 %v253, 16
        %v276 = vrot.slane %v274, 7
        %v277 = vshll.u32 %v253, 16
        %v279 = vor.u32 %v276, %v277
        %v281 = vshrl.u32 %v254, 16
        %v283 = vrot.slane %v281, 7
        %v284 = vshll.u32 %v254, 16
        %v286 = vor.u32 %v283, %v284
        %v288 = vshrl.u32 %v255, 16
        %v290 = vrot.slane %v288, 7
        %v291 = vshll.u32 %v255, 16
        %v293 = vor.u32 %v290, %v291
        %v295 = vshrl.u32 %v256, 16
        %v297 = vrot.slane %v295, 7
        %v298 = vshll.u32 %v256, 16
        %v300 = vor.u32 %v297, %v298
        %v302 = vshrl.u32 %v257, 16
        %v304 = vrot.slane %v302, 7
        %v305 = vshll.u32 %v257, 16
        %v307 = vor.u32 %v304, %v305
        %v309 = vshrl.u32 %v258, 16
        %v311 = vrot.slane %v309, 7
        %v312 = vshll.u32 %v258, 16
        %v314 = vor.u32 %v311, %v312
        %vm323 = vcmask 1040384
        %vm324 = vsmask.f32 256
        %vm325 = vmand %vm323, %vm324
        %v326 = vsel %vm325, 0, %v265
        %v327 = vsel %vm325, 0, %v272
        %v328 = vsel %vm325, 0, %v279
        %v329 = vsel %vm325, 0, %v286
        %v330 = vsel %vm325, 0, %v293
        %v331 = vsel %vm325, 0, %v300
        %v332 = vsel %vm325, 0, %v307
        %v333 = vsel %vm325, 0, %v314
        %v334 = vrot.slane %v263, 1
        %v335 = vor.u32 %v260, %v334
        %v336 = vrot.slane %v270, 1
        %v337 = vor.u32 %v267, %v336
        %v338 = vrot.slane %v277, 1
        %v339 = vor.u32 %v274, %v338
        %v340 = vrot.slane %v284, 1
        %v341 = vor.u32 %v281, %v340
        %v342 = vrot.slane %v291, 1
        %v343 = vor.u32 %v288, %v342
        %v344 = vrot.slane %v298, 1
        %v345 = vor.u32 %v295, %v344
        %v346 = vrot.slane %v305, 1
        %v347 = vor.u32 %v302, %v346
        %v348 = vrot.slane %v312, 1
        %v349 = vor.u32 %v309, %v348
        %vm358 = vcmask 1043456
        %vm359 = vsmask.f32 3328
        %vm360 = vmand %vm358, %vm359
        %v361 = vsel %vm360, %v335, 0
        %v362 = vsel %vm360, %v337, 0
        %v363 = vsel %vm360, %v339, 0
        %v364 = vsel %vm360, %v341, 0
        %v365 = vsel %vm360, %v343, 0
        %v366 = vsel %vm360, %v345, 0
        %v367 = vsel %vm360, %v347, 0
        %v368 = vsel %vm360, %v349, 0
        %369 = vrot.lane.b32.xlu0 %v251, 8
        %v370 = vpop.permute.xlu0 %369
        %371 = vrot.lane.b32.xlu0 %v252, 8
        %v372 = vpop.permute.xlu0 %371
        %373 = vrot.lane.b32.xlu0 %v253, 8
        %v374 = vpop.permute.xlu0 %373
        %375 = vrot.lane.b32.xlu0 %v254, 8
        %v376 = vpop.permute.xlu0 %375
        %377 = vrot.lane.b32.xlu0 %v255, 8
        %v378 = vpop.permute.xlu0 %377
        %379 = vrot.lane.b32.xlu0 %v256, 8
        %v380 = vpop.permute.xlu0 %379
        %381 = vrot.lane.b32.xlu0 %v257, 8
        %v382 = vpop.permute.xlu0 %381
        %383 = vrot.lane.b32.xlu0 %v258, 8
        %v384 = vpop.permute.xlu0 %383
        %393 = vrot.lane.b32.xlu0 %v361, 16
        %v394 = vpop.permute.xlu0 %393
        %395 = vrot.lane.b32.xlu0 %v362, 16
        %v396 = vpop.permute.xlu0 %395
        %397 = vrot.lane.b32.xlu0 %v363, 16
        %v398 = vpop.permute.xlu0 %397
        %399 = vrot.lane.b32.xlu0 %v364, 16
        %v400 = vpop.permute.xlu0 %399
        %401 = vrot.lane.b32.xlu0 %v365, 16
        %v402 = vpop.permute.xlu0 %401
        %403 = vrot.lane.b32.xlu0 %v366, 16
        %v404 = vpop.permute.xlu0 %403
        %405 = vrot.lane.b32.xlu0 %v367, 16
        %v406 = vpop.permute.xlu0 %405
        %407 = vrot.lane.b32.xlu0 %v368, 16
        %v408 = vpop.permute.xlu0 %407
        %vm409 = vcmask 64512
        %v412 = vsel %vm409, %v326, %v370
        %v415 = vsel %vm409, %v327, %v372
        %v418 = vsel %vm409, %v328, %v374
        %v421 = vsel %vm409, %v329, %v376
        %v424 = vsel %vm409, %v330, %v378
        %v427 = vsel %vm409, %v331, %v380
        %v430 = vsel %vm409, %v332, %v382
        %v433 = vsel %vm409, %v333, %v384
        %vm434 = vcmask 130048
        %v436 = vsel %vm434, %v412, %v394
        %v439 = vsel %vm434, %v415, %v396
        %v442 = vsel %vm434, %v418, %v398
        %v445 = vsel %vm434, %v421, %v400
        %v448 = vsel %vm434, %v424, %v402
        %v451 = vsel %vm434, %v427, %v404
        %v454 = vsel %vm434, %v430, %v406
        %v457 = vsel %vm434, %v433, %v408
        %s459 = scalar_lea.vmem [#allocation2], 4
        %vm460 = vcmask 191488
        %461 = vst.msk [vmem:[%s459] sm:$0xf] %vm460, %v436
        %462 = vst.msk [vmem:[%s459 + $0x4] sm:$0xf] %vm460, %v439
        %463 = vst.msk [vmem:[%s459 + $0x8] sm:$0xf] %vm460, %v442
        %464 = vst.msk [vmem:[%s459 + $0xc] sm:$0xf] %vm460, %v445
        %465 = vst.msk [vmem:[%s459 + $0x10] sm:$0xf] %vm460, %v448
        %466 = vst.msk [vmem:[%s459 + $0x14] sm:$0xf] %vm460, %v451
        %467 = vst.msk [vmem:[%s459 + $0x18] sm:$0xf] %vm460, %v454
        %468 = vst.msk [vmem:[%s459 + $0x1c] sm:$0xf] %vm460, %v457
        %469 = vst.msk [vmem:[#allocation2] sm:$0xf] %vm460, 0
        %s470 = scalar_lea.vmem [#allocation2], 36
        %471 = vst.msk [vmem:[%s470] sm:$0xf] %vm460, 0
      $region36: #{convblock_down.4} parent=31 // pred_fallthru
        _
      %v472 = vld [vmem:[%s210] sm:$0xf]
      %v473 = vld [vmem:[%s210 + $0x4] sm:$0xf]
      %v474 = vld [vmem:[%s210 + $0x8] sm:$0xf]
      %v475 = vld [vmem:[%s210 + $0xc] sm:$0xf]
      %v476 = vld [vmem:[%s210 + $0x10] sm:$0xf]
      %v477 = vld [vmem:[%s210 + $0x14] sm:$0xf]
      %v478 = vld [vmem:[%s210 + $0x18] sm:$0xf]
      %v479 = vld [vmem:[%s210 + $0x1c] sm:$0xf]
      %v480 = vld [vmem:[%s210 + $0x20] sm:$0xf]
      %v481 = vld [vmem:[#allocation2] sm:$0xf]
      %v482 = vld [vmem:[#allocation2 + $0x4] sm:$0xf]
      %v483 = vld [vmem:[#allocation2 + $0x8] sm:$0xf]
      %v484 = vld [vmem:[#allocation2 + $0xc] sm:$0xf]
      %v485 = vld [vmem:[#allocation2 + $0x10] sm:$0xf]
      %v486 = vld [vmem:[#allocation2 + $0x14] sm:$0xf]
      %v487 = vld [vmem:[#allocation2 + $0x18] sm:$0xf]
      %v488 = vld [vmem:[#allocation2 + $0x1c] sm:$0xf]
      %s489 = scalar_lea.vmem [#allocation2], 4
      %v490 = vld [vmem:[%s489] sm:$0xf]
      %v491 = vld [vmem:[%s489 + $0x4] sm:$0xf]
      %v492 = vld [vmem:[%s489 + $0x8] sm:$0xf]
      %v493 = vld [vmem:[%s489 + $0xc] sm:$0xf]
      %v494 = vld [vmem:[%s489 + $0x10] sm:$0xf]
      %v495 = vld [vmem:[%s489 + $0x14] sm:$0xf]
      %v496 = vld [vmem:[%s489 + $0x18] sm:$0xf]
      %v497 = vld [vmem:[%s489 + $0x1c] sm:$0xf]
      %v506 = vunpack.c.l.b16 %v490
      %v507 = vunpack.c.l.b16 %v491
      %v508 = vunpack.c.l.b16 %v492
      %v509 = vunpack.c.l.b16 %v493
      %v510 = vunpack.c.l.b16 %v494
      %v511 = vunpack.c.l.b16 %v495
      %v512 = vunpack.c.l.b16 %v496
      %v513 = vunpack.c.l.b16 %v497
      %v514 = vpack.c.b16 %v507, %v506
      %v515 = vpack.c.b16 %v509, %v508
      %v516 = vpack.c.b16 %v511, %v510
      %v517 = vpack.c.b16 %v513, %v512
      %v521 = vunpack.c.l.b16 %v475
      %v522 = vunpack.c.l.b16 %v476
      %v523 = vunpack.c.l.b16 %v477
      %v524 = vpack.c.b16 %v522, %v521
      %v525 = vpack.c.b16 %v523, %v523
      %vm527 = vcmask 195584
      %v529 = vsel %vm527, %v514, 0
      %v532 = vsel %vm527, %v515, 0
      %v535 = vsel %vm527, %v516, 0
      %v538 = vsel %vm527, %v517, 0
      %vm540 = vcmask 1043456
      %v542 = vsel %vm540, %v525, 0
      %544 = vmatpush.bf16.msra.mxu0 0
      %545 = vmatpush.bf16.msra.mxu0 0
      %546 = vmatpush.bf16.msra.mxu0 0
      %547 = vmatpush.bf16.msra.mxu0 0
      %548 = vmatpush.bf16.msra.mxu0 0
      %549 = vmatpush.bf16.msra.mxu0 0
      %550 = vmatpush.bf16.msra.mxu0 %v542
      %551 = vmatpush.bf16.msra.mxu0 %v524
      %552 = vmatmul.bf16.gmra.mxu0 %v529
      %v553 = vpop.f32.mrf.mxu0
      %v554 = vadd.f32 0.0, %v553
      %v555 = vpop.f32.mrf.mxu0
      %v556 = vadd.f32 0.0, %v555
      %557 = vmatmul.bf16.gmra.mxu0 %v532
      %v558 = vpop.f32.mrf.mxu0
      %v559 = vadd.f32 0.0, %v558
      %v560 = vpop.f32.mrf.mxu0
      %v561 = vadd.f32 0.0, %v560
      %562 = vmatmul.bf16.gmra.mxu0 %v535
      %v563 = vpop.f32.mrf.mxu0
      %v564 = vadd.f32 0.0, %v563
      %v565 = vpop.f32.mrf.mxu0
      %v566 = vadd.f32 0.0, %v565
      %567 = vmatmul.bf16.gmra.mxu0 %v538
      %v568 = vpop.f32.mrf.mxu0
      %v569 = vadd.f32 0.0, %v568
      %v570 = vpop.f32.mrf.mxu0
      %v571 = vadd.f32 0.0, %v570
      %572 = vdwg.mxu0
      %v581 = vunpack.c.l.b16 %v481
      %v582 = vunpack.c.l.b16 %v482
      %v583 = vunpack.c.l.b16 %v483
      %v584 = vunpack.c.l.b16 %v484
      %v585 = vunpack.c.l.b16 %v485
      %v586 = vunpack.c.l.b16 %v486
      %v587 = vunpack.c.l.b16 %v487
      %v588 = vunpack.c.l.b16 %v488
      %v589 = vpack.c.b16 %v582, %v581
      %v590 = vpack.c.b16 %v584, %v583
      %v591 = vpack.c.b16 %v586, %v585
      %v592 = vpack.c.b16 %v588, %v587
      %v596 = vunpack.c.l.b16 %v472
      %v597 = vunpack.c.l.b16 %v473
      %v598 = vunpack.c.l.b16 %v474
      %v599 = vpack.c.b16 %v597, %v596
      %v600 = vpack.c.b16 %v598, %v598
      %v603 = vsel %vm527, %v589, 0
      %v606 = vsel %vm527, %v590, 0
      %v609 = vsel %vm527, %v591, 0
      %v612 = vsel %vm527, %v592, 0
      %v615 = vsel %vm540, %v600, 0
      %617 = vmatpush.bf16.msra.mxu0 0
      %618 = vmatpush.bf16.msra.mxu0 0
      %619 = vmatpush.bf16.msra.mxu0 0
      %620 = vmatpush.bf16.msra.mxu0 0
      %621 = vmatpush.bf16.msra.mxu0 0
      %622 = vmatpush.bf16.msra.mxu0 0
      %623 = vmatpush.bf16.msra.mxu0 %v615
      %624 = vmatpush.bf16.msra.mxu0 %v599
      %625 = vmatmul.bf16.gmra.mxu0 %v603
      %v626 = vpop.f32.mrf.mxu0
      %v627 = vadd.f32 %v554, %v626
      %v628 = vpop.f32.mrf.mxu0
      %v629 = vadd.f32 %v556, %v628
      %630 = vmatmul.bf16.gmra.mxu0 %v606
      %v631 = vpop.f32.mrf.mxu0
      %v632 = vadd.f32 %v559, %v631
      %v633 = vpop.f32.mrf.mxu0
      %v634 = vadd.f32 %v561, %v633
      %635 = vmatmul.bf16.gmra.mxu0 %v609
      %v636 = vpop.f32.mrf.mxu0
      %v637 = vadd.f32 %v564, %v636
      %v638 = vpop.f32.mrf.mxu0
      %v639 = vadd.f32 %v566, %v638
      %640 = vmatmul.bf16.gmra.mxu0 %v612
      %v641 = vpop.f32.mrf.mxu0
      %v642 = vadd.f32 %v569, %v641
      %v643 = vpop.f32.mrf.mxu0
      %v644 = vadd.f32 %v571, %v643
      %645 = vdwg.mxu0
      %s646 = scalar_lea.vmem [#allocation2], 8
      %v647 = vld [vmem:[%s646] sm:$0xf]
      %v648 = vld [vmem:[%s646 + $0x4] sm:$0xf]
      %v649 = vld [vmem:[%s646 + $0x8] sm:$0xf]
      %v650 = vld [vmem:[%s646 + $0xc] sm:$0xf]
      %v651 = vld [vmem:[%s646 + $0x10] sm:$0xf]
      %v652 = vld [vmem:[%s646 + $0x14] sm:$0xf]
      %v653 = vld [vmem:[%s646 + $0x18] sm:$0xf]
      %v654 = vld [vmem:[%s646 + $0x1c] sm:$0xf]
      %v663 = vunpack.c.l.b16 %v647
      %v664 = vunpack.c.l.b16 %v648
      %v665 = vunpack.c.l.b16 %v649
      %v666 = vunpack.c.l.b16 %v650
      %v667 = vunpack.c.l.b16 %v651
      %v668 = vunpack.c.l.b16 %v652
      %v669 = vunpack.c.l.b16 %v653
      %v670 = vunpack.c.l.b16 %v654
      %v671 = vpack.c.b16 %v664, %v663
      %v672 = vpack.c.b16 %v666, %v665
      %v673 = vpack.c.b16 %v668, %v667
      %v674 = vpack.c.b16 %v670, %v669
      %v678 = vunpack.c.l.b16 %v478
      %v679 = vunpack.c.l.b16 %v479
      %v680 = vunpack.c.l.b16 %v480
      %v681 = vpack.c.b16 %v679, %v678
      %v682 = vpack.c.b16 %v680, %v680
      %v685 = vsel %vm527, %v671, 0
      %v688 = vsel %vm527, %v672, 0
      %v691 = vsel %vm527, %v673, 0
      %v694 = vsel %vm527, %v674, 0
      %v697 = vsel %vm540, %v682, 0
      %699 = vmatpush.bf16.msra.mxu0 0
      %700 = vmatpush.bf16.msra.mxu0 0
      %701 = vmatpush.bf16.msra.mxu0 0
      %702 = vmatpush.bf16.msra.mxu0 0
      %703 = vmatpush.bf16.msra.mxu0 0
      %704 = vmatpush.bf16.msra.mxu0 0
      %705 = vmatpush.bf16.msra.mxu0 %v697
      %706 = vmatpush.bf16.msra.mxu0 %v681
      %707 = vmatmul.bf16.gmra.mxu0 %v685
      %v708 = vpop.f32.mrf.mxu0
      %v709 = vadd.f32 0.0, %v708
      %v710 = vpop.f32.mrf.mxu0
      %v711 = vadd.f32 0.0, %v710
      %712 = vmatmul.bf16.gmra.mxu0 %v688
      %v713 = vpop.f32.mrf.mxu0
      %v714 = vadd.f32 0.0, %v713
      %v715 = vpop.f32.mrf.mxu0
      %v716 = vadd.f32 0.0, %v715
      %717 = vmatmul.bf16.gmra.mxu0 %v691
      %v718 = vpop.f32.mrf.mxu0
      %v719 = vadd.f32 0.0, %v718
      %v720 = vpop.f32.mrf.mxu0
      %v721 = vadd.f32 0.0, %v720
      %722 = vmatmul.bf16.gmra.mxu0 %v694
      %v723 = vpop.f32.mrf.mxu0
      %v724 = vadd.f32 0.0, %v723
      %v725 = vpop.f32.mrf.mxu0
      %v726 = vadd.f32 0.0, %v725
      %727 = vdwg.mxu0
      %v728 = vadd.f32 %v627, %v709
      %v729 = vadd.f32 %v629, %v711
      %v730 = vadd.f32 %v632, %v714
      %v731 = vadd.f32 %v634, %v716
      %v732 = vadd.f32 %v637, %v719
      %v733 = vadd.f32 %v639, %v721
      %v734 = vadd.f32 %v642, %v724
      %v735 = vadd.f32 %v644, %v726
      %v736 = vld [vmem:[%s213] sm:$0x1]
      %v738 = vperm.slane %v736, 0
      %v740 = vadd.f32 %v728, %v738
      %v741 = vadd.f32 %v729, %v738
      %v742 = vadd.f32 %v730, %v738
      %v743 = vadd.f32 %v731, %v738
      %v744 = vadd.f32 %v732, %v738
      %v745 = vadd.f32 %v733, %v738
      %v746 = vadd.f32 %v734, %v738
      %v747 = vadd.f32 %v735, %v738
      %v748 = vpack.c.bf16 %v740, %v740
      %v749 = vpack.c.bf16 %v741, %v741
      %v750 = vpack.c.bf16 %v742, %v742
      %v751 = vpack.c.bf16 %v743, %v743
      %v752 = vpack.c.bf16 %v744, %v744
      %v753 = vpack.c.bf16 %v745, %v745
      %v754 = vpack.c.bf16 %v746, %v746
      %v755 = vpack.c.bf16 %v747, %v747
      %756 = vst [vmem:[%s221] sm:$0xf] %v748
      %757 = vst [vmem:[%s221 + $0x4] sm:$0xf] %v749
      %758 = vst [vmem:[%s221 + $0x8] sm:$0xf] %v750
      %759 = vst [vmem:[%s221 + $0xc] sm:$0xf] %v751
      %760 = vst [vmem:[%s221 + $0x10] sm:$0xf] %v752
      %761 = vst [vmem:[%s221 + $0x14] sm:$0xf] %v753
      %762 = vst [vmem:[%s221 + $0x18] sm:$0xf] %v754
      %763 = vst [vmem:[%s221 + $0x1c] sm:$0xf] %v755
      %p764 = scmp.lt.s32.totalorder %s18, 1
      %s765 = scalar_select %p764, %s18, 1
      %p766 = scmp.lt.s32.totalorder %s19, 0
      %s767 = scalar_select %p766, %s19, 0
      %s768 = smul.addr %s765, 8
      %s769 = sadd.s32 %s767, %s768
      %s770 = smul.addr %s769, 4
      %s771 = scalar_lea.vmem %s3, %s770
      // Predicated region
      $region37: #{convblock_down.4} parent=31 // pred_check
        %p772 = pneg %p124
      $region38: #{convblock_down.4} parent=31 // pred_check_branch
        %774 = sbr.rel (%p772) target = $region40
      $region39: #{convblock_down.4} parent=31 // pred_region
        _
      $region40: #{convblock_down.4} parent=31 // pred_fallthru
        _
    $region32: #{convblock_down.4} parent=5 // pred_fallthru
      _
    %p775 = scmp.le.s32.totalorder 2, %s9
    // Predicated region
    $region41: #{convblock_down.4} parent=5 // pred_check
      %p776 = pneg %p775
    $region42: #{convblock_down.4} parent=5 // pred_check_branch
      %778 = sbr.rel (%p776) target = $region44
    $region43: #{convblock_down.4} parent=5 // pred_region
      %s779 = ssub.s32 %s9, 2
      // Predicated region
      $region45: #{convblock_down.4} parent=43 // pred_check
        %p780 = pneg %p130
      $region46: #{convblock_down.4} parent=43 // pred_check_branch
        %782 = sbr.rel (%p780) target = $region48
      $region47: #{convblock_down.4} parent=43 // pred_region
        %p783 = scmp.lt.s32.totalorder %s20, 1
        %s784 = scalar_select %p783, %s20, 1
        %p785 = scmp.lt.s32.totalorder %s21, 0
        %s786 = scalar_select %p785, %s21, 0
        %s787 = smul.addr %s784, 8
        %s788 = sadd.s32 %s786, %s787
        %s789 = smul.addr %s788, 4
        %s790 = scalar_lea.vmem %s3, %s789
      $region48: #{convblock_down.4} parent=43 // pred_fallthru
        _
    $region44: #{convblock_down.4} parent=5 // pred_fallthru
      _
  $region6: #{convblock_down.4} parent=0 // loop_footer
    %s13 = sadd.s32 1, %s9
  $region7: #{convblock_down.4} parent=0 // loop_footer_branch
    %8 = sbr.rel target = $region3
  $region8: #{convblock_down.4} parent=0 // loop_exit
    _

// kernel: convblock_down.3
$region0: #{convblock_down.3}
  #allocation0 [shape = 'u32[]', space=smem, size = 0x4, offset = 0x4, fixed_abs, tag = 'smem constant byte address 0x4 - core index']
  #allocation1 [shape = 'u32[72,128]{1,0:T(1,128)}', space=vmem, size = 0x9000, scoped, tag = 'internal scratch']
  #allocation2 [shape = 'f32[18,18,8]{2,1,0:T(8,128)}', space=vmem, size = 0x36000, scoped, tag = 'scratch operand']
  %s0 = inlined_call_operand.vmem [shape: f32[2,16,16,8], index: 0, kind: input, shape index: {}]
  %s1 = inlined_call_operand.vmem [shape: bf16[2,8,8,8], index: 1, kind: output, shape index: {}]
  %s2 = sld [smem:[#allocation0]]
  $region37: #{convblock_down.3} parent=0
    _
  %s4 = ssub.s32 1, %s2
  %s5 = scalar_select 0, %s4, %s2
  loop: start=0, step=1, limit=4
  $region2: #{convblock_down.3} parent=0 // loop_pre_header
    _
  $region3: #{convblock_down.3} parent=0 // loop_header
    %s7 = sphi 0, %s11
    %p8 = scmp.ge.s32.totalorder %s7, 4
    %s17 = sphi 0, %s19
    %s20 = sphi 0, %s17
    %s21 = sphi 0, %s20
    %s37 = sphi 0, %s21
    %s43 = sphi 0, %s45
    %s46 = sphi 0, %s43
    %s47 = sphi 0, %s46
    %s63 = sphi 0, %s47
  $region4: #{convblock_down.3} parent=0 // loop_header_branch
    %10 = sbr.rel (%p8) target = $region8
  $region5: #{convblock_down.3} parent=0 // loop_body
    %s12 = ssub.s32 %s7, 1
    %s13 = ssub.s32 %s7, 2
    %s14 = sadd.s32 %s7, 1
    %s15 = ssub.s32 %s7, %s14
    %p16 = scmp.eq.s32.totalorder %s15, 0
    %s18 = sadd.s32 %s17, 1
    %s19 = scalar_select %p16, %s17, %s18
    %p22 = pneg %p16
    %p23 = scmp.eq.s32.totalorder %s7, 1
    %p24 = por %p22, %p23
    %p25 = scmp.ne.s32.totalorder %s17, %s20
    %p26 = scmp.eq.s32.totalorder %s7, 0
    %p27 = por %p25, %p26
    %p28 = scmp.ne.s32.totalorder %s17, %s20
    %p29 = scmp.eq.s32.totalorder %s12, 1
    %p30 = por %p28, %p29
    %p31 = scmp.ne.s32.totalorder %s20, %s21
    %p32 = scmp.eq.s32.totalorder %s12, 0
    %p33 = por %p31, %p32
    %p34 = scmp.ne.s32.totalorder %s20, %s21
    %p35 = scmp.eq.s32.totalorder %s13, 1
    %p36 = por %p34, %p35
    %p38 = scmp.ne.s32.totalorder %s21, %s37
    %p39 = scmp.eq.s32.totalorder %s13, 0
    %p40 = por %p38, %p39
    %s41 = ssub.s32 %s7, %s14
    %p42 = scmp.eq.s32.totalorder %s41, 0
    %s44 = sadd.s32 %s43, 1
    %s45 = scalar_select %p42, %s43, %s44
    %p48 = pneg %p42
    %p49 = scmp.eq.s32.totalorder %s7, 1
    %p50 = por %p48, %p49
    %p51 = scmp.ne.s32.totalorder %s43, %s46
    %p52 = scmp.eq.s32.totalorder %s7, 0
    %p53 = por %p51, %p52
    %p54 = scmp.ne.s32.totalorder %s43, %s46
    %p55 = scmp.eq.s32.totalorder %s12, 1
    %p56 = por %p54, %p55
    %p57 = scmp.ne.s32.totalorder %s46, %s47
    %p58 = scmp.eq.s32.totalorder %s12, 0
    %p59 = por %p57, %p58
    %p60 = scmp.ne.s32.totalorder %s46, %s47
    %p61 = scmp.eq.s32.totalorder %s13, 1
    %p62 = por %p60, %p61
    %p64 = scmp.ne.s32.totalorder %s47, %s63
    %p65 = scmp.eq.s32.totalorder %s13, 0
    %p66 = por %p64, %p65
    %p67 = scmp.le.s32.totalorder 1, %s7
    %p68 = scmp.lt.s32.totalorder %s7, 3
    %p69 = pnand %p67, %p68
    %p70 = pneg %p69
    // Predicated region
    $region9: #{convblock_down.3} parent=5 // pred_check
      _
    $region10: #{convblock_down.3} parent=5 // pred_check_branch
      %72 = sbr.rel (%p69) target = $region12
    $region11: #{convblock_down.3} parent=5 // pred_region
      %s73 = ssub.s32 %s7, 1
    $region12: #{convblock_down.3} parent=5 // pred_fallthru
      _
    %p74 = scmp.lt.s32.totalorder %s7, 2
    // Predicated region
    $region13: #{convblock_down.3} parent=5 // pred_check
      %p75 = pneg %p74
    $region14: #{convblock_down.3} parent=5 // pred_check_branch
      %77 = sbr.rel (%p75) target = $region16
    $region15: #{convblock_down.3} parent=5 // pred_region
      // Predicated region
      $region17: #{convblock_down.3} parent=15 // pred_check
        %p78 = pneg %p27
      $region18: #{convblock_down.3} parent=15 // pred_check_branch
        %80 = sbr.rel (%p78) target = $region20
      $region19: #{convblock_down.3} parent=15 // pred_region
        %p81 = scmp.lt.s32.totalorder %s7, 1
        %s82 = scalar_select %p81, %s7, 1
        %s83 = smul.addr %s82, 32
        %s84 = smul.addr %s83, 8
        %s85 = scalar_lea.vmem %s0, %s84
      $region20: #{convblock_down.3} parent=15 // pred_fallthru
        _
    $region16: #{convblock_down.3} parent=5 // pred_fallthru
      _
    %p86 = scmp.le.s32.totalorder 1, %s7
    %p87 = scmp.lt.s32.totalorder %s7, 3
    %p88 = pnand %p86, %p87
    %p89 = pneg %p88
    // Predicated region
    $region21: #{convblock_down.3} parent=5 // pred_check
      _
    $region22: #{convblock_down.3} parent=5 // pred_check_branch
      %91 = sbr.rel (%p88) target = $region24
    $region23: #{convblock_down.3} parent=5 // pred_region
      %s92 = ssub.s32 %s7, 1
      %p93 = scmp.lt.s32.totalorder %s12, 1
      %s94 = scalar_select %p93, %s12, 1
      %s95 = smul.addr %s94, 32
      %s96 = smul.addr %s95, 8
      %s97 = scalar_lea.vmem %s0, %s96
      %p98 = pneg %p33
      %p99 = pneg %p30
      %p100 = pneg %p59
      %p101 = pneg %p56
      %p102 = scmp.lt.s32.totalorder %s12, 1
      %s103 = scalar_select %p102, %s12, 1
      %s104 = smul.addr %s103, 8
      %s105 = smul.addr %s104, 4
      %s106 = scalar_lea.vmem %s1, %s105
      %p107 = scmp.lt.s32.totalorder %s12, 1
      %s108 = scalar_select %p107, %s12, 1
      %s109 = smul.addr %s108, 32
      %s110 = smul.addr %s109, 8
      %s111 = scalar_lea.vmem %s0, %s110
      %p112 = scmp.lt.s32.totalorder %s12, 1
      %s113 = scalar_select %p112, %s12, 1
      %s114 = smul.addr %s113, 8
      %s115 = smul.addr %s114, 4
      %s116 = scalar_lea.vmem %s1, %s115
      %v117 = vld [vmem:[%s111] sm:$0xff]
      %v118 = vld [vmem:[%s111 + $0x8] sm:$0xff]
      %v119 = vld [vmem:[%s111 + $0x10] sm:$0xff]
      %v120 = vld [vmem:[%s111 + $0x18] sm:$0xff]
      %v121 = vld [vmem:[%s111 + $0x20] sm:$0xff]
      %v122 = vld [vmem:[%s111 + $0x28] sm:$0xff]
      %v123 = vld [vmem:[%s111 + $0x30] sm:$0xff]
      %v124 = vld [vmem:[%s111 + $0x38] sm:$0xff]
      %v125 = vld [vmem:[%s111 + $0x40] sm:$0xff]
      %v126 = vld [vmem:[%s111 + $0x48] sm:$0xff]
      %v127 = vld [vmem:[%s111 + $0x50] sm:$0xff]
      %v128 = vld [vmem:[%s111 + $0x58] sm:$0xff]
      %v129 = vld [vmem:[%s111 + $0x60] sm:$0xff]
      %v130 = vld [vmem:[%s111 + $0x68] sm:$0xff]
      %v131 = vld [vmem:[%s111 + $0x70] sm:$0xff]
      %v132 = vld [vmem:[%s111 + $0x78] sm:$0xff]
      %v133 = vld [vmem:[%s111 + $0x80] sm:$0xff]
      %v134 = vld [vmem:[%s111 + $0x88] sm:$0xff]
      %v135 = vld [vmem:[%s111 + $0x90] sm:$0xff]
      %v136 = vld [vmem:[%s111 + $0x98] sm:$0xff]
      %v137 = vld [vmem:[%s111 + $0xa0] sm:$0xff]
      %v138 = vld [vmem:[%s111 + $0xa8] sm:$0xff]
      %v139 = vld [vmem:[%s111 + $0xb0] sm:$0xff]
      %v140 = vld [vmem:[%s111 + $0xb8] sm:$0xff]
      %v141 = vld [vmem:[%s111 + $0xc0] sm:$0xff]
      %v142 = vld [vmem:[%s111 + $0xc8] sm:$0xff]
      %v143 = vld [vmem:[%s111 + $0xd0] sm:$0xff]
      %v144 = vld [vmem:[%s111 + $0xd8] sm:$0xff]
      %v145 = vld [vmem:[%s111 + $0xe0] sm:$0xff]
      %v146 = vld [vmem:[%s111 + $0xe8] sm:$0xff]
      %v147 = vld [vmem:[%s111 + $0xf0] sm:$0xff]
      %v148 = vld [vmem:[%s111 + $0xf8] sm:$0xff]
      %vm181 = vcmask 1046528
      %v182 = vrot.slane %v117, 1
      %v183 = vrot.slane %v118, 1
      %v184 = vsel %vm181, %v182, %v183
      %v185 = vrot.slane %v119, 1
      %v186 = vrot.slane %v120, 1
      %v187 = vsel %vm181, %v185, %v186
      %v188 = vrot.slane %v121, 1
      %v189 = vrot.slane %v122, 1
      %v190 = vsel %vm181, %v188, %v189
      %v191 = vrot.slane %v123, 1
      %v192 = vrot.slane %v124, 1
      %v193 = vsel %vm181, %v191, %v192
      %v194 = vrot.slane %v125, 1
      %v195 = vrot.slane %v126, 1
      %v196 = vsel %vm181, %v194, %v195
      %v197 = vrot.slane %v127, 1
      %v198 = vrot.slane %v128, 1
      %v199 = vsel %vm181, %v197, %v198
      %v200 = vrot.slane %v129, 1
      %v201 = vrot.slane %v130, 1
      %v202 = vsel %vm181, %v200, %v201
      %v203 = vrot.slane %v131, 1
      %v204 = vrot.slane %v132, 1
      %v205 = vsel %vm181, %v203, %v204
      %v206 = vrot.slane %v133, 1
      %v207 = vrot.slane %v134, 1
      %v208 = vsel %vm181, %v206, %v207
      %v209 = vrot.slane %v135, 1
      %v210 = vrot.slane %v136, 1
      %v211 = vsel %vm181, %v209, %v210
      %v212 = vrot.slane %v137, 1
      %v213 = vrot.slane %v138, 1
      %v214 = vsel %vm181, %v212, %v213
      %v215 = vrot.slane %v139, 1
      %v216 = vrot.slane %v140, 1
      %v217 = vsel %vm181, %v215, %v216
      %v218 = vrot.slane %v141, 1
      %v219 = vrot.slane %v142, 1
      %v220 = vsel %vm181, %v218, %v219
      %v221 = vrot.slane %v143, 1
      %v222 = vrot.slane %v144, 1
      %v223 = vsel %vm181, %v221, %v222
      %v224 = vrot.slane %v145, 1
      %v225 = vrot.slane %v146, 1
      %v226 = vsel %vm181, %v224, %v225
      %v227 = vrot.slane %v147, 1
      %v228 = vrot.slane %v148, 1
      %v229 = vsel %vm181, %v227, %v228
      %v262 = vmax.f32 %v117, %v184
      %v263 = vmax.f32 %v118, %v183
      %v264 = vmax.f32 %v119, %v187
      %v265 = vmax.f32 %v120, %v186
      %v266 = vmax.f32 %v121, %v190
      %v267 = vmax.f32 %v122, %v189
      %v268 = vmax.f32 %v123, %v193
      %v269 = vmax.f32 %v124, %v192
      %v270 = vmax.f32 %v125, %v196
      %v271 = vmax.f32 %v126, %v195
      %v272 = vmax.f32 %v127, %v199
      %v273 = vmax.f32 %v128, %v198
      %v274 = vmax.f32 %v129, %v202
      %v275 = vmax.f32 %v130, %v201
      %v276 = vmax.f32 %v131, %v205
      %v277 = vmax.f32 %v132, %v204
      %v278 = vmax.f32 %v133, %v208
      %v279 = vmax.f32 %v134, %v207
      %v280 = vmax.f32 %v135, %v211
      %v281 = vmax.f32 %v136, %v210
      %v282 = vmax.f32 %v137, %v214
      %v283 = vmax.f32 %v138, %v213
      %v284 = vmax.f32 %v139, %v217
      %v285 = vmax.f32 %v140, %v216
      %v286 = vmax.f32 %v141, %v220
      %v287 = vmax.f32 %v142, %v219
      %v288 = vmax.f32 %v143, %v223
      %v289 = vmax.f32 %v144, %v222
      %v290 = vmax.f32 %v145, %v226
      %v291 = vmax.f32 %v146, %v225
      %v292 = vmax.f32 %v147, %v229
      %v293 = vmax.f32 %v148, %v228
      %v294 = vmax.f32 %v262, %v264
      %v295 = vmax.f32 %v263, %v265
      %v296 = vmax.f32 %v264, %v266
      %v297 = vmax.f32 %v265, %v267
      %v298 = vmax.f32 %v266, %v268
      %v299 = vmax.f32 %v267, %v269
      %v300 = vmax.f32 %v268, %v270
      %v301 = vmax.f32 %v269, %v271
      %v302 = vmax.f32 %v270, %v272
      %v303 = vmax.f32 %v271, %v273
      %v304 = vmax.f32 %v272, %v274
      %v305 = vmax.f32 %v273, %v275
      %v306 = vmax.f32 %v274, %v276
      %v307 = vmax.f32 %v275, %v277
      %v308 = vmax.f32 %v276, %v278
      %v309 = vmax.f32 %v277, %v279
      %v310 = vmax.f32 %v278, %v280
      %v311 = vmax.f32 %v279, %v281
      %v312 = vmax.f32 %v280, %v282
      %v313 = vmax.f32 %v281, %v283
      %v314 = vmax.f32 %v282, %v284
      %v315 = vmax.f32 %v283, %v285
      %v316 = vmax.f32 %v284, %v286
      %v317 = vmax.f32 %v285, %v287
      %v318 = vmax.f32 %v286, %v288
      %v319 = vmax.f32 %v287, %v289
      %v320 = vmax.f32 %v288, %v290
      %v321 = vmax.f32 %v289, %v291
      %v322 = vmax.f32 %v290, %v292
      %v323 = vmax.f32 %v291, %v293
      %s324 = scalar_lea.vmem [#allocation2], 24
      %vm325 = vcmask 64512
      %326 = vst.msk [vmem:[%s324 + $0x1] sm:$0xff] %vm325, %v294
      %vm327 = vcmask 63488
      %328 = vst.msk [vmem:[%s324 + $0x9] sm:$0x7f] %vm327, %v295
      %329 = vst.msk [vmem:[%s324 + $0x19] sm:$0xff] %vm325, %v296
      %330 = vst.msk [vmem:[%s324 + $0x21] sm:$0x7f] %vm327, %v297
      %331 = vst.msk [vmem:[%s324 + $0x31] sm:$0xff] %vm325, %v298
      %332 = vst.msk [vmem:[%s324 + $0x39] sm:$0x7f] %vm327, %v299
      %333 = vst.msk [vmem:[%s324 + $0x49] sm:$0xff] %vm325, %v300
      %334 = vst.msk [vmem:[%s324 + $0x51] sm:$0x7f] %vm327, %v301
      %335 = vst.msk [vmem:[%s324 + $0x61] sm:$0xff] %vm325, %v302
      %336 = vst.msk [vmem:[%s324 + $0x69] sm:$0x7f] %vm327, %v303
      %337 = vst.msk [vmem:[%s324 + $0x79] sm:$0xff] %vm325, %v304
      %338 = vst.msk [vmem:[%s324 + $0x81] sm:$0x7f] %vm327, %v305
      %339 = vst.msk [vmem:[%s324 + $0x91] sm:$0xff] %vm325, %v306
      %340 = vst.msk [vmem:[%s324 + $0x99] sm:$0x7f] %vm327, %v307
      %341 = vst.msk [vmem:[%s324 + $0xa9] sm:$0xff] %vm325, %v308
      %342 = vst.msk [vmem:[%s324 + $0xb1] sm:$0x7f] %vm327, %v309
      %343 = vst.msk [vmem:[%s324 + $0xc1] sm:$0xff] %vm325, %v310
      %344 = vst.msk [vmem:[%s324 + $0xc9] sm:$0x7f] %vm327, %v311
      %345 = vst.msk [vmem:[%s324 + $0xd9] sm:$0xff] %vm325, %v312
      %346 = vst.msk [vmem:[%s324 + $0xe1] sm:$0x7f] %vm327, %v313
      %347 = vst.msk [vmem:[%s324 + $0xf1] sm:$0xff] %vm325, %v314
      %348 = vst.msk [vmem:[%s324 + $0xf9] sm:$0x7f] %vm327, %v315
      %349 = vst.msk [vmem:[%s324 + $0x109] sm:$0xff] %vm325, %v316
      %350 = vst.msk [vmem:[%s324 + $0x111] sm:$0x7f] %vm327, %v317
      %351 = vst.msk [vmem:[%s324 + $0x121] sm:$0xff] %vm325, %v318
      %352 = vst.msk [vmem:[%s324 + $0x129] sm:$0x7f] %vm327, %v319
      %353 = vst.msk [vmem:[%s324 + $0x139] sm:$0xff] %vm325, %v320
      %354 = vst.msk [vmem:[%s324 + $0x141] sm:$0x7f] %vm327, %v321
      %355 = vst.msk [vmem:[%s324 + $0x151] sm:$0xff] %vm325, %v322
      %356 = vst.msk [vmem:[%s324 + $0x159] sm:$0x7f] %vm327, %v323
      %357 = vst.msk [vmem:[#allocation2 + $0x1] sm:$0xff] %vm325, %v296
      %358 = vst.msk [vmem:[#allocation2 + $0x9] sm:$0x7f] %vm327, %v297
      %s359 = scalar_lea.vmem [#allocation2], 384
      %360 = vst.msk [vmem:[%s359 + $0x1] sm:$0xff] %vm325, %v320
      %361 = vst.msk [vmem:[%s359 + $0x9] sm:$0x7f] %vm327, %v321
      %s362 = scalar_lea.vmem [#allocation2], 408
      %363 = vst.msk [vmem:[%s362 + $0x1] sm:$0xff] %vm325, %v318
      %364 = vst.msk [vmem:[%s362 + $0x9] sm:$0x7f] %vm327, %v319
      %v365 = vld [vmem:[#allocation2 + $0x2] sm:$0x1]
      %v366 = vld [vmem:[#allocation2 + $0x1a] sm:$0x1]
      %v367 = vld [vmem:[#allocation2 + $0x32] sm:$0x1]
      %v368 = vld [vmem:[#allocation2 + $0x4a] sm:$0x1]
      %v369 = vld [vmem:[#allocation2 + $0x62] sm:$0x1]
      %v370 = vld [vmem:[#allocation2 + $0x7a] sm:$0x1]
      %v371 = vld [vmem:[#allocation2 + $0x92] sm:$0x1]
      %v372 = vld [vmem:[#allocation2 + $0xaa] sm:$0x1]
      %v373 = vld [vmem:[#allocation2 + $0xc2] sm:$0x1]
      %v374 = vld [vmem:[#allocation2 + $0xda] sm:$0x1]
      %v375 = vld [vmem:[#allocation2 + $0xf2] sm:$0x1]
      %v376 = vld [vmem:[#allocation2 + $0x10a] sm:$0x1]
      %v377 = vld [vmem:[#allocation2 + $0x122] sm:$0x1]
      %v378 = vld [vmem:[#allocation2 + $0x13a] sm:$0x1]
      %v379 = vld [vmem:[#allocation2 + $0x152] sm:$0x1]
      %v380 = vld [vmem:[#allocation2 + $0x16a] sm:$0x1]
      %v381 = vld [vmem:[#allocation2 + $0x182] sm:$0x1]
      %v382 = vld [vmem:[#allocation2 + $0x19a] sm:$0x1]
      %vm383 = vcmask 57344
      %384 = vst.msk [vmem:[#allocation2] sm:$0x1] %vm383, %v365
      %385 = vst.msk [vmem:[#allocation2 + $0x18] sm:$0x1] %vm383, %v366
      %386 = vst.msk [vmem:[#allocation2 + $0x30] sm:$0x1] %vm383, %v367
      %387 = vst.msk [vmem:[#allocation2 + $0x48] sm:$0x1] %vm383, %v368
      %388 = vst.msk [vmem:[#allocation2 + $0x60] sm:$0x1] %vm383, %v369
      %389 = vst.msk [vmem:[#allocation2 + $0x78] sm:$0x1] %vm383, %v370
      %390 = vst.msk [vmem:[#allocation2 + $0x90] sm:$0x1] %vm383, %v371
      %391 = vst.msk [vmem:[#allocation2 + $0xa8] sm:$0x1] %vm383, %v372
      %392 = vst.msk [vmem:[#allocation2 + $0xc0] sm:$0x1] %vm383, %v373
      %393 = vst.msk [vmem:[#allocation2 + $0xd8] sm:$0x1] %vm383, %v374
      %394 = vst.msk [vmem:[#allocation2 + $0xf0] sm:$0x1] %vm383, %v375
      %395 = vst.msk [vmem:[#allocation2 + $0x108] sm:$0x1] %vm383, %v376
      %396 = vst.msk [vmem:[#allocation2 + $0x120] sm:$0x1] %vm383, %v377
      %397 = vst.msk [vmem:[#allocation2 + $0x138] sm:$0x1] %vm383, %v378
      %398 = vst.msk [vmem:[#allocation2 + $0x150] sm:$0x1] %vm383, %v379
      %399 = vst.msk [vmem:[#allocation2 + $0x168] sm:$0x1] %vm383, %v380
      %400 = vst.msk [vmem:[#allocation2 + $0x180] sm:$0x1] %vm383, %v381
      %401 = vst.msk [vmem:[#allocation2 + $0x198] sm:$0x1] %vm383, %v382
      %v402 = vld [vmem:[#allocation2 + $0xe] sm:$0x1]
      %v403 = vld [vmem:[#allocation2 + $0x26] sm:$0x1]
      %v404 = vld [vmem:[#allocation2 + $0x3e] sm:$0x1]
      %v405 = vld [vmem:[#allocation2 + $0x56] sm:$0x1]
      %v406 = vld [vmem:[#allocation2 + $0x6e] sm:$0x1]
      %v407 = vld [vmem:[#allocation2 + $0x86] sm:$0x1]
      %v408 = vld [vmem:[#allocation2 + $0x9e] sm:$0x1]
      %v409 = vld [vmem:[#allocation2 + $0xb6] sm:$0x1]
      %v410 = vld [vmem:[#allocation2 + $0xce] sm:$0x1]
      %v411 = vld [vmem:[#allocation2 + $0xe6] sm:$0x1]
      %v412 = vld [vmem:[#allocation2 + $0xfe] sm:$0x1]
      %v413 = vld [vmem:[#allocation2 + $0x116] sm:$0x1]
      %v414 = vld [vmem:[#allocation2 + $0x12e] sm:$0x1]
      %v415 = vld [vmem:[#allocation2 + $0x146] sm:$0x1]
      %v416 = vld [vmem:[#allocation2 + $0x15e] sm:$0x1]
      %v417 = vld [vmem:[#allocation2 + $0x176] sm:$0x1]
      %v418 = vld [vmem:[#allocation2 + $0x18e] sm:$0x1]
      %v419 = vld [vmem:[#allocation2 + $0x1a6] sm:$0x1]
      %420 = vst.msk [vmem:[#allocation2 + $0x10] sm:$0x1] %vm383, %v402
      %421 = vst.msk [vmem:[#allocation2 + $0x28] sm:$0x1] %vm383, %v403
      %422 = vst.msk [vmem:[#allocation2 + $0x40] sm:$0x1] %vm383, %v404
      %423 = vst.msk [vmem:[#allocation2 + $0x58] sm:$0x1] %vm383, %v405
      %424 = vst.msk [vmem:[#allocation2 + $0x70] sm:$0x1] %vm383, %v406
      %425 = vst.msk [vmem:[#allocation2 + $0x88] sm:$0x1] %vm383, %v407
      %426 = vst.msk [vmem:[#allocation2 + $0xa0] sm:$0x1] %vm383, %v408
      %427 = vst.msk [vmem:[#allocation2 + $0xb8] sm:$0x1] %vm383, %v409
      %428 = vst.msk [vmem:[#allocation2 + $0xd0] sm:$0x1] %vm383, %v410
      %429 = vst.msk [vmem:[#allocation2 + $0xe8] sm:$0x1] %vm383, %v411
      %430 = vst.msk [vmem:[#allocation2 + $0x100] sm:$0x1] %vm383, %v412
      %431 = vst.msk [vmem:[#allocation2 + $0x118] sm:$0x1] %vm383, %v413
      %432 = vst.msk [vmem:[#allocation2 + $0x130] sm:$0x1] %vm383, %v414
      %433 = vst.msk [vmem:[#allocation2 + $0x148] sm:$0x1] %vm383, %v415
      %434 = vst.msk [vmem:[#allocation2 + $0x160] sm:$0x1] %vm383, %v416
      %435 = vst.msk [vmem:[#allocation2 + $0x178] sm:$0x1] %vm383, %v417
      %436 = vst.msk [vmem:[#allocation2 + $0x190] sm:$0x1] %vm383, %v418
      %437 = vst.msk [vmem:[#allocation2 + $0x1a8] sm:$0x1] %vm383, %v419
      %v438 = vld [vmem:[#allocation2 + $0xd] sm:$0x1]
      %v439 = vld [vmem:[#allocation2 + $0x25] sm:$0x1]
      %v440 = vld [vmem:[#allocation2 + $0x3d] sm:$0x1]
      %v441 = vld [vmem:[#allocation2 + $0x55] sm:$0x1]
      %v442 = vld [vmem:[#allocation2 + $0x6d] sm:$0x1]
      %v443 = vld [vmem:[#allocation2 + $0x85] sm:$0x1]
      %v444 = vld [vmem:[#allocation2 + $0x9d] sm:$0x1]
      %v445 = vld [vmem:[#allocation2 + $0xb5] sm:$0x1]
      %v446 = vld [vmem:[#allocation2 + $0xcd] sm:$0x1]
      %v447 = vld [vmem:[#allocation2 + $0xe5] sm:$0x1]
      %v448 = vld [vmem:[#allocation2 + $0xfd] sm:$0x1]
      %v449 = vld [vmem:[#allocation2 + $0x115] sm:$0x1]
      %v450 = vld [vmem:[#allocation2 + $0x12d] sm:$0x1]
      %v451 = vld [vmem:[#allocation2 + $0x145] sm:$0x1]
      %v452 = vld [vmem:[#allocation2 + $0x15d] sm:$0x1]
      %v453 = vld [vmem:[#allocation2 + $0x175] sm:$0x1]
      %v454 = vld [vmem:[#allocation2 + $0x18d] sm:$0x1]
      %v455 = vld [vmem:[#allocation2 + $0x1a5] sm:$0x1]
      %456 = vst.msk [vmem:[#allocation2 + $0x11] sm:$0x1] %vm383, %v438
      %457 = vst.msk [vmem:[#allocation2 + $0x29] sm:$0x1] %vm383, %v439
      %458 = vst.msk [vmem:[#allocation2 + $0x41] sm:$0x1] %vm383, %v440
      %459 = vst.msk [vmem:[#allocation2 + $0x59] sm:$0x1] %vm383, %v441
      %460 = vst.msk [vmem:[#allocation2 + $0x71] sm:$0x1] %vm383, %v442
      %461 = vst.msk [vmem:[#allocation2 + $0x89] sm:$0x1] %vm383, %v443
      %462 = vst.msk [vmem:[#allocation2 + $0xa1] sm:$0x1] %vm383, %v444
      %463 = vst.msk [vmem:[#allocation2 + $0xb9] sm:$0x1] %vm383, %v445
      %464 = vst.msk [vmem:[#allocation2 + $0xd1] sm:$0x1] %vm383, %v446
      %465 = vst.msk [vmem:[#allocation2 + $0xe9] sm:$0x1] %vm383, %v447
      %466 = vst.msk [vmem:[#allocation2 + $0x101] sm:$0x1] %vm383, %v448
      %467 = vst.msk [vmem:[#allocation2 + $0x119] sm:$0x1] %vm383, %v449
      %468 = vst.msk [vmem:[#allocation2 + $0x131] sm:$0x1] %vm383, %v450
      %469 = vst.msk [vmem:[#allocation2 + $0x149] sm:$0x1] %vm383, %v451
      %470 = vst.msk [vmem:[#allocation2 + $0x161] sm:$0x1] %vm383, %v452
      %471 = vst.msk [vmem:[#allocation2 + $0x179] sm:$0x1] %vm383, %v453
      %472 = vst.msk [vmem:[#allocation2 + $0x191] sm:$0x1] %vm383, %v454
      %473 = vst.msk [vmem:[#allocation2 + $0x1a9] sm:$0x1] %vm383, %v455
      %v474 = vld [vmem:[#allocation2] ss:$2 sm:$0xff]
      %s475 = scalar_lea.vmem [#allocation2], 24
      %v476 = vld [vmem:[%s475] ss:$2 sm:$0xff]
      %s477 = scalar_lea.vmem [#allocation2], 48
      %v478 = vld [vmem:[%s477] ss:$2 sm:$0xff]
      %s479 = scalar_lea.vmem [#allocation2], 72
      %v480 = vld [vmem:[%s479] ss:$2 sm:$0xff]
      %s481 = scalar_lea.vmem [#allocation2], 96
      %v482 = vld [vmem:[%s481] ss:$2 sm:$0xff]
      %s483 = scalar_lea.vmem [#allocation2], 120
      %v484 = vld [vmem:[%s483] ss:$2 sm:$0xff]
      %s485 = scalar_lea.vmem [#allocation2], 144
      %v486 = vld [vmem:[%s485] ss:$2 sm:$0xff]
      %s487 = scalar_lea.vmem [#allocation2], 168
      %v488 = vld [vmem:[%s487] ss:$2 sm:$0xff]
      %s489 = scalar_lea.vmem [#allocation2], 192
      %v490 = vld [vmem:[%s489] ss:$2 sm:$0xff]
      %s491 = scalar_lea.vmem [#allocation2], 216
      %v492 = vld [vmem:[%s491] ss:$2 sm:$0xff]
      %s493 = scalar_lea.vmem [#allocation2], 240
      %v494 = vld [vmem:[%s493] ss:$2 sm:$0xff]
      %s495 = scalar_lea.vmem [#allocation2], 264
      %v496 = vld [vmem:[%s495] ss:$2 sm:$0xff]
      %s497 = scalar_lea.vmem [#allocation2], 288
      %v498 = vld [vmem:[%s497] ss:$2 sm:$0xff]
      %s499 = scalar_lea.vmem [#allocation2], 312
      %v500 = vld [vmem:[%s499] ss:$2 sm:$0xff]
      %s501 = scalar_lea.vmem [#allocation2], 336
      %v502 = vld [vmem:[%s501] ss:$2 sm:$0xff]
      %s503 = scalar_lea.vmem [#allocation2], 360
      %v504 = vld [vmem:[%s503] ss:$2 sm:$0xff]
      %s505 = scalar_lea.vmem [#allocation2], 384
      %v506 = vld [vmem:[%s505] ss:$2 sm:$0xff]
      %s507 = scalar_lea.vmem [#allocation2], 408
      %v508 = vld [vmem:[%s507] ss:$2 sm:$0xff]
      %v509 = vmul.f32 %v474, 0.125
      %v510 = vmul.f32 %v476, 0.125
      %v511 = vmul.f32 %v478, 0.125
      %v512 = vmul.f32 %v480, 0.125
      %v513 = vmul.f32 %v482, 0.125
      %v514 = vmul.f32 %v484, 0.125
      %v515 = vmul.f32 %v486, 0.125
      %v516 = vmul.f32 %v488, 0.125
      %v517 = vmul.f32 %v490, 0.125
      %v518 = vmul.f32 %v492, 0.125
      %v519 = vmul.f32 %v494, 0.125
      %v520 = vmul.f32 %v496, 0.125
      %v521 = vmul.f32 %v498, 0.125
      %v522 = vmul.f32 %v500, 0.125
      %v523 = vmul.f32 %v502, 0.125
      %v524 = vmul.f32 %v504, 0.125
      %v525 = vmul.f32 %v506, 0.125
      %v526 = vmul.f32 %v508, 0.125
      %s527 = scalar_lea.vmem [#allocation2], 1
      %v528 = vld [vmem:[%s527] ss:$2 sm:$0xff]
      %s529 = scalar_lea.vmem [#allocation2], 25
      %v530 = vld [vmem:[%s529] ss:$2 sm:$0xff]
      %s531 = scalar_lea.vmem [#allocation2], 49
      %v532 = vld [vmem:[%s531] ss:$2 sm:$0xff]
      %s533 = scalar_lea.vmem [#allocation2], 73
      %v534 = vld [vmem:[%s533] ss:$2 sm:$0xff]
      %s535 = scalar_lea.vmem [#allocation2], 97
      %v536 = vld [vmem:[%s535] ss:$2 sm:$0xff]
      %s537 = scalar_lea.vmem [#allocation2], 121
      %v538 = vld [vmem:[%s537] ss:$2 sm:$0xff]
      %s539 = scalar_lea.vmem [#allocation2], 145
      %v540 = vld [vmem:[%s539] ss:$2 sm:$0xff]
      %s541 = scalar_lea.vmem [#allocation2], 169
      %v542 = vld [vmem:[%s541] ss:$2 sm:$0xff]
      %s543 = scalar_lea.vmem [#allocation2], 193
      %v544 = vld [vmem:[%s543] ss:$2 sm:$0xff]
      %s545 = scalar_lea.vmem [#allocation2], 217
      %v546 = vld [vmem:[%s545] ss:$2 sm:$0xff]
      %s547 = scalar_lea.vmem [#allocation2], 241
      %v548 = vld [vmem:[%s547] ss:$2 sm:$0xff]
      %s549 = scalar_lea.vmem [#allocation2], 265
      %v550 = vld [vmem:[%s549] ss:$2 sm:$0xff]
      %s551 = scalar_lea.vmem [#allocation2], 289
      %v552 = vld [vmem:[%s551] ss:$2 sm:$0xff]
      %s553 = scalar_lea.vmem [#allocation2], 313
      %v554 = vld [vmem:[%s553] ss:$2 sm:$0xff]
      %s555 = scalar_lea.vmem [#allocation2], 337
      %v556 = vld [vmem:[%s555] ss:$2 sm:$0xff]
      %s557 = scalar_lea.vmem [#allocation2], 361
      %v558 = vld [vmem:[%s557] ss:$2 sm:$0xff]
      %s559 = scalar_lea.vmem [#allocation2], 385
      %v560 = vld [vmem:[%s559] ss:$2 sm:$0xff]
      %s561 = scalar_lea.vmem [#allocation2], 409
      %v562 = vld [vmem:[%s561] ss:$2 sm:$0xff]
      %v563 = vmul.f32 %v528, 0.375
      %v564 = vmul.f32 %v530, 0.375
      %v565 = vmul.f32 %v532, 0.375
      %v566 = vmul.f32 %v534, 0.375
      %v567 = vmul.f32 %v536, 0.375
      %v568 = vmul.f32 %v538, 0.375
      %v569 = vmul.f32 %v540, 0.375
      %v570 = vmul.f32 %v542, 0.375
      %v571 = vmul.f32 %v544, 0.375
      %v572 = vmul.f32 %v546, 0.375
      %v573 = vmul.f32 %v548, 0.375
      %v574 = vmul.f32 %v550, 0.375
      %v575 = vmul.f32 %v552, 0.375
      %v576 = vmul.f32 %v554, 0.375
      %v577 = vmul.f32 %v556, 0.375
      %v578 = vmul.f32 %v558, 0.375
      %v579 = vmul.f32 %v560, 0.375
      %v580 = vmul.f32 %v562, 0.375
      %v581 = vadd.f32 %v509, %v563
      %v582 = vadd.f32 %v510, %v564
      %v583 = vadd.f32 %v511, %v565
      %v584 = vadd.f32 %v512, %v566
      %v585 = vadd.f32 %v513, %v567
      %v586 = vadd.f32 %v514, %v568
      %v587 = vadd.f32 %v515, %v569
      %v588 = vadd.f32 %v516, %v570
      %v589 = vadd.f32 %v517, %v571
      %v590 = vadd.f32 %v518, %v572
      %v591 = vadd.f32 %v519, %v573
      %v592 = vadd.f32 %v520, %v574
      %v593 = vadd.f32 %v521, %v575
      %v594 = vadd.f32 %v522, %v576
      %v595 = vadd.f32 %v523, %v577
      %v596 = vadd.f32 %v524, %v578
      %v597 = vadd.f32 %v525, %v579
      %v598 = vadd.f32 %v526, %v580
      %s599 = scalar_lea.vmem [#allocation2], 2
      %v600 = vld [vmem:[%s599] ss:$2 sm:$0xff]
      %s601 = scalar_lea.vmem [#allocation2], 26
      %v602 = vld [vmem:[%s601] ss:$2 sm:$0xff]
      %s603 = scalar_lea.vmem [#allocation2], 50
      %v604 = vld [vmem:[%s603] ss:$2 sm:$0xff]
      %s605 = scalar_lea.vmem [#allocation2], 74
      %v606 = vld [vmem:[%s605] ss:$2 sm:$0xff]
      %s607 = scalar_lea.vmem [#allocation2], 98
      %v608 = vld [vmem:[%s607] ss:$2 sm:$0xff]
      %s609 = scalar_lea.vmem [#allocation2], 122
      %v610 = vld [vmem:[%s609] ss:$2 sm:$0xff]
      %s611 = scalar_lea.vmem [#allocation2], 146
      %v612 = vld [vmem:[%s611] ss:$2 sm:$0xff]
      %s613 = scalar_lea.vmem [#allocation2], 170
      %v614 = vld [vmem:[%s613] ss:$2 sm:$0xff]
      %s615 = scalar_lea.vmem [#allocation2], 194
      %v616 = vld [vmem:[%s615] ss:$2 sm:$0xff]
      %s617 = scalar_lea.vmem [#allocation2], 218
      %v618 = vld [vmem:[%s617] ss:$2 sm:$0xff]
      %s619 = scalar_lea.vmem [#allocation2], 242
      %v620 = vld [vmem:[%s619] ss:$2 sm:$0xff]
      %s621 = scalar_lea.vmem [#allocation2], 266
      %v622 = vld [vmem:[%s621] ss:$2 sm:$0xff]
      %s623 = scalar_lea.vmem [#allocation2], 290
      %v624 = vld [vmem:[%s623] ss:$2 sm:$0xff]
      %s625 = scalar_lea.vmem [#allocation2], 314
      %v626 = vld [vmem:[%s625] ss:$2 sm:$0xff]
      %s627 = scalar_lea.vmem [#allocation2], 338
      %v628 = vld [vmem:[%s627] ss:$2 sm:$0xff]
      %s629 = scalar_lea.vmem [#allocation2], 362
      %v630 = vld [vmem:[%s629] ss:$2 sm:$0xff]
      %s631 = scalar_lea.vmem [#allocation2], 386
      %v632 = vld [vmem:[%s631] ss:$2 sm:$0xff]
      %s633 = scalar_lea.vmem [#allocation2], 410
      %v634 = vld [vmem:[%s633] ss:$2 sm:$0xff]
      %v635 = vmul.f32 %v600, 0.375
      %v636 = vmul.f32 %v602, 0.375
      %v637 = vmul.f32 %v604, 0.375
      %v638 = vmul.f32 %v606, 0.375
      %v639 = vmul.f32 %v608, 0.375
      %v640 = vmul.f32 %v610, 0.375
      %v641 = vmul.f32 %v612, 0.375
      %v642 = vmul.f32 %v614, 0.375
      %v643 = vmul.f32 %v616, 0.375
      %v644 = vmul.f32 %v618, 0.375
      %v645 = vmul.f32 %v620, 0.375
      %v646 = vmul.f32 %v622, 0.375
      %v647 = vmul.f32 %v624, 0.375
      %v648 = vmul.f32 %v626, 0.375
      %v649 = vmul.f32 %v628, 0.375
      %v650 = vmul.f32 %v630, 0.375
      %v651 = vmul.f32 %v632, 0.375
      %v652 = vmul.f32 %v634, 0.375
      %v653 = vadd.f32 %v581, %v635
      %v654 = vadd.f32 %v582, %v636
      %v655 = vadd.f32 %v583, %v637
      %v656 = vadd.f32 %v584, %v638
      %v657 = vadd.f32 %v585, %v639
      %v658 = vadd.f32 %v586, %v640
      %v659 = vadd.f32 %v587, %v641
      %v660 = vadd.f32 %v588, %v642
      %v661 = vadd.f32 %v589, %v643
      %v662 = vadd.f32 %v590, %v644
      %v663 = vadd.f32 %v591, %v645
      %v664 = vadd.f32 %v592, %v646
      %v665 = vadd.f32 %v593, %v647
      %v666 = vadd.f32 %v594, %v648
      %v667 = vadd.f32 %v595, %v649
      %v668 = vadd.f32 %v596, %v650
      %v669 = vadd.f32 %v597, %v651
      %v670 = vadd.f32 %v598, %v652
      %s671 = scalar_lea.vmem [#allocation2], 3
      %v672 = vld [vmem:[%s671] ss:$2 sm:$0xff]
      %s673 = scalar_lea.vmem [#allocation2], 27
      %v674 = vld [vmem:[%s673] ss:$2 sm:$0xff]
      %s675 = scalar_lea.vmem [#allocation2], 51
      %v676 = vld [vmem:[%s675] ss:$2 sm:$0xff]
      %s677 = scalar_lea.vmem [#allocation2], 75
      %v678 = vld [vmem:[%s677] ss:$2 sm:$0xff]
      %s679 = scalar_lea.vmem [#allocation2], 99
      %v680 = vld [vmem:[%s679] ss:$2 sm:$0xff]
      %s681 = scalar_lea.vmem [#allocation2], 123
      %v682 = vld [vmem:[%s681] ss:$2 sm:$0xff]
      %s683 = scalar_lea.vmem [#allocation2], 147
      %v684 = vld [vmem:[%s683] ss:$2 sm:$0xff]
      %s685 = scalar_lea.vmem [#allocation2], 171
      %v686 = vld [vmem:[%s685] ss:$2 sm:$0xff]
      %s687 = scalar_lea.vmem [#allocation2], 195
      %v688 = vld [vmem:[%s687] ss:$2 sm:$0xff]
      %s689 = scalar_lea.vmem [#allocation2], 219
      %v690 = vld [vmem:[%s689] ss:$2 sm:$0xff]
      %s691 = scalar_lea.vmem [#allocation2], 243
      %v692 = vld [vmem:[%s691] ss:$2 sm:$0xff]
      %s693 = scalar_lea.vmem [#allocation2], 267
      %v694 = vld [vmem:[%s693] ss:$2 sm:$0xff]
      %s695 = scalar_lea.vmem [#allocation2], 291
      %v696 = vld [vmem:[%s695] ss:$2 sm:$0xff]
      %s697 = scalar_lea.vmem [#allocation2], 315
      %v698 = vld [vmem:[%s697] ss:$2 sm:$0xff]
      %s699 = scalar_lea.vmem [#allocation2], 339
      %v700 = vld [vmem:[%s699] ss:$2 sm:$0xff]
      %s701 = scalar_lea.vmem [#allocation2], 363
      %v702 = vld [vmem:[%s701] ss:$2 sm:$0xff]
      %s703 = scalar_lea.vmem [#allocation2], 387
      %v704 = vld [vmem:[%s703] ss:$2 sm:$0xff]
      %s705 = scalar_lea.vmem [#allocation2], 411
      %v706 = vld [vmem:[%s705] ss:$2 sm:$0xff]
      %v707 = vmul.f32 %v672, 0.125
      %v708 = vmul.f32 %v674, 0.125
      %v709 = vmul.f32 %v676, 0.125
      %v710 = vmul.f32 %v678, 0.125
      %v711 = vmul.f32 %v680, 0.125
      %v712 = vmul.f32 %v682, 0.125
      %v713 = vmul.f32 %v684, 0.125
      %v714 = vmul.f32 %v686, 0.125
      %v715 = vmul.f32 %v688, 0.125
      %v716 = vmul.f32 %v690, 0.125
      %v717 = vmul.f32 %v692, 0.125
      %v718 = vmul.f32 %v694, 0.125
      %v719 = vmul.f32 %v696, 0.125
      %v720 = vmul.f32 %v698, 0.125
      %v721 = vmul.f32 %v700, 0.125
      %v722 = vmul.f32 %v702, 0.125
      %v723 = vmul.f32 %v704, 0.125
      %v724 = vmul.f32 %v706, 0.125
      %v725 = vadd.f32 %v653, %v707
      %v726 = vadd.f32 %v654, %v708
      %v727 = vadd.f32 %v655, %v709
      %v728 = vadd.f32 %v656, %v710
      %v729 = vadd.f32 %v657, %v711
      %v730 = vadd.f32 %v658, %v712
      %v731 = vadd.f32 %v659, %v713
      %v732 = vadd.f32 %v660, %v714
      %v733 = vadd.f32 %v661, %v715
      %v734 = vadd.f32 %v662, %v716
      %v735 = vadd.f32 %v663, %v717
      %v736 = vadd.f32 %v664, %v718
      %v737 = vadd.f32 %v665, %v719
      %v738 = vadd.f32 %v666, %v720
      %v739 = vadd.f32 %v667, %v721
      %v740 = vadd.f32 %v668, %v722
      %v741 = vadd.f32 %v669, %v723
      %v742 = vadd.f32 %v670, %v724
      %v743 = vmul.f32 %v725, 0.125
      %v744 = vmul.f32 %v727, 0.125
      %v745 = vmul.f32 %v729, 0.125
      %v746 = vmul.f32 %v731, 0.125
      %v747 = vmul.f32 %v733, 0.125
      %v748 = vmul.f32 %v735, 0.125
      %v749 = vmul.f32 %v737, 0.125
      %v750 = vmul.f32 %v739, 0.125
      %v751 = vmul.f32 %v726, 0.375
      %v752 = vmul.f32 %v728, 0.375
      %v753 = vmul.f32 %v730, 0.375
      %v754 = vmul.f32 %v732, 0.375
      %v755 = vmul.f32 %v734, 0.375
      %v756 = vmul.f32 %v736, 0.375
      %v757 = vmul.f32 %v738, 0.375
      %v758 = vmul.f32 %v740, 0.375
      %v759 = vadd.f32 %v743, %v751
      %v760 = vadd.f32 %v744, %v752
      %v761 = vadd.f32 %v745, %v753
      %v762 = vadd.f32 %v746, %v754
      %v763 = vadd.f32 %v747, %v755
      %v764 = vadd.f32 %v748, %v756
      %v765 = vadd.f32 %v749, %v757
      %v766 = vadd.f32 %v750, %v758
      %v767 = vmul.f32 %v727, 0.375
      %v768 = vmul.f32 %v729, 0.375
      %v769 = vmul.f32 %v731, 0.375
      %v770 = vmul.f32 %v733, 0.375
      %v771 = vmul.f32 %v735, 0.375
      %v772 = vmul.f32 %v737, 0.375
      %v773 = vmul.f32 %v739, 0.375
      %v774 = vmul.f32 %v741, 0.375
      %v775 = vadd.f32 %v759, %v767
      %v776 = vadd.f32 %v760, %v768
      %v777 = vadd.f32 %v761, %v769
      %v778 = vadd.f32 %v762, %v770
      %v779 = vadd.f32 %v763, %v771
      %v780 = vadd.f32 %v764, %v772
      %v781 = vadd.f32 %v765, %v773
      %v782 = vadd.f32 %v766, %v774
      %v783 = vmul.f32 %v728, 0.125
      %v784 = vmul.f32 %v730, 0.125
      %v785 = vmul.f32 %v732, 0.125
      %v786 = vmul.f32 %v734, 0.125
      %v787 = vmul.f32 %v736, 0.125
      %v788 = vmul.f32 %v738, 0.125
      %v789 = vmul.f32 %v740, 0.125
      %v790 = vmul.f32 %v742, 0.125
      %v791 = vadd.f32 %v775, %v783
      %v792 = vadd.f32 %v776, %v784
      %v793 = vadd.f32 %v777, %v785
      %v794 = vadd.f32 %v778, %v786
      %v795 = vadd.f32 %v779, %v787
      %v796 = vadd.f32 %v780, %v788
      %v797 = vadd.f32 %v781, %v789
      %v798 = vadd.f32 %v782, %v790
      %v799 = vmul.f32 %v791, 0.5
      %v800 = vmul.f32 %v792, 0.5
      %v801 = vmul.f32 %v793, 0.5
      %v802 = vmul.f32 %v794, 0.5
      %v803 = vmul.f32 %v795, 0.5
      %v804 = vmul.f32 %v796, 0.5
      %v805 = vmul.f32 %v797, 0.5
      %v806 = vmul.f32 %v798, 0.5
      %v807 = vmul.f32 %v791, 0.70710677
      %v808 = vmul.f32 %v792, 0.70710677
      %v809 = vmul.f32 %v793, 0.70710677
      %v810 = vmul.f32 %v794, 0.70710677
      %v811 = vmul.f32 %v795, 0.70710677
      %v812 = vmul.f32 %v796, 0.70710677
      %v813 = vmul.f32 %v797, 0.70710677
      %v814 = vmul.f32 %v798, 0.70710677
      %v815 = vsub.f32 0.0, %v807
      %v816 = vsub.f32 0.0, %v808
      %v817 = vsub.f32 0.0, %v809
      %v818 = vsub.f32 0.0, %v810
      %v819 = vsub.f32 0.0, %v811
      %v820 = vsub.f32 0.0, %v812
      %v821 = vsub.f32 0.0, %v813
      %v822 = vsub.f32 0.0, %v814
      %v823 = vmax.f32 %v807, %v815
      %v824 = vmax.f32 %v808, %v816
      %v825 = vmax.f32 %v809, %v817
      %v826 = vmax.f32 %v810, %v818
      %v827 = vmax.f32 %v811, %v819
      %v828 = vmax.f32 %v812, %v820
      %v829 = vmax.f32 %v813, %v821
      %v830 = vmax.f32 %v814, %v822
      %v831 = vmul.f32 %v823, 0.3275911
      %v832 = vmul.f32 %v824, 0.3275911
      %v833 = vmul.f32 %v825, 0.3275911
      %v834 = vmul.f32 %v826, 0.3275911
      %v835 = vmul.f32 %v827, 0.3275911
      %v836 = vmul.f32 %v828, 0.3275911
      %v837 = vmul.f32 %v829, 0.3275911
      %v838 = vmul.f32 %v830, 0.3275911
      %v839 = vadd.f32 %v831, 1.0
      %v840 = vadd.f32 %v832, 1.0
      %v841 = vadd.f32 %v833, 1.0
      %v842 = vadd.f32 %v834, 1.0
      %v843 = vadd.f32 %v835, 1.0
      %v844 = vadd.f32 %v836, 1.0
      %v845 = vadd.f32 %v837, 1.0
      %v846 = vadd.f32 %v838, 1.0
      %v847 = vrcp.pop %v839
      %v848 = vrcp.pop %v840
      %v849 = vrcp.pop %v841
      %v850 = vrcp.pop %v842
      %v851 = vrcp.pop %v843
      %v852 = vrcp.pop %v844
      %v853 = vrcp.pop %v845
      %v854 = vrcp.pop %v846
      %v855 = vmul.f32 %v847, 1.0614054
      %v856 = vmul.f32 %v848, 1.0614054
      %v857 = vmul.f32 %v849, 1.0614054
      %v858 = vmul.f32 %v850, 1.0614054
      %v859 = vmul.f32 %v851, 1.0614054
      %v860 = vmul.f32 %v852, 1.0614054
      %v861 = vmul.f32 %v853, 1.0614054
      %v862 = vmul.f32 %v854, 1.0614054
      %v863 = vsub.f32 %v855, 1.4531521
      %v864 = vsub.f32 %v856, 1.4531521
      %v865 = vsub.f32 %v857, 1.4531521
      %v866 = vsub.f32 %v858, 1.4531521
      %v867 = vsub.f32 %v859, 1.4531521
      %v868 = vsub.f32 %v860, 1.4531521
      %v869 = vsub.f32 %v861, 1.4531521
      %v870 = vsub.f32 %v862, 1.4531521
      %v871 = vmul.f32 %v863, %v847
      %v872 = vmul.f32 %v864, %v848
      %v873 = vmul.f32 %v865, %v849
      %v874 = vmul.f32 %v866, %v850
      %v875 = vmul.f32 %v867, %v851
      %v876 = vmul.f32 %v868, %v852
      %v877 = vmul.f32 %v869, %v853
      %v878 = vmul.f32 %v870, %v854
      %v879 = vadd.f32 %v871, 1.4214138
      %v880 = vadd.f32 %v872, 1.4214138
      %v881 = vadd.f32 %v873, 1.4214138
      %v882 = vadd.f32 %v874, 1.4214138
      %v883 = vadd.f32 %v875, 1.4214138
      %v884 = vadd.f32 %v876, 1.4214138
      %v885 = vadd.f32 %v877, 1.4214138
      %v886 = vadd.f32 %v878, 1.4214138
      %v887 = vmul.f32 %v879, %v847
      %v888 = vmul.f32 %v880, %v848
      %v889 = vmul.f32 %v881, %v849
      %v890 = vmul.f32 %v882, %v850
      %v891 = vmul.f32 %v883, %v851
      %v892 = vmul.f32 %v884, %v852
      %v893 = vmul.f32 %v885, %v853
      %v894 = vmul.f32 %v886, %v854
      %v895 = vsub.f32 %v887, 0.28449672
      %v896 = vsub.f32 %v888, 0.28449672
      %v897 = vsub.f32 %v889, 0.28449672
      %v898 = vsub.f32 %v890, 0.28449672
      %v899 = vsub.f32 %v891, 0.28449672
      %v900 = vsub.f32 %v892, 0.28449672
      %v901 = vsub.f32 %v893, 0.28449672
      %v902 = vsub.f32 %v894, 0.28449672
      %v903 = vmul.f32 %v895, %v847
      %v904 = vmul.f32 %v896, %v848
      %v905 = vmul.f32 %v897, %v849
      %v906 = vmul.f32 %v898, %v850
      %v907 = vmul.f32 %v899, %v851
      %v908 = vmul.f32 %v900, %v852
      %v909 = vmul.f32 %v901, %v853
      %v910 = vmul.f32 %v902, %v854
      %v911 = vadd.f32 %v903, 0.2548296
      %v912 = vadd.f32 %v904, 0.2548296
      %v913 = vadd.f32 %v905, 0.2548296
      %v914 = vadd.f32 %v906, 0.2548296
      %v915 = vadd.f32 %v907, 0.2548296
      %v916 = vadd.f32 %v908, 0.2548296
      %v917 = vadd.f32 %v909, 0.2548296
      %v918 = vadd.f32 %v910, 0.2548296
      %v919 = vmul.f32 %v911, %v847
      %v920 = vmul.f32 %v912, %v848
      %v921 = vmul.f32 %v913, %v849
      %v922 = vmul.f32 %v914, %v850
      %v923 = vmul.f32 %v915, %v851
      %v924 = vmul.f32 %v916, %v852
      %v925 = vmul.f32 %v917, %v853
      %v926 = vmul.f32 %v918, %v854
      %v927 = vmul.f32 %v823, %v823
      %v928 = vmul.f32 %v824, %v824
      %v929 = vmul.f32 %v825, %v825
      %v930 = vmul.f32 %v826, %v826
      %v931 = vmul.f32 %v827, %v827
      %v932 = vmul.f32 %v828, %v828
      %v933 = vmul.f32 %v829, %v829
      %v934 = vmul.f32 %v830, %v830
      %v935 = vsub.f32 0.0, %v927
      %v936 = vsub.f32 0.0, %v928
      %v937 = vsub.f32 0.0, %v929
      %v938 = vsub.f32 0.0, %v930
      %v939 = vsub.f32 0.0, %v931
      %v940 = vsub.f32 0.0, %v932
      %v941 = vsub.f32 0.0, %v933
      %v942 = vsub.f32 0.0, %v934
      %v943 = vmul.f32 %v935, 1.442695
      %v944 = vpow.pop %v943
      %v945 = vmul.f32 %v936, 1.442695
      %v946 = vpow.pop %v945
      %v947 = vmul.f32 %v937, 1.442695
      %v948 = vpow.pop %v947
      %v949 = vmul.f32 %v938, 1.442695
      %v950 = vpow.pop %v949
      %v951 = vmul.f32 %v939, 1.442695
      %v952 = vpow.pop %v951
      %v953 = vmul.f32 %v940, 1.442695
      %v954 = vpow.pop %v953
      %v955 = vmul.f32 %v941, 1.442695
      %v956 = vpow.pop %v955
      %v957 = vmul.f32 %v942, 1.442695
      %v958 = vpow.pop %v957
      %v959 = vmul.f32 %v919, %v944
      %v960 = vmul.f32 %v920, %v946
      %v961 = vmul.f32 %v921, %v948
      %v962 = vmul.f32 %v922, %v950
      %v963 = vmul.f32 %v923, %v952
      %v964 = vmul.f32 %v924, %v954
      %v965 = vmul.f32 %v925, %v956
      %v966 = vmul.f32 %v926, %v958
      %v967 = vsub.f32 1.0, %v959
      %v968 = vsub.f32 1.0, %v960
      %v969 = vsub.f32 1.0, %v961
      %v970 = vsub.f32 1.0, %v962
      %v971 = vsub.f32 1.0, %v963
      %v972 = vsub.f32 1.0, %v964
      %v973 = vsub.f32 1.0, %v965
      %v974 = vsub.f32 1.0, %v966
      %vm975 = vcmp.ge.f32.partialorder %v807, 0.0
      %vm976 = vcmp.ge.f32.partialorder %v808, 0.0
      %vm977 = vcmp.ge.f32.partialorder %v809, 0.0
      %vm978 = vcmp.ge.f32.partialorder %v810, 0.0
      %vm979 = vcmp.ge.f32.partialorder %v811, 0.0
      %vm980 = vcmp.ge.f32.partialorder %v812, 0.0
      %vm981 = vcmp.ge.f32.partialorder %v813, 0.0
      %vm982 = vcmp.ge.f32.partialorder %v814, 0.0
      %v983 = vsub.f32 0.0, %v967
      %v984 = vsub.f32 0.0, %v968
      %v985 = vsub.f32 0.0, %v969
      %v986 = vsub.f32 0.0, %v970
      %v987 = vsub.f32 0.0, %v971
      %v988 = vsub.f32 0.0, %v972
      %v989 = vsub.f32 0.0, %v973
      %v990 = vsub.f32 0.0, %v974
      %v991 = vsel %vm975, %v967, %v983
      %v992 = vsel %vm976, %v968, %v984
      %v993 = vsel %vm977, %v969, %v985
      %v994 = vsel %vm978, %v970, %v986
      %v995 = vsel %vm979, %v971, %v987
      %v996 = vsel %vm980, %v972, %v988
      %v997 = vsel %vm981, %v973, %v989
      %v998 = vsel %vm982, %v974, %v990
      %v999 = vadd.f32 %v991, 1.0
      %v1000 = vadd.f32 %v992, 1.0
      %v1001 = vadd.f32 %v993, 1.0
      %v1002 = vadd.f32 %v994, 1.0
      %v1003 = vadd.f32 %v995, 1.0
      %v1004 = vadd.f32 %v996, 1.0
      %v1005 = vadd.f32 %v997, 1.0
      %v1006 = vadd.f32 %v998, 1.0
      %v1007 = vmul.f32 %v799, %v999
      %v1008 = vmul.f32 %v800, %v1000
      %v1009 = vmul.f32 %v801, %v1001
      %v1010 = vmul.f32 %v802, %v1002
      %v1011 = vmul.f32 %v803, %v1003
      %v1012 = vmul.f32 %v804, %v1004
      %v1013 = vmul.f32 %v805, %v1005
      %v1014 = vmul.f32 %v806, %v1006
      %v1015 = vpack.c.bf16 %v1007, %v1007
      %v1016 = vpack.c.bf16 %v1008, %v1008
      %v1017 = vpack.c.bf16 %v1009, %v1009
      %v1018 = vpack.c.bf16 %v1010, %v1010
      %v1019 = vpack.c.bf16 %v1011, %v1011
      %v1020 = vpack.c.bf16 %v1012, %v1012
      %v1021 = vpack.c.bf16 %v1013, %v1013
      %v1022 = vpack.c.bf16 %v1014, %v1014
      %vm1023 = vcmask 60416
      %1024 = vst.msk [vmem:[%s116] sm:$0xf] %vm1023, %v1015
      %1025 = vst.msk [vmem:[%s116 + $0x4] sm:$0xf] %vm1023, %v1016
      %1026 = vst.msk [vmem:[%s116 + $0x8] sm:$0xf] %vm1023, %v1017
      %1027 = vst.msk [vmem:[%s116 + $0xc] sm:$0xf] %vm1023, %v1018
      %1028 = vst.msk [vmem:[%s116 + $0x10] sm:$0xf] %vm1023, %v1019
      %1029 = vst.msk [vmem:[%s116 + $0x14] sm:$0xf] %vm1023, %v1020
      %1030 = vst.msk [vmem:[%s116 + $0x18] sm:$0xf] %vm1023, %v1021
      %1031 = vst.msk [vmem:[%s116 + $0x1c] sm:$0xf] %vm1023, %v1022
      %p1032 = scmp.lt.s32.totalorder %s12, 1
      %s1033 = scalar_select %p1032, %s12, 1
      %s1034 = smul.addr %s1033, 8
      %s1035 = smul.addr %s1034, 4
      %s1036 = scalar_lea.vmem %s1, %s1035
      // Predicated region
      $region25: #{convblock_down.3} parent=23 // pred_check
        %p1037 = pneg %p56
      $region26: #{convblock_down.3} parent=23 // pred_check_branch
        %1039 = sbr.rel (%p1037) target = $region28
      $region27: #{convblock_down.3} parent=23 // pred_region
        _
      $region28: #{convblock_down.3} parent=23 // pred_fallthru
        _
    $region24: #{convblock_down.3} parent=5 // pred_fallthru
      _
    %p1040 = scmp.le.s32.totalorder 2, %s7
    // Predicated region
    $region29: #{convblock_down.3} parent=5 // pred_check
      %p1041 = pneg %p1040
    $region30: #{convblock_down.3} parent=5 // pred_check_branch
      %1043 = sbr.rel (%p1041) target = $region32
    $region31: #{convblock_down.3} parent=5 // pred_region
      %s1044 = ssub.s32 %s7, 2
      // Predicated region
      $region33: #{convblock_down.3} parent=31 // pred_check
        %p1045 = pneg %p62
      $region34: #{convblock_down.3} parent=31 // pred_check_branch
        %1047 = sbr.rel (%p1045) target = $region36
      $region35: #{convblock_down.3} parent=31 // pred_region
        %p1048 = scmp.lt.s32.totalorder %s13, 1
        %s1049 = scalar_select %p1048, %s13, 1
        %s1050 = smul.addr %s1049, 8
        %s1051 = smul.addr %s1050, 4
        %s1052 = scalar_lea.vmem %s1, %s1051
      $region36: #{convblock_down.3} parent=31 // pred_fallthru
        _
    $region32: #{convblock_down.3} parent=5 // pred_fallthru
      _
  $region6: #{convblock_down.3} parent=0 // loop_footer
    %s11 = sadd.s32 1, %s7
  $region7: #{convblock_down.3} parent=0 // loop_footer_branch
    %6 = sbr.rel target = $region3
  $region8: #{convblock_down.3} parent=0 // loop_exit
    _

// kernel: convblock_down.5
$region0: #{convblock_down.5}
  #allocation0 [shape = 'u32[]', space=smem, size = 0x4, offset = 0x4, fixed_abs, tag = 'smem constant byte address 0x4 - core index']
  #allocation1 [shape = 'u32[72,128]{1,0:T(1,128)}', space=vmem, size = 0x9000, scoped, tag = 'internal scratch']
  #allocation2 [shape = 'bf16[10,8,384]{2,1,0:T(8,128)(2,1)}', space=vmem, size = 0xf000, scoped, tag = 'scratch operand']
  %s0 = inlined_call_operand.vmem [shape: bf16[2,8,8,128], index: 0, kind: input, shape index: {}]
  %s1 = inlined_call_operand.vmem [shape: bf16[3,384,128], index: 1, kind: input, shape index: {}]
  %s2 = inlined_call_operand.vmem [shape: f32[1,128], index: 2, kind: input, shape index: {}]
  %s3 = inlined_call_operand.vmem [shape: f32[2,64,128], index: 3, kind: output, shape index: {}]
  %s4 = sld [smem:[#allocation0]]
  $region49: #{convblock_down.5} parent=0
    _
  %s6 = ssub.s32 1, %s4
  %s7 = scalar_select 0, %s6, %s4
  loop: start=0, step=1, limit=4
  $region2: #{convblock_down.5} parent=0 // loop_pre_header
    _
  $region3: #{convblock_down.5} parent=0 // loop_header
    %s9 = sphi 0, %s13
    %p10 = scmp.ge.s32.totalorder %s9, 4
    %s16 = sphi 0, %s28
    %s17 = sphi 0, %s24
    %s18 = sphi 0, %s16
    %s19 = sphi 0, %s17
    %s20 = sphi 0, %s18
    %s21 = sphi 0, %s19
    %s31 = sphi 0, %s33
    %s34 = sphi 0, %s31
    %s35 = sphi 0, %s34
    %s51 = sphi 0, %s35
    %s57 = sphi 0, %s59
    %s60 = sphi 0, %s57
    %s61 = sphi 0, %s60
    %s77 = sphi 0, %s61
    %s83 = sphi 0, %s85
    %s86 = sphi 0, %s83
    %s87 = sphi 0, %s86
    %s103 = sphi 0, %s87
    %s111 = sphi 0, %s113
    %s114 = sphi 0, %s111
    %s115 = sphi 0, %s114
    %s131 = sphi 0, %s115
  $region4: #{convblock_down.5} parent=0 // loop_header_branch
    %12 = sbr.rel (%p10) target = $region8
  $region5: #{convblock_down.5} parent=0 // loop_body
    %s14 = ssub.s32 %s9, 1
    %s15 = ssub.s32 %s9, 2
    %s22 = sadd.s32 1, %s17
    %p23 = scmp.ge.s32.totalorder %s22, 1
    %s24 = scalar_select %p23, 0, %s22
    %s25 = sadd.s32 1, %s16
    %s26 = scalar_select %p23, %s25, %s16
    %p27 = scmp.ge.s32.totalorder %s26, 2
    %s28 = scalar_select %p27, 0, %s26
    %s29 = ssub.s32 %s16, %s28
    %p30 = scmp.eq.s32.totalorder %s29, 0
    %s32 = sadd.s32 %s31, 1
    %s33 = scalar_select %p30, %s31, %s32
    %p36 = pneg %p30
    %p37 = scmp.eq.s32.totalorder %s9, 1
    %p38 = por %p36, %p37
    %p39 = scmp.ne.s32.totalorder %s31, %s34
    %p40 = scmp.eq.s32.totalorder %s9, 0
    %p41 = por %p39, %p40
    %p42 = scmp.ne.s32.totalorder %s31, %s34
    %p43 = scmp.eq.s32.totalorder %s14, 1
    %p44 = por %p42, %p43
    %p45 = scmp.ne.s32.totalorder %s34, %s35
    %p46 = scmp.eq.s32.totalorder %s14, 0
    %p47 = por %p45, %p46
    %p48 = scmp.ne.s32.totalorder %s34, %s35
    %p49 = scmp.eq.s32.totalorder %s15, 1
    %p50 = por %p48, %p49
    %p52 = scmp.ne.s32.totalorder %s35, %s51
    %p53 = scmp.eq.s32.totalorder %s15, 0
    %p54 = por %p52, %p53
    %s55 = ssub.s32 %s17, %s24
    %p56 = scmp.eq.s32.totalorder %s55, 0
    %s58 = sadd.s32 %s57, 1
    %s59 = scalar_select %p56, %s57, %s58
    %p62 = pneg %p56
    %p63 = scmp.eq.s32.totalorder %s9, 1
    %p64 = por %p62, %p63
    %p65 = scmp.ne.s32.totalorder %s57, %s60
    %p66 = scmp.eq.s32.totalorder %s9, 0
    %p67 = por %p65, %p66
    %p68 = scmp.ne.s32.totalorder %s57, %s60
    %p69 = scmp.eq.s32.totalorder %s14, 1
    %p70 = por %p68, %p69
    %p71 = scmp.ne.s32.totalorder %s60, %s61
    %p72 = scmp.eq.s32.totalorder %s14, 0
    %p73 = por %p71, %p72
    %p74 = scmp.ne.s32.totalorder %s60, %s61
    %p75 = scmp.eq.s32.totalorder %s15, 1
    %p76 = por %p74, %p75
    %p78 = scmp.ne.s32.totalorder %s61, %s77
    %p79 = scmp.eq.s32.totalorder %s15, 0
    %p80 = por %p78, %p79
    %s81 = ssub.s32 %s17, %s24
    %p82 = scmp.eq.s32.totalorder %s81, 0
    %s84 = sadd.s32 %s83, 1
    %s85 = scalar_select %p82, %s83, %s84
    %p88 = pneg %p82
    %p89 = scmp.eq.s32.totalorder %s9, 1
    %p90 = por %p88, %p89
    %p91 = scmp.ne.s32.totalorder %s83, %s86
    %p92 = scmp.eq.s32.totalorder %s9, 0
    %p93 = por %p91, %p92
    %p94 = scmp.ne.s32.totalorder %s83, %s86
    %p95 = scmp.eq.s32.totalorder %s14, 1
    %p96 = por %p94, %p95
    %p97 = scmp.ne.s32.totalorder %s86, %s87
    %p98 = scmp.eq.s32.totalorder %s14, 0
    %p99 = por %p97, %p98
    %p100 = scmp.ne.s32.totalorder %s86, %s87
    %p101 = scmp.eq.s32.totalorder %s15, 1
    %p102 = por %p100, %p101
    %p104 = scmp.ne.s32.totalorder %s87, %s103
    %p105 = scmp.eq.s32.totalorder %s15, 0
    %p106 = por %p104, %p105
    %s107 = ssub.s32 %s16, %s28
    %s108 = ssub.s32 %s17, %s24
    %s109 = sor.u32 %s107, %s108
    %p110 = scmp.eq.s32.totalorder %s109, 0
    %s112 = sadd.s32 %s111, 1
    %s113 = scalar_select %p110, %s111, %s112
    %p116 = pneg %p110
    %p117 = scmp.eq.s32.totalorder %s9, 1
    %p118 = por %p116, %p117
    %p119 = scmp.ne.s32.totalorder %s111, %s114
    %p120 = scmp.eq.s32.totalorder %s9, 0
    %p121 = por %p119, %p120
    %p122 = scmp.ne.s32.totalorder %s111, %s114
    %p123 = scmp.eq.s32.totalorder %s14, 1
    %p124 = por %p122, %p123
    %p125 = scmp.ne.s32.totalorder %s114, %s115
    %p126 = scmp.eq.s32.totalorder %s14, 0
    %p127 = por %p125, %p126
    %p128 = scmp.ne.s32.totalorder %s114, %s115
    %p129 = scmp.eq.s32.totalorder %s15, 1
    %p130 = por %p128, %p129
    %p132 = scmp.ne.s32.totalorder %s115, %s131
    %p133 = scmp.eq.s32.totalorder %s15, 0
    %p134 = por %p132, %p133
    %p135 = scmp.le.s32.totalorder 1, %s9
    %p136 = scmp.lt.s32.totalorder %s9, 3
    %p137 = pnand %p135, %p136
    %p138 = pneg %p137
    // Predicated region
    $region9: #{convblock_down.5} parent=5 // pred_check
      _
    $region10: #{convblock_down.5} parent=5 // pred_check_branch
      %140 = sbr.rel (%p137) target = $region12
    $region11: #{convblock_down.5} parent=5 // pred_region
      %s141 = ssub.s32 %s9, 1
      // Predicated region
      $region13: #{convblock_down.5} parent=11 // pred_check
        %p142 = pneg %p73
      $region14: #{convblock_down.5} parent=11 // pred_check_branch
        %144 = sbr.rel (%p142) target = $region16
      $region15: #{convblock_down.5} parent=11 // pred_region
        %p145 = scmp.lt.s32.totalorder %s19, 0
        %s146 = scalar_select %p145, %s19, 0
        %s147 = smul.addr %s146, 4
        %s148 = scalar_lea.vmem %s1, %s147
      $region16: #{convblock_down.5} parent=11 // pred_fallthru
        _
      // Predicated region
      $region17: #{convblock_down.5} parent=11 // pred_check
        %p149 = pneg %p99
      $region18: #{convblock_down.5} parent=11 // pred_check_branch
        %151 = sbr.rel (%p149) target = $region20
      $region19: #{convblock_down.5} parent=11 // pred_region
        %p152 = scmp.lt.s32.totalorder %s19, 0
        %s153 = scalar_select %p152, %s19, 0
        %s154 = scalar_lea.vmem %s2, %s153
      $region20: #{convblock_down.5} parent=11 // pred_fallthru
        _
    $region12: #{convblock_down.5} parent=5 // pred_fallthru
      _
    %p155 = scmp.lt.s32.totalorder %s9, 2
    // Predicated region
    $region21: #{convblock_down.5} parent=5 // pred_check
      %p156 = pneg %p155
    $region22: #{convblock_down.5} parent=5 // pred_check_branch
      %158 = sbr.rel (%p156) target = $region24
    $region23: #{convblock_down.5} parent=5 // pred_region
      // Predicated region
      $region25: #{convblock_down.5} parent=23 // pred_check
        %p159 = pneg %p41
      $region26: #{convblock_down.5} parent=23 // pred_check_branch
        %161 = sbr.rel (%p159) target = $region28
      $region27: #{convblock_down.5} parent=23 // pred_region
        %p162 = scmp.lt.s32.totalorder %s16, 1
        %s163 = scalar_select %p162, %s16, 1
        %s164 = smul.addr %s163, 8
        %s165 = smul.addr %s164, 4
        %s166 = scalar_lea.vmem %s0, %s165
      $region28: #{convblock_down.5} parent=23 // pred_fallthru
        _
    $region24: #{convblock_down.5} parent=5 // pred_fallthru
      _
    %p167 = scmp.le.s32.totalorder 1, %s9
    %p168 = scmp.lt.s32.totalorder %s9, 3
    %p169 = pnand %p167, %p168
    %p170 = pneg %p169
    // Predicated region
    $region29: #{convblock_down.5} parent=5 // pred_check
      _
    $region30: #{convblock_down.5} parent=5 // pred_check_branch
      %172 = sbr.rel (%p169) target = $region32
    $region31: #{convblock_down.5} parent=5 // pred_region
      %s173 = ssub.s32 %s9, 1
      %p174 = scmp.lt.s32.totalorder %s18, 1
      %s175 = scalar_select %p174, %s18, 1
      %s176 = smul.addr %s175, 8
      %s177 = smul.addr %s176, 4
      %s178 = scalar_lea.vmem %s0, %s177
      %p179 = pneg %p47
      %p180 = pneg %p44
      %p181 = scmp.lt.s32.totalorder %s19, 0
      %s182 = scalar_select %p181, %s19, 0
      %s183 = smul.addr %s182, 4
      %s184 = scalar_lea.vmem %s1, %s183
      %p185 = pneg %p73
      %p186 = pneg %p70
      %p187 = scmp.lt.s32.totalorder %s19, 0
      %s188 = scalar_select %p187, %s19, 0
      %s189 = scalar_lea.vmem %s2, %s188
      %p190 = pneg %p99
      %p191 = pneg %p96
      %p192 = pneg %p127
      %p193 = pneg %p124
      %p194 = scmp.lt.s32.totalorder %s18, 1
      %s195 = scalar_select %p194, %s18, 1
      %p196 = scmp.lt.s32.totalorder %s19, 0
      %s197 = scalar_select %p196, %s19, 0
      %s198 = smul.addr %s195, 8
      %s199 = sadd.s32 %s197, %s198
      %s200 = smul.addr %s199, 8
      %s201 = scalar_lea.vmem %s3, %s200
      %p202 = scmp.lt.s32.totalorder %s18, 1
      %s203 = scalar_select %p202, %s18, 1
      %s204 = smul.addr %s203, 8
      %s205 = smul.addr %s204, 4
      %s206 = scalar_lea.vmem %s0, %s205
      %p207 = scmp.lt.s32.totalorder %s19, 0
      %s208 = scalar_select %p207, %s19, 0
      %s209 = smul.addr %s208, 4
      %s210 = scalar_lea.vmem %s1, %s209
      %p211 = scmp.lt.s32.totalorder %s19, 0
      %s212 = scalar_select %p211, %s19, 0
      %s213 = scalar_lea.vmem %s2, %s212
      %p214 = scmp.lt.s32.totalorder %s18, 1
      %s215 = scalar_select %p214, %s18, 1
      %p216 = scmp.lt.s32.totalorder %s19, 0
      %s217 = scalar_select %p216, %s19, 0
      %s218 = smul.addr %s215, 8
      %s219 = sadd.s32 %s217, %s218
      %s220 = smul.addr %s219, 8
      %s221 = scalar_lea.vmem %s3, %s220
      %p223 = scmp.eq.s32.totalorder %s19, 0
      // Predicated region
      $region33: #{convblock_down.5} parent=31 // pred_check
        %p224 = pneg %p223
      $region34: #{convblock_down.5} parent=31 // pred_check_branch
        %226 = sbr.rel (%p224) target = $region36
      $region35: #{convblock_down.5} parent=31 // pred_region
        %v227 = vld [vmem:[%s206] sm:$0xf]
        %v228 = vld [vmem:[%s206 + $0x4] sm:$0xf]
        %v229 = vld [vmem:[%s206 + $0x8] sm:$0xf]
        %v230 = vld [vmem:[%s206 + $0xc] sm:$0xf]
        %v231 = vld [vmem:[%s206 + $0x10] sm:$0xf]
        %v232 = vld [vmem:[%s206 + $0x14] sm:$0xf]
        %v233 = vld [vmem:[%s206 + $0x18] sm:$0xf]
        %v234 = vld [vmem:[%s206 + $0x1c] sm:$0xf]
        %v243 = vunpack.c.l.b16 %v227
        %v244 = vunpack.c.l.b16 %v228
        %v245 = vunpack.c.l.b16 %v229
        %v246 = vunpack.c.l.b16 %v230
        %v247 = vunpack.c.l.b16 %v231
        %v248 = vunpack.c.l.b16 %v232
        %v249 = vunpack.c.l.b16 %v233
        %v250 = vunpack.c.l.b16 %v234
        %v251 = vpack.c.b16 %v243, %v243
        %v252 = vpack.c.b16 %v244, %v244
        %v253 = vpack.c.b16 %v245, %v245
        %v254 = vpack.c.b16 %v246, %v246
        %v255 = vpack.c.b16 %v247, %v247
        %v256 = vpack.c.b16 %v248, %v248
        %v257 = vpack.c.b16 %v249, %v249
        %v258 = vpack.c.b16 %v250, %v250
        %v260 = vshrl.u32 %v251, 16
        %v262 = vrot.slane %v260, 7
        %v263 = vshll.u32 %v251, 16
        %v265 = vor.u32 %v262, %v263
        %v267 = vshrl.u32 %v252, 16
        %v269 = vrot.slane %v267, 7
        %v270 = vshll.u32 %v252, 16
        %v272 = vor.u32 %v269, %v270
        %v274 = vshrl.u32 %v253, 16
        %v276 = vrot.slane %v274, 7
        %v277 = vshll.u32 %v253, 16
        %v279 = vor.u32 %v276, %v277
        %v281 = vshrl.u32 %v254, 16
        %v283 = vrot.slane %v281, 7
        %v284 = vshll.u32 %v254, 16
        %v286 = vor.u32 %v283, %v284
        %v288 = vshrl.u32 %v255, 16
        %v290 = vrot.slane %v288, 7
        %v291 = vshll.u32 %v255, 16
        %v293 = vor.u32 %v290, %v291
        %v295 = vshrl.u32 %v256, 16
        %v297 = vrot.slane %v295, 7
        %v298 = vshll.u32 %v256, 16
        %v300 = vor.u32 %v297, %v298
        %v302 = vshrl.u32 %v257, 16
        %v304 = vrot.slane %v302, 7
        %v305 = vshll.u32 %v257, 16
        %v307 = vor.u32 %v304, %v305
        %v309 = vshrl.u32 %v258, 16
        %v311 = vrot.slane %v309, 7
        %v312 = vshll.u32 %v258, 16
        %v314 = vor.u32 %v311, %v312
        %vm323 = vcmask 1040384
        %vm324 = vsmask.f32 256
        %vm325 = vmand %vm323, %vm324
        %v326 = vsel %vm325, 0, %v265
        %v327 = vsel %vm325, 0, %v272
        %v328 = vsel %vm325, 0, %v279
        %v329 = vsel %vm325, 0, %v286
        %v330 = vsel %vm325, 0, %v293
        %v331 = vsel %vm325, 0, %v300
        %v332 = vsel %vm325, 0, %v307
        %v333 = vsel %vm325, 0, %v314
        %v334 = vrot.slane %v263, 1
        %v335 = vor.u32 %v260, %v334
        %v336 = vrot.slane %v270, 1
        %v337 = vor.u32 %v267, %v336
        %v338 = vrot.slane %v277, 1
        %v339 = vor.u32 %v274, %v338
        %v340 = vrot.slane %v284, 1
        %v341 = vor.u32 %v281, %v340
        %v342 = vrot.slane %v291, 1
        %v343 = vor.u32 %v288, %v342
        %v344 = vrot.slane %v298, 1
        %v345 = vor.u32 %v295, %v344
        %v346 = vrot.slane %v305, 1
        %v347 = vor.u32 %v302, %v346
        %v348 = vrot.slane %v312, 1
        %v349 = vor.u32 %v309, %v348
        %vm358 = vcmask 1043456
        %vm359 = vsmask.f32 3328
        %vm360 = vmand %vm358, %vm359
        %v361 = vsel %vm360, %v335, 0
        %v362 = vsel %vm360, %v337, 0
        %v363 = vsel %vm360, %v339, 0
        %v364 = vsel %vm360, %v341, 0
        %v365 = vsel %vm360, %v343, 0
        %v366 = vsel %vm360, %v345, 0
        %v367 = vsel %vm360, %v347, 0
        %v368 = vsel %vm360, %v349, 0
        %v385 = vunpack.c.l.b16 %v326
        %v386 = vunpack.c.l.b16 %v361
        %v387 = vunpack.c.l.b16 %v327
        %v388 = vunpack.c.l.b16 %v362
        %v389 = vunpack.c.l.b16 %v328
        %v390 = vunpack.c.l.b16 %v363
        %v391 = vunpack.c.l.b16 %v329
        %v392 = vunpack.c.l.b16 %v364
        %v393 = vunpack.c.l.b16 %v330
        %v394 = vunpack.c.l.b16 %v365
        %v395 = vunpack.c.l.b16 %v331
        %v396 = vunpack.c.l.b16 %v366
        %v397 = vunpack.c.l.b16 %v332
        %v398 = vunpack.c.l.b16 %v367
        %v399 = vunpack.c.l.b16 %v333
        %v400 = vunpack.c.l.b16 %v368
        %v401 = vpack.c.b16 %v243, %v385
        %v402 = vpack.c.b16 %v386, %v386
        %v403 = vpack.c.b16 %v244, %v387
        %v404 = vpack.c.b16 %v388, %v388
        %v405 = vpack.c.b16 %v245, %v389
        %v406 = vpack.c.b16 %v390, %v390
        %v407 = vpack.c.b16 %v246, %v391
        %v408 = vpack.c.b16 %v392, %v392
        %v409 = vpack.c.b16 %v247, %v393
        %v410 = vpack.c.b16 %v394, %v394
        %v411 = vpack.c.b16 %v248, %v395
        %v412 = vpack.c.b16 %v396, %v396
        %v413 = vpack.c.b16 %v249, %v397
        %v414 = vpack.c.b16 %v398, %v398
        %v415 = vpack.c.b16 %v250, %v399
        %v416 = vpack.c.b16 %v400, %v400
        %s433 = scalar_lea.vmem [#allocation2], 12
        %434 = vst [vmem:[%s433] sm:$0xff] %v401
        %435 = vst [vmem:[%s433 + $0x8] sm:$0xf] %v402
        %436 = vst [vmem:[%s433 + $0xc] sm:$0xff] %v403
        %437 = vst [vmem:[%s433 + $0x14] sm:$0xf] %v404
        %438 = vst [vmem:[%s433 + $0x18] sm:$0xff] %v405
        %439 = vst [vmem:[%s433 + $0x20] sm:$0xf] %v406
        %440 = vst [vmem:[%s433 + $0x24] sm:$0xff] %v407
        %441 = vst [vmem:[%s433 + $0x2c] sm:$0xf] %v408
        %442 = vst [vmem:[%s433 + $0x30] sm:$0xff] %v409
        %443 = vst [vmem:[%s433 + $0x38] sm:$0xf] %v410
        %444 = vst [vmem:[%s433 + $0x3c] sm:$0xff] %v411
        %445 = vst [vmem:[%s433 + $0x44] sm:$0xf] %v412
        %446 = vst [vmem:[%s433 + $0x48] sm:$0xff] %v413
        %447 = vst [vmem:[%s433 + $0x50] sm:$0xf] %v414
        %448 = vst [vmem:[%s433 + $0x54] sm:$0xff] %v415
        %449 = vst [vmem:[%s433 + $0x5c] sm:$0xf] %v416
        %450 = vst [vmem:[#allocation2] sm:$0xff] 0
        %451 = vst [vmem:[#allocation2 + $0x8] sm:$0xf] 0
        %s452 = scalar_lea.vmem [#allocation2], 108
        %453 = vst [vmem:[%s452] sm:$0xff] 0
        %454 = vst [vmem:[%s452 + $0x8] sm:$0xf] 0
      $region36: #{convblock_down.5} parent=31 // pred_fallthru
        _
      %v455 = vld [vmem:[%s210] sm:$0xf]
      %v456 = vld [vmem:[%s210 + $0x4] sm:$0xf]
      %v457 = vld [vmem:[%s210 + $0x8] sm:$0xf]
      %v458 = vld [vmem:[%s210 + $0xc] sm:$0xf]
      %v459 = vld [vmem:[%s210 + $0x10] sm:$0xf]
      %v460 = vld [vmem:[%s210 + $0x14] sm:$0xf]
      %v461 = vld [vmem:[%s210 + $0x18] sm:$0xf]
      %v462 = vld [vmem:[%s210 + $0x1c] sm:$0xf]
      %v463 = vld [vmem:[%s210 + $0x20] sm:$0xf]
      %v464 = vld [vmem:[%s210 + $0x24] sm:$0xf]
      %v465 = vld [vmem:[%s210 + $0x28] sm:$0xf]
      %v466 = vld [vmem:[%s210 + $0x2c] sm:$0xf]
      %v467 = vld [vmem:[%s210 + $0x30] sm:$0xf]
      %v468 = vld [vmem:[%s210 + $0x34] sm:$0xf]
      %v469 = vld [vmem:[%s210 + $0x38] sm:$0xf]
      %v470 = vld [vmem:[%s210 + $0x3c] sm:$0xf]
      %v471 = vld [vmem:[%s210 + $0x40] sm:$0xf]
      %v472 = vld [vmem:[%s210 + $0x44] sm:$0xf]
      %v473 = vld [vmem:[%s210 + $0x48] sm:$0xf]
      %v474 = vld [vmem:[%s210 + $0x4c] sm:$0xf]
      %v475 = vld [vmem:[%s210 + $0x50] sm:$0xf]
      %v476 = vld [vmem:[%s210 + $0x54] sm:$0xf]
      %v477 = vld [vmem:[%s210 + $0x58] sm:$0xf]
      %v478 = vld [vmem:[%s210 + $0x5c] sm:$0xf]
      %v479 = vld [vmem:[%s210 + $0x60] sm:$0xf]
      %v480 = vld [vmem:[%s210 + $0x64] sm:$0xf]
      %v481 = vld [vmem:[%s210 + $0x68] sm:$0xf]
      %v482 = vld [vmem:[%s210 + $0x6c] sm:$0xf]
      %v483 = vld [vmem:[%s210 + $0x70] sm:$0xf]
      %v484 = vld [vmem:[%s210 + $0x74] sm:$0xf]
      %v485 = vld [vmem:[%s210 + $0x78] sm:$0xf]
      %v486 = vld [vmem:[%s210 + $0x7c] sm:$0xf]
      %v487 = vld [vmem:[%s210 + $0x80] sm:$0xf]
      %v488 = vld [vmem:[%s210 + $0x84] sm:$0xf]
      %v489 = vld [vmem:[%s210 + $0x88] sm:$0xf]
      %v490 = vld [vmem:[%s210 + $0x8c] sm:$0xf]
      %v491 = vld [vmem:[%s210 + $0x90] sm:$0xf]
      %v492 = vld [vmem:[%s210 + $0x94] sm:$0xf]
      %v493 = vld [vmem:[%s210 + $0x98] sm:$0xf]
      %v494 = vld [vmem:[%s210 + $0x9c] sm:$0xf]
      %v495 = vld [vmem:[%s210 + $0xa0] sm:$0xf]
      %v496 = vld [vmem:[%s210 + $0xa4] sm:$0xf]
      %v497 = vld [vmem:[%s210 + $0xa8] sm:$0xf]
      %v498 = vld [vmem:[%s210 + $0xac] sm:$0xf]
      %v499 = vld [vmem:[%s210 + $0xb0] sm:$0xf]
      %v500 = vld [vmem:[%s210 + $0xb4] sm:$0xf]
      %v501 = vld [vmem:[%s210 + $0xb8] sm:$0xf]
      %v502 = vld [vmem:[%s210 + $0xbc] sm:$0xf]
      %v503 = vld [vmem:[%s210 + $0xc0] sm:$0xf]
      %v504 = vld [vmem:[%s210 + $0xc4] sm:$0xf]
      %v505 = vld [vmem:[%s210 + $0xc8] sm:$0xf]
      %v506 = vld [vmem:[%s210 + $0xcc] sm:$0xf]
      %v507 = vld [vmem:[%s210 + $0xd0] sm:$0xf]
      %v508 = vld [vmem:[%s210 + $0xd4] sm:$0xf]
      %v509 = vld [vmem:[%s210 + $0xd8] sm:$0xf]
      %v510 = vld [vmem:[%s210 + $0xdc] sm:$0xf]
      %v511 = vld [vmem:[%s210 + $0xe0] sm:$0xf]
      %v512 = vld [vmem:[%s210 + $0xe4] sm:$0xf]
      %v513 = vld [vmem:[%s210 + $0xe8] sm:$0xf]
      %v514 = vld [vmem:[%s210 + $0xec] sm:$0xf]
      %v515 = vld [vmem:[%s210 + $0xf0] sm:$0xf]
      %v516 = vld [vmem:[%s210 + $0xf4] sm:$0xf]
      %v517 = vld [vmem:[%s210 + $0xf8] sm:$0xf]
      %v518 = vld [vmem:[%s210 + $0xfc] sm:$0xf]
      %v519 = vld [vmem:[%s210 + $0x100] sm:$0xf]
      %v520 = vld [vmem:[%s210 + $0x104] sm:$0xf]
      %v521 = vld [vmem:[%s210 + $0x108] sm:$0xf]
      %v522 = vld [vmem:[%s210 + $0x10c] sm:$0xf]
      %v523 = vld [vmem:[%s210 + $0x110] sm:$0xf]
      %v524 = vld [vmem:[%s210 + $0x114] sm:$0xf]
      %v525 = vld [vmem:[%s210 + $0x118] sm:$0xf]
      %v526 = vld [vmem:[%s210 + $0x11c] sm:$0xf]
      %v527 = vld [vmem:[%s210 + $0x120] sm:$0xf]
      %v528 = vld [vmem:[%s210 + $0x124] sm:$0xf]
      %v529 = vld [vmem:[%s210 + $0x128] sm:$0xf]
      %v530 = vld [vmem:[%s210 + $0x12c] sm:$0xf]
      %v531 = vld [vmem:[%s210 + $0x130] sm:$0xf]
      %v532 = vld [vmem:[%s210 + $0x134] sm:$0xf]
      %v533 = vld [vmem:[%s210 + $0x138] sm:$0xf]
      %v534 = vld [vmem:[%s210 + $0x13c] sm:$0xf]
      %v535 = vld [vmem:[%s210 + $0x140] sm:$0xf]
      %v536 = vld [vmem:[%s210 + $0x144] sm:$0xf]
      %v537 = vld [vmem:[%s210 + $0x148] sm:$0xf]
      %v538 = vld [vmem:[%s210 + $0x14c] sm:$0xf]
      %v539 = vld [vmem:[%s210 + $0x150] sm:$0xf]
      %v540 = vld [vmem:[%s210 + $0x154] sm:$0xf]
      %v541 = vld [vmem:[%s210 + $0x158] sm:$0xf]
      %v542 = vld [vmem:[%s210 + $0x15c] sm:$0xf]
      %v543 = vld [vmem:[%s210 + $0x160] sm:$0xf]
      %v544 = vld [vmem:[%s210 + $0x164] sm:$0xf]
      %v545 = vld [vmem:[%s210 + $0x168] sm:$0xf]
      %v546 = vld [vmem:[%s210 + $0x16c] sm:$0xf]
      %v547 = vld [vmem:[%s210 + $0x170] sm:$0xf]
      %v548 = vld [vmem:[%s210 + $0x174] sm:$0xf]
      %v549 = vld [vmem:[%s210 + $0x178] sm:$0xf]
      %v550 = vld [vmem:[%s210 + $0x17c] sm:$0xf]
      %v551 = vld [vmem:[%s210 + $0x180] sm:$0xf]
      %v552 = vld [vmem:[%s210 + $0x184] sm:$0xf]
      %v553 = vld [vmem:[%s210 + $0x188] sm:$0xf]
      %v554 = vld [vmem:[%s210 + $0x18c] sm:$0xf]
      %v555 = vld [vmem:[%s210 + $0x190] sm:$0xf]
      %v556 = vld [vmem:[%s210 + $0x194] sm:$0xf]
      %v557 = vld [vmem:[%s210 + $0x198] sm:$0xf]
      %v558 = vld [vmem:[%s210 + $0x19c] sm:$0xf]
      %v559 = vld [vmem:[%s210 + $0x1a0] sm:$0xf]
      %v560 = vld [vmem:[%s210 + $0x1a4] sm:$0xf]
      %v561 = vld [vmem:[%s210 + $0x1a8] sm:$0xf]
      %v562 = vld [vmem:[%s210 + $0x1ac] sm:$0xf]
      %v563 = vld [vmem:[%s210 + $0x1b0] sm:$0xf]
      %v564 = vld [vmem:[%s210 + $0x1b4] sm:$0xf]
      %v565 = vld [vmem:[%s210 + $0x1b8] sm:$0xf]
      %v566 = vld [vmem:[%s210 + $0x1bc] sm:$0xf]
      %v567 = vld [vmem:[%s210 + $0x1c0] sm:$0xf]
      %v568 = vld [vmem:[%s210 + $0x1c4] sm:$0xf]
      %v569 = vld [vmem:[%s210 + $0x1c8] sm:$0xf]
      %v570 = vld [vmem:[%s210 + $0x1cc] sm:$0xf]
      %v571 = vld [vmem:[%s210 + $0x1d0] sm:$0xf]
      %v572 = vld [vmem:[%s210 + $0x1d4] sm:$0xf]
      %v573 = vld [vmem:[%s210 + $0x1d8] sm:$0xf]
      %v574 = vld [vmem:[%s210 + $0x1dc] sm:$0xf]
      %v575 = vld [vmem:[%s210 + $0x1e0] sm:$0xf]
      %v576 = vld [vmem:[%s210 + $0x1e4] sm:$0xf]
      %v577 = vld [vmem:[%s210 + $0x1e8] sm:$0xf]
      %v578 = vld [vmem:[%s210 + $0x1ec] sm:$0xf]
      %v579 = vld [vmem:[%s210 + $0x1f0] sm:$0xf]
      %v580 = vld [vmem:[%s210 + $0x1f4] sm:$0xf]
      %v581 = vld [vmem:[%s210 + $0x1f8] sm:$0xf]
      %v582 = vld [vmem:[%s210 + $0x1fc] sm:$0xf]
      %v583 = vld [vmem:[%s210 + $0x200] sm:$0xf]
      %v584 = vld [vmem:[%s210 + $0x204] sm:$0xf]
      %v585 = vld [vmem:[%s210 + $0x208] sm:$0xf]
      %v586 = vld [vmem:[%s210 + $0x20c] sm:$0xf]
      %v587 = vld [vmem:[%s210 + $0x210] sm:$0xf]
      %v588 = vld [vmem:[%s210 + $0x214] sm:$0xf]
      %v589 = vld [vmem:[%s210 + $0x218] sm:$0xf]
      %v590 = vld [vmem:[%s210 + $0x21c] sm:$0xf]
      %v591 = vld [vmem:[%s210 + $0x220] sm:$0xf]
      %v592 = vld [vmem:[%s210 + $0x224] sm:$0xf]
      %v593 = vld [vmem:[%s210 + $0x228] sm:$0xf]
      %v594 = vld [vmem:[%s210 + $0x22c] sm:$0xf]
      %v595 = vld [vmem:[%s210 + $0x230] sm:$0xf]
      %v596 = vld [vmem:[%s210 + $0x234] sm:$0xf]
      %v597 = vld [vmem:[%s210 + $0x238] sm:$0xf]
      %v598 = vld [vmem:[%s210 + $0x23c] sm:$0xf]
      %v599 = vld [vmem:[#allocation2] sm:$0xff]
      %v600 = vld [vmem:[#allocation2 + $0x8] sm:$0xf]
      %v601 = vld [vmem:[#allocation2 + $0xc] sm:$0xff]
      %v602 = vld [vmem:[#allocation2 + $0x14] sm:$0xf]
      %v603 = vld [vmem:[#allocation2 + $0x18] sm:$0xff]
      %v604 = vld [vmem:[#allocation2 + $0x20] sm:$0xf]
      %v605 = vld [vmem:[#allocation2 + $0x24] sm:$0xff]
      %v606 = vld [vmem:[#allocation2 + $0x2c] sm:$0xf]
      %v607 = vld [vmem:[#allocation2 + $0x30] sm:$0xff]
      %v608 = vld [vmem:[#allocation2 + $0x38] sm:$0xf]
      %v609 = vld [vmem:[#allocation2 + $0x3c] sm:$0xff]
      %v610 = vld [vmem:[#allocation2 + $0x44] sm:$0xf]
      %v611 = vld [vmem:[#allocation2 + $0x48] sm:$0xff]
      %v612 = vld [vmem:[#allocation2 + $0x50] sm:$0xf]
      %v613 = vld [vmem:[#allocation2 + $0x54] sm:$0xff]
      %v614 = vld [vmem:[#allocation2 + $0x5c] sm:$0xf]
      %s615 = scalar_lea.vmem [#allocation2], 12
      %v616 = vld [vmem:[%s615] sm:$0xff]
      %v617 = vld [vmem:[%s615 + $0x8] sm:$0xf]
      %v618 = vld [vmem:[%s615 + $0xc] sm:$0xff]
      %v619 = vld [vmem:[%s615 + $0x14] sm:$0xf]
      %v620 = vld [vmem:[%s615 + $0x18] sm:$0xff]
      %v621 = vld [vmem:[%s615 + $0x20] sm:$0xf]
      %v622 = vld [vmem:[%s615 + $0x24] sm:$0xff]
      %v623 = vld [vmem:[%s615 + $0x2c] sm:$0xf]
      %v624 = vld [vmem:[%s615 + $0x30] sm:$0xff]
      %v625 = vld [vmem:[%s615 + $0x38] sm:$0xf]
      %v626 = vld [vmem:[%s615 + $0x3c] sm:$0xff]
      %v627 = vld [vmem:[%s615 + $0x44] sm:$0xf]
      %v628 = vld [vmem:[%s615 + $0x48] sm:$0xff]
      %v629 = vld [vmem:[%s615 + $0x50] sm:$0xf]
      %v630 = vld [vmem:[%s615 + $0x54] sm:$0xff]
      %v631 = vld [vmem:[%s615 + $0x5c] sm:$0xf]
      %v648 = vunpack.c.l.b16 %v616
      %v649 = vunpack.c.h.b16 %v616
      %v650 = vunpack.c.l.b16 %v617
      %v651 = vunpack.c.l.b16 %v618
      %v652 = vunpack.c.h.b16 %v618
      %v653 = vunpack.c.l.b16 %v619
      %v654 = vunpack.c.l.b16 %v620
      %v655 = vunpack.c.h.b16 %v620
      %v656 = vunpack.c.l.b16 %v621
      %v657 = vunpack.c.l.b16 %v622
      %v658 = vunpack.c.h.b16 %v622
      %v659 = vunpack.c.l.b16 %v623
      %v660 = vunpack.c.l.b16 %v624
      %v661 = vunpack.c.h.b16 %v624
      %v662 = vunpack.c.l.b16 %v625
      %v663 = vunpack.c.l.b16 %v626
      %v664 = vunpack.c.h.b16 %v626
      %v665 = vunpack.c.l.b16 %v627
      %v666 = vunpack.c.l.b16 %v628
      %v667 = vunpack.c.h.b16 %v628
      %v668 = vunpack.c.l.b16 %v629
      %v669 = vunpack.c.l.b16 %v630
      %v670 = vunpack.c.h.b16 %v630
      %v671 = vunpack.c.l.b16 %v631
      %v672 = vpack.c.b16 %v651, %v648
      %v673 = vpack.c.b16 %v652, %v649
      %v674 = vpack.c.b16 %v653, %v650
      %v675 = vpack.c.b16 %v657, %v654
      %v676 = vpack.c.b16 %v658, %v655
      %v677 = vpack.c.b16 %v659, %v656
      %v678 = vpack.c.b16 %v663, %v660
      %v679 = vpack.c.b16 %v664, %v661
      %v680 = vpack.c.b16 %v665, %v662
      %v681 = vpack.c.b16 %v669, %v666
      %v682 = vpack.c.b16 %v670, %v667
      %v683 = vpack.c.b16 %v671, %v668
      %v744 = vunpack.c.l.b16 %v503
      %v745 = vunpack.c.l.b16 %v504
      %v746 = vunpack.c.l.b16 %v505
      %v747 = vunpack.c.l.b16 %v506
      %v748 = vunpack.c.l.b16 %v507
      %v749 = vunpack.c.l.b16 %v508
      %v750 = vunpack.c.l.b16 %v509
      %v751 = vunpack.c.l.b16 %v510
      %v752 = vunpack.c.l.b16 %v511
      %v753 = vunpack.c.l.b16 %v512
      %v754 = vunpack.c.l.b16 %v513
      %v755 = vunpack.c.l.b16 %v514
      %v756 = vunpack.c.l.b16 %v515
      %v757 = vunpack.c.l.b16 %v516
      %v758 = vunpack.c.l.b16 %v517
      %v759 = vunpack.c.l.b16 %v518
      %v760 = vunpack.c.l.b16 %v519
      %v761 = vunpack.c.l.b16 %v520
      %v762 = vunpack.c.l.b16 %v521
      %v763 = vunpack.c.l.b16 %v522
      %v764 = vunpack.c.l.b16 %v523
      %v765 = vunpack.c.l.b16 %v524
      %v766 = vunpack.c.l.b16 %v525
      %v767 = vunpack.c.l.b16 %v526
      %v768 = vunpack.c.l.b16 %v527
      %v769 = vunpack.c.l.b16 %v528
      %v770 = vunpack.c.l.b16 %v529
      %v771 = vunpack.c.l.b16 %v530
      %v772 = vunpack.c.l.b16 %v531
      %v773 = vunpack.c.l.b16 %v532
      %v774 = vunpack.c.l.b16 %v533
      %v775 = vunpack.c.l.b16 %v534
      %v776 = vunpack.c.l.b16 %v535
      %v777 = vunpack.c.l.b16 %v536
      %v778 = vunpack.c.l.b16 %v537
      %v779 = vunpack.c.l.b16 %v538
      %v780 = vunpack.c.l.b16 %v539
      %v781 = vunpack.c.l.b16 %v540
      %v782 = vunpack.c.l.b16 %v541
      %v783 = vunpack.c.l.b16 %v542
      %v784 = vunpack.c.l.b16 %v543
      %v785 = vunpack.c.l.b16 %v544
      %v786 = vunpack.c.l.b16 %v545
      %v787 = vunpack.c.l.b16 %v546
      %v788 = vunpack.c.l.b16 %v547
      %v789 = vunpack.c.l.b16 %v548
      %v790 = vunpack.c.l.b16 %v549
      %v791 = vunpack.c.l.b16 %v550
      %v792 = vpack.c.b16 %v745, %v744
      %v793 = vpack.c.b16 %v747, %v746
      %v794 = vpack.c.b16 %v749, %v748
      %v795 = vpack.c.b16 %v751, %v750
      %v796 = vpack.c.b16 %v753, %v752
      %v797 = vpack.c.b16 %v755, %v754
      %v798 = vpack.c.b16 %v757, %v756
      %v799 = vpack.c.b16 %v759, %v758
      %v800 = vpack.c.b16 %v761, %v760
      %v801 = vpack.c.b16 %v763, %v762
      %v802 = vpack.c.b16 %v765, %v764
      %v803 = vpack.c.b16 %v767, %v766
      %v804 = vpack.c.b16 %v769, %v768
      %v805 = vpack.c.b16 %v771, %v770
      %v806 = vpack.c.b16 %v773, %v772
      %v807 = vpack.c.b16 %v775, %v774
      %v808 = vpack.c.b16 %v777, %v776
      %v809 = vpack.c.b16 %v779, %v778
      %v810 = vpack.c.b16 %v781, %v780
      %v811 = vpack.c.b16 %v783, %v782
      %v812 = vpack.c.b16 %v785, %v784
      %v813 = vpack.c.b16 %v787, %v786
      %v814 = vpack.c.b16 %v789, %v788
      %v815 = vpack.c.b16 %v791, %v790
      %840 = vmatpush.bf16.msra.mxu0 %v799
      %841 = vmatpush.bf16.msra.mxu0 %v798
      %842 = vmatpush.bf16.msra.mxu0 %v797
      %843 = vmatpush.bf16.msra.mxu0 %v796
      %844 = vmatpush.bf16.msra.mxu0 %v795
      %845 = vmatpush.bf16.msra.mxu0 %v794
      %846 = vmatpush.bf16.msra.mxu0 %v793
      %847 = vmatpush.bf16.msra.mxu0 %v792
      %848 = vmatmul.bf16.gmra.mxu0 %v672
      %v849 = vpop.f32.mrf.mxu0
      %v850 = vadd.f32 0.0, %v849
      %v851 = vpop.f32.mrf.mxu0
      %v852 = vadd.f32 0.0, %v851
      %853 = vmatmul.bf16.gmra.mxu0 %v675
      %v854 = vpop.f32.mrf.mxu0
      %v855 = vadd.f32 0.0, %v854
      %v856 = vpop.f32.mrf.mxu0
      %v857 = vadd.f32 0.0, %v856
      %858 = vmatmul.bf16.gmra.mxu0 %v678
      %v859 = vpop.f32.mrf.mxu0
      %v860 = vadd.f32 0.0, %v859
      %v861 = vpop.f32.mrf.mxu0
      %v862 = vadd.f32 0.0, %v861
      %863 = vmatmul.bf16.gmra.mxu0 %v681
      %v864 = vpop.f32.mrf.mxu0
      %v865 = vadd.f32 0.0, %v864
      %v866 = vpop.f32.mrf.mxu0
      %v867 = vadd.f32 0.0, %v866
      %868 = vdwg.mxu0
      %869 = vmatpush.bf16.msra.mxu0 %v807
      %870 = vmatpush.bf16.msra.mxu0 %v806
      %871 = vmatpush.bf16.msra.mxu0 %v805
      %872 = vmatpush.bf16.msra.mxu0 %v804
      %873 = vmatpush.bf16.msra.mxu0 %v803
      %874 = vmatpush.bf16.msra.mxu0 %v802
      %875 = vmatpush.bf16.msra.mxu0 %v801
      %876 = vmatpush.bf16.msra.mxu0 %v800
      %877 = vmatmul.bf16.gmra.mxu0 %v673
      %v878 = vpop.f32.mrf.mxu0
      %v879 = vadd.f32 %v850, %v878
      %v880 = vpop.f32.mrf.mxu0
      %v881 = vadd.f32 %v852, %v880
      %882 = vmatmul.bf16.gmra.mxu0 %v676
      %v883 = vpop.f32.mrf.mxu0
      %v884 = vadd.f32 %v855, %v883
      %v885 = vpop.f32.mrf.mxu0
      %v886 = vadd.f32 %v857, %v885
      %887 = vmatmul.bf16.gmra.mxu0 %v679
      %v888 = vpop.f32.mrf.mxu0
      %v889 = vadd.f32 %v860, %v888
      %v890 = vpop.f32.mrf.mxu0
      %v891 = vadd.f32 %v862, %v890
      %892 = vmatmul.bf16.gmra.mxu0 %v682
      %v893 = vpop.f32.mrf.mxu0
      %v894 = vadd.f32 %v865, %v893
      %v895 = vpop.f32.mrf.mxu0
      %v896 = vadd.f32 %v867, %v895
      %897 = vdwg.mxu0
      %898 = vmatpush.bf16.msra.mxu0 %v815
      %899 = vmatpush.bf16.msra.mxu0 %v814
      %900 = vmatpush.bf16.msra.mxu0 %v813
      %901 = vmatpush.bf16.msra.mxu0 %v812
      %902 = vmatpush.bf16.msra.mxu0 %v811
      %903 = vmatpush.bf16.msra.mxu0 %v810
      %904 = vmatpush.bf16.msra.mxu0 %v809
      %905 = vmatpush.bf16.msra.mxu0 %v808
      %906 = vmatmul.bf16.gmra.mxu0 %v674
      %v907 = vpop.f32.mrf.mxu0
      %v908 = vadd.f32 %v879, %v907
      %v909 = vpop.f32.mrf.mxu0
      %v910 = vadd.f32 %v881, %v909
      %911 = vmatmul.bf16.gmra.mxu0 %v677
      %v912 = vpop.f32.mrf.mxu0
      %v913 = vadd.f32 %v884, %v912
      %v914 = vpop.f32.mrf.mxu0
      %v915 = vadd.f32 %v886, %v914
      %916 = vmatmul.bf16.gmra.mxu0 %v680
      %v917 = vpop.f32.mrf.mxu0
      %v918 = vadd.f32 %v889, %v917
      %v919 = vpop.f32.mrf.mxu0
      %v920 = vadd.f32 %v891, %v919
      %921 = vmatmul.bf16.gmra.mxu0 %v683
      %v922 = vpop.f32.mrf.mxu0
      %v923 = vadd.f32 %v894, %v922
      %v924 = vpop.f32.mrf.mxu0
      %v925 = vadd.f32 %v896, %v924
      %926 = vdwg.mxu0
      %v943 = vunpack.c.l.b16 %v599
      %v944 = vunpack.c.h.b16 %v599
      %v945 = vunpack.c.l.b16 %v600
      %v946 = vunpack.c.l.b16 %v601
      %v947 = vunpack.c.h.b16 %v601
      %v948 = vunpack.c.l.b16 %v602
      %v949 = vunpack.c.l.b16 %v603
      %v950 = vunpack.c.h.b16 %v603
      %v951 = vunpack.c.l.b16 %v604
      %v952 = vunpack.c.l.b16 %v605
      %v953 = vunpack.c.h.b16 %v605
      %v954 = vunpack.c.l.b16 %v606
      %v955 = vunpack.c.l.b16 %v607
      %v956 = vunpack.c.h.b16 %v607
      %v957 = vunpack.c.l.b16 %v608
      %v958 = vunpack.c.l.b16 %v609
      %v959 = vunpack.c.h.b16 %v609
      %v960 = vunpack.c.l.b16 %v610
      %v961 = vunpack.c.l.b16 %v611
      %v962 = vunpack.c.h.b16 %v611
      %v963 = vunpack.c.l.b16 %v612
      %v964 = vunpack.c.l.b16 %v613
      %v965 = vunpack.c.h.b16 %v613
      %v966 = vunpack.c.l.b16 %v614
      %v967 = vpack.c.b16 %v946, %v943
      %v968 = vpack.c.b16 %v947, %v944
      %v969 = vpack.c.b16 %v948, %v945
      %v970 = vpack.c.b16 %v952, %v949
      %v971 = vpack.c.b16 %v953, %v950
      %v972 = vpack.c.b16 %v954, %v951
      %v973 = vpack.c.b16 %v958, %v955
      %v974 = vpack.c.b16 %v959, %v956
      %v975 = vpack.c.b16 %v960, %v957
      %v976 = vpack.c.b16 %v964, %v961
      %v977 = vpack.c.b16 %v965, %v962
      %v978 = vpack.c.b16 %v966, %v963
      %v1039 = vunpack.c.l.b16 %v455
      %v1040 = vunpack.c.l.b16 %v456
      %v1041 = vunpack.c.l.b16 %v457
      %v1042 = vunpack.c.l.b16 %v458
      %v1043 = vunpack.c.l.b16 %v459
      %v1044 = vunpack.c.l.b16 %v460
      %v1045 = vunpack.c.l.b16 %v461
      %v1046 = vunpack.c.l.b16 %v462
      %v1047 = vunpack.c.l.b16 %v463
      %v1048 = vunpack.c.l.b16 %v464
      %v1049 = vunpack.c.l.b16 %v465
      %v1050 = vunpack.c.l.b16 %v466
      %v1051 = vunpack.c.l.b16 %v467
      %v1052 = vunpack.c.l.b16 %v468
      %v1053 = vunpack.c.l.b16 %v469
      %v1054 = vunpack.c.l.b16 %v470
      %v1055 = vunpack.c.l.b16 %v471
      %v1056 = vunpack.c.l.b16 %v472
      %v1057 = vunpack.c.l.b16 %v473
      %v1058 = vunpack.c.l.b16 %v474
      %v1059 = vunpack.c.l.b16 %v475
      %v1060 = vunpack.c.l.b16 %v476
      %v1061 = vunpack.c.l.b16 %v477
      %v1062 = vunpack.c.l.b16 %v478
      %v1063 = vunpack.c.l.b16 %v479
      %v1064 = vunpack.c.l.b16 %v480
      %v1065 = vunpack.c.l.b16 %v481
      %v1066 = vunpack.c.l.b16 %v482
      %v1067 = vunpack.c.l.b16 %v483
      %v1068 = vunpack.c.l.b16 %v484
      %v1069 = vunpack.c.l.b16 %v485
      %v1070 = vunpack.c.l.b16 %v486
      %v1071 = vunpack.c.l.b16 %v487
      %v1072 = vunpack.c.l.b16 %v488
      %v1073 = vunpack.c.l.b16 %v489
      %v1074 = vunpack.c.l.b16 %v490
      %v1075 = vunpack.c.l.b16 %v491
      %v1076 = vunpack.c.l.b16 %v492
      %v1077 = vunpack.c.l.b16 %v493
      %v1078 = vunpack.c.l.b16 %v494
      %v1079 = vunpack.c.l.b16 %v495
      %v1080 = vunpack.c.l.b16 %v496
      %v1081 = vunpack.c.l.b16 %v497
      %v1082 = vunpack.c.l.b16 %v498
      %v1083 = vunpack.c.l.b16 %v499
      %v1084 = vunpack.c.l.b16 %v500
      %v1085 = vunpack.c.l.b16 %v501
      %v1086 = vunpack.c.l.b16 %v502
      %v1087 = vpack.c.b16 %v1040, %v1039
      %v1088 = vpack.c.b16 %v1042, %v1041
      %v1089 = vpack.c.b16 %v1044, %v1043
      %v1090 = vpack.c.b16 %v1046, %v1045
      %v1091 = vpack.c.b16 %v1048, %v1047
      %v1092 = vpack.c.b16 %v1050, %v1049
      %v1093 = vpack.c.b16 %v1052, %v1051
      %v1094 = vpack.c.b16 %v1054, %v1053
      %v1095 = vpack.c.b16 %v1056, %v1055
      %v1096 = vpack.c.b16 %v1058, %v1057
      %v1097 = vpack.c.b16 %v1060, %v1059
      %v1098 = vpack.c.b16 %v1062, %v1061
      %v1099 = vpack.c.b16 %v1064, %v1063
      %v1100 = vpack.c.b16 %v1066, %v1065
      %v1101 = vpack.c.b16 %v1068, %v1067
      %v1102 = vpack.c.b16 %v1070, %v1069
      %v1103 = vpack.c.b16 %v1072, %v1071
      %v1104 = vpack.c.b16 %v1074, %v1073
      %v1105 = vpack.c.b16 %v1076, %v1075
      %v1106 = vpack.c.b16 %v1078, %v1077
      %v1107 = vpack.c.b16 %v1080, %v1079
      %v1108 = vpack.c.b16 %v1082, %v1081
      %v1109 = vpack.c.b16 %v1084, %v1083
      %v1110 = vpack.c.b16 %v1086, %v1085
      %1135 = vmatpush.bf16.msra.mxu0 %v1094
      %1136 = vmatpush.bf16.msra.mxu0 %v1093
      %1137 = vmatpush.bf16.msra.mxu0 %v1092
      %1138 = vmatpush.bf16.msra.mxu0 %v1091
      %1139 = vmatpush.bf16.msra.mxu0 %v1090
      %1140 = vmatpush.bf16.msra.mxu0 %v1089
      %1141 = vmatpush.bf16.msra.mxu0 %v1088
      %1142 = vmatpush.bf16.msra.mxu0 %v1087
      %1143 = vmatmul.bf16.gmra.mxu0 %v967
      %v1144 = vpop.f32.mrf.mxu0
      %v1145 = vadd.f32 %v908, %v1144
      %v1146 = vpop.f32.mrf.mxu0
      %v1147 = vadd.f32 %v910, %v1146
      %1148 = vmatmul.bf16.gmra.mxu0 %v970
      %v1149 = vpop.f32.mrf.mxu0
      %v1150 = vadd.f32 %v913, %v1149
      %v1151 = vpop.f32.mrf.mxu0
      %v1152 = vadd.f32 %v915, %v1151
      %1153 = vmatmul.bf16.gmra.mxu0 %v973
      %v1154 = vpop.f32.mrf.mxu0
      %v1155 = vadd.f32 %v918, %v1154
      %v1156 = vpop.f32.mrf.mxu0
      %v1157 = vadd.f32 %v920, %v1156
      %1158 = vmatmul.bf16.gmra.mxu0 %v976
      %v1159 = vpop.f32.mrf.mxu0
      %v1160 = vadd.f32 %v923, %v1159
      %v1161 = vpop.f32.mrf.mxu0
      %v1162 = vadd.f32 %v925, %v1161
      %1163 = vdwg.mxu0
      %1164 = vmatpush.bf16.msra.mxu0 %v1102
      %1165 = vmatpush.bf16.msra.mxu0 %v1101
      %1166 = vmatpush.bf16.msra.mxu0 %v1100
      %1167 = vmatpush.bf16.msra.mxu0 %v1099
      %1168 = vmatpush.bf16.msra.mxu0 %v1098
      %1169 = vmatpush.bf16.msra.mxu0 %v1097
      %1170 = vmatpush.bf16.msra.mxu0 %v1096
      %1171 = vmatpush.bf16.msra.mxu0 %v1095
      %1172 = vmatmul.bf16.gmra.mxu0 %v968
      %v1173 = vpop.f32.mrf.mxu0
      %v1174 = vadd.f32 %v1145, %v1173
      %v1175 = vpop.f32.mrf.mxu0
      %v1176 = vadd.f32 %v1147, %v1175
      %1177 = vmatmul.bf16.gmra.mxu0 %v971
      %v1178 = vpop.f32.mrf.mxu0
      %v1179 = vadd.f32 %v1150, %v1178
      %v1180 = vpop.f32.mrf.mxu0
      %v1181 = vadd.f32 %v1152, %v1180
      %1182 = vmatmul.bf16.gmra.mxu0 %v974
      %v1183 = vpop.f32.mrf.mxu0
      %v1184 = vadd.f32 %v1155, %v1183
      %v1185 = vpop.f32.mrf.mxu0
      %v1186 = vadd.f32 %v1157, %v1185
      %1187 = vmatmul.bf16.gmra.mxu0 %v977
      %v1188 = vpop.f32.mrf.mxu0
      %v1189 = vadd.f32 %v1160, %v1188
      %v1190 = vpop.f32.mrf.mxu0
      %v1191 = vadd.f32 %v1162, %v1190
      %1192 = vdwg.mxu0
      %1193 = vmatpush.bf16.msra.mxu0 %v1110
      %1194 = vmatpush.bf16.msra.mxu0 %v1109
      %1195 = vmatpush.bf16.msra.mxu0 %v1108
      %1196 = vmatpush.bf16.msra.mxu0 %v1107
      %1197 = vmatpush.bf16.msra.mxu0 %v1106
      %1198 = vmatpush.bf16.msra.mxu0 %v1105
      %1199 = vmatpush.bf16.msra.mxu0 %v1104
      %1200 = vmatpush.bf16.msra.mxu0 %v1103
      %1201 = vmatmul.bf16.gmra.mxu0 %v969
      %v1202 = vpop.f32.mrf.mxu0
      %v1203 = vadd.f32 %v1174, %v1202
      %v1204 = vpop.f32.mrf.mxu0
      %v1205 = vadd.f32 %v1176, %v1204
      %1206 = vmatmul.bf16.gmra.mxu0 %v972
      %v1207 = vpop.f32.mrf.mxu0
      %v1208 = vadd.f32 %v1179, %v1207
      %v1209 = vpop.f32.mrf.mxu0
      %v1210 = vadd.f32 %v1181, %v1209
      %1211 = vmatmul.bf16.gmra.mxu0 %v975
      %v1212 = vpop.f32.mrf.mxu0
      %v1213 = vadd.f32 %v1184, %v1212
      %v1214 = vpop.f32.mrf.mxu0
      %v1215 = vadd.f32 %v1186, %v1214
      %1216 = vmatmul.bf16.gmra.mxu0 %v978
      %v1217 = vpop.f32.mrf.mxu0
      %v1218 = vadd.f32 %v1189, %v1217
      %v1219 = vpop.f32.mrf.mxu0
      %v1220 = vadd.f32 %v1191, %v1219
      %1221 = vdwg.mxu0
      %s1222 = scalar_lea.vmem [#allocation2], 24
      %v1223 = vld [vmem:[%s1222] sm:$0xff]
      %v1224 = vld [vmem:[%s1222 + $0x8] sm:$0xf]
      %v1225 = vld [vmem:[%s1222 + $0xc] sm:$0xff]
      %v1226 = vld [vmem:[%s1222 + $0x14] sm:$0xf]
      %v1227 = vld [vmem:[%s1222 + $0x18] sm:$0xff]
      %v1228 = vld [vmem:[%s1222 + $0x20] sm:$0xf]
      %v1229 = vld [vmem:[%s1222 + $0x24] sm:$0xff]
      %v1230 = vld [vmem:[%s1222 + $0x2c] sm:$0xf]
      %v1231 = vld [vmem:[%s1222 + $0x30] sm:$0xff]
      %v1232 = vld [vmem:[%s1222 + $0x38] sm:$0xf]
      %v1233 = vld [vmem:[%s1222 + $0x3c] sm:$0xff]
      %v1234 = vld [vmem:[%s1222 + $0x44] sm:$0xf]
      %v1235 = vld [vmem:[%s1222 + $0x48] sm:$0xff]
      %v1236 = vld [vmem:[%s1222 + $0x50] sm:$0xf]
      %v1237 = vld [vmem:[%s1222 + $0x54] sm:$0xff]
      %v1238 = vld [vmem:[%s1222 + $0x5c] sm:$0xf]
      %v1255 = vunpack.c.l.b16 %v1223
      %v1256 = vunpack.c.h.b16 %v1223
      %v1257 = vunpack.c.l.b16 %v1224
      %v1258 = vunpack.c.l.b16 %v1225
      %v1259 = vunpack.c.h.b16 %v1225
      %v1260 = vunpack.c.l.b16 %v1226
      %v1261 = vunpack.c.l.b16 %v1227
      %v1262 = vunpack.c.h.b16 %v1227
      %v1263 = vunpack.c.l.b16 %v1228
      %v1264 = vunpack.c.l.b16 %v1229
      %v1265 = vunpack.c.h.b16 %v1229
      %v1266 = vunpack.c.l.b16 %v1230
      %v1267 = vunpack.c.l.b16 %v1231
      %v1268 = vunpack.c.h.b16 %v1231
      %v1269 = vunpack.c.l.b16 %v1232
      %v1270 = vunpack.c.l.b16 %v1233
      %v1271 = vunpack.c.h.b16 %v1233
      %v1272 = vunpack.c.l.b16 %v1234
      %v1273 = vunpack.c.l.b16 %v1235
      %v1274 = vunpack.c.h.b16 %v1235
      %v1275 = vunpack.c.l.b16 %v1236
      %v1276 = vunpack.c.l.b16 %v1237
      %v1277 = vunpack.c.h.b16 %v1237
      %v1278 = vunpack.c.l.b16 %v1238
      %v1279 = vpack.c.b16 %v1258, %v1255
      %v1280 = vpack.c.b16 %v1259, %v1256
      %v1281 = vpack.c.b16 %v1260, %v1257
      %v1282 = vpack.c.b16 %v1264, %v1261
      %v1283 = vpack.c.b16 %v1265, %v1262
      %v1284 = vpack.c.b16 %v1266, %v1263
      %v1285 = vpack.c.b16 %v1270, %v1267
      %v1286 = vpack.c.b16 %v1271, %v1268
      %v1287 = vpack.c.b16 %v1272, %v1269
      %v1288 = vpack.c.b16 %v1276, %v1273
      %v1289 = vpack.c.b16 %v1277, %v1274
      %v1290 = vpack.c.b16 %v1278, %v1275
      %v1351 = vunpack.c.l.b16 %v551
      %v1352 = vunpack.c.l.b16 %v552
      %v1353 = vunpack.c.l.b16 %v553
      %v1354 = vunpack.c.l.b16 %v554
      %v1355 = vunpack.c.l.b16 %v555
      %v1356 = vunpack.c.l.b16 %v556
      %v1357 = vunpack.c.l.b16 %v557
      %v1358 = vunpack.c.l.b16 %v558
      %v1359 = vunpack.c.l.b16 %v559
      %v1360 = vunpack.c.l.b16 %v560
      %v1361 = vunpack.c.l.b16 %v561
      %v1362 = vunpack.c.l.b16 %v562
      %v1363 = vunpack.c.l.b16 %v563
      %v1364 = vunpack.c.l.b16 %v564
      %v1365 = vunpack.c.l.b16 %v565
      %v1366 = vunpack.c.l.b16 %v566
      %v1367 = vunpack.c.l.b16 %v567
      %v1368 = vunpack.c.l.b16 %v568
      %v1369 = vunpack.c.l.b16 %v569
      %v1370 = vunpack.c.l.b16 %v570
      %v1371 = vunpack.c.l.b16 %v571
      %v1372 = vunpack.c.l.b16 %v572
      %v1373 = vunpack.c.l.b16 %v573
      %v1374 = vunpack.c.l.b16 %v574
      %v1375 = vunpack.c.l.b16 %v575
      %v1376 = vunpack.c.l.b16 %v576
      %v1377 = vunpack.c.l.b16 %v577
      %v1378 = vunpack.c.l.b16 %v578
      %v1379 = vunpack.c.l.b16 %v579
      %v1380 = vunpack.c.l.b16 %v580
      %v1381 = vunpack.c.l.b16 %v581
      %v1382 = vunpack.c.l.b16 %v582
      %v1383 = vunpack.c.l.b16 %v583
      %v1384 = vunpack.c.l.b16 %v584
      %v1385 = vunpack.c.l.b16 %v585
      %v1386 = vunpack.c.l.b16 %v586
      %v1387 = vunpack.c.l.b16 %v587
      %v1388 = vunpack.c.l.b16 %v588
      %v1389 = vunpack.c.l.b16 %v589
      %v1390 = vunpack.c.l.b16 %v590
      %v1391 = vunpack.c.l.b16 %v591
      %v1392 = vunpack.c.l.b16 %v592
      %v1393 = vunpack.c.l.b16 %v593
      %v1394 = vunpack.c.l.b16 %v594
      %v1395 = vunpack.c.l.b16 %v595
      %v1396 = vunpack.c.l.b16 %v596
      %v1397 = vunpack.c.l.b16 %v597
      %v1398 = vunpack.c.l.b16 %v598
      %v1399 = vpack.c.b16 %v1352, %v1351
      %v1400 = vpack.c.b16 %v1354, %v1353
      %v1401 = vpack.c.b16 %v1356, %v1355
      %v1402 = vpack.c.b16 %v1358, %v1357
      %v1403 = vpack.c.b16 %v1360, %v1359
      %v1404 = vpack.c.b16 %v1362, %v1361
      %v1405 = vpack.c.b16 %v1364, %v1363
      %v1406 = vpack.c.b16 %v1366, %v1365
      %v1407 = vpack.c.b16 %v1368, %v1367
      %v1408 = vpack.c.b16 %v1370, %v1369
      %v1409 = vpack.c.b16 %v1372, %v1371
      %v1410 = vpack.c.b16 %v1374, %v1373
      %v1411 = vpack.c.b16 %v1376, %v1375
      %v1412 = vpack.c.b16 %v1378, %v1377
      %v1413 = vpack.c.b16 %v1380, %v1379
      %v1414 = vpack.c.b16 %v1382, %v1381
      %v1415 = vpack.c.b16 %v1384, %v1383
      %v1416 = vpack.c.b16 %v1386, %v1385
      %v1417 = vpack.c.b16 %v1388, %v1387
      %v1418 = vpack.c.b16 %v1390, %v1389
      %v1419 = vpack.c.b16 %v1392, %v1391
      %v1420 = vpack.c.b16 %v1394, %v1393
      %v1421 = vpack.c.b16 %v1396, %v1395
      %v1422 = vpack.c.b16 %v1398, %v1397
      %1447 = vmatpush.bf16.msra.mxu0 %v1406
      %1448 = vmatpush.bf16.msra.mxu0 %v1405
      %1449 = vmatpush.bf16.msra.mxu0 %v1404
      %1450 = vmatpush.bf16.msra.mxu0 %v1403
      %1451 = vmatpush.bf16.msra.mxu0 %v1402
      %1452 = vmatpush.bf16.msra.mxu0 %v1401
      %1453 = vmatpush.bf16.msra.mxu0 %v1400
      %1454 = vmatpush.bf16.msra.mxu0 %v1399
      %1455 = vmatmul.bf16.gmra.mxu0 %v1279
      %v1456 = vpop.f32.mrf.mxu0
      %v1457 = vadd.f32 0.0, %v1456
      %v1458 = vpop.f32.mrf.mxu0
      %v1459 = vadd.f32 0.0, %v1458
      %1460 = vmatmul.bf16.gmra.mxu0 %v1282
      %v1461 = vpop.f32.mrf.mxu0
      %v1462 = vadd.f32 0.0, %v1461
      %v1463 = vpop.f32.mrf.mxu0
      %v1464 = vadd.f32 0.0, %v1463
      %1465 = vmatmul.bf16.gmra.mxu0 %v1285
      %v1466 = vpop.f32.mrf.mxu0
      %v1467 = vadd.f32 0.0, %v1466
      %v1468 = vpop.f32.mrf.mxu0
      %v1469 = vadd.f32 0.0, %v1468
      %1470 = vmatmul.bf16.gmra.mxu0 %v1288
      %v1471 = vpop.f32.mrf.mxu0
      %v1472 = vadd.f32 0.0, %v1471
      %v1473 = vpop.f32.mrf.mxu0
      %v1474 = vadd.f32 0.0, %v1473
      %1475 = vdwg.mxu0
      %1476 = vmatpush.bf16.msra.mxu0 %v1414
      %1477 = vmatpush.bf16.msra.mxu0 %v1413
      %1478 = vmatpush.bf16.msra.mxu0 %v1412
      %1479 = vmatpush.bf16.msra.mxu0 %v1411
      %1480 = vmatpush.bf16.msra.mxu0 %v1410
      %1481 = vmatpush.bf16.msra.mxu0 %v1409
      %1482 = vmatpush.bf16.msra.mxu0 %v1408
      %1483 = vmatpush.bf16.msra.mxu0 %v1407
      %1484 = vmatmul.bf16.gmra.mxu0 %v1280
      %v1485 = vpop.f32.mrf.mxu0
      %v1486 = vadd.f32 %v1457, %v1485
      %v1487 = vpop.f32.mrf.mxu0
      %v1488 = vadd.f32 %v1459, %v1487
      %1489 = vmatmul.bf16.gmra.mxu0 %v1283
      %v1490 = vpop.f32.mrf.mxu0
      %v1491 = vadd.f32 %v1462, %v1490
      %v1492 = vpop.f32.mrf.mxu0
      %v1493 = vadd.f32 %v1464, %v1492
      %1494 = vmatmul.bf16.gmra.mxu0 %v1286
      %v1495 = vpop.f32.mrf.mxu0
      %v1496 = vadd.f32 %v1467, %v1495
      %v1497 = vpop.f32.mrf.mxu0
      %v1498 = vadd.f32 %v1469, %v1497
      %1499 = vmatmul.bf16.gmra.mxu0 %v1289
      %v1500 = vpop.f32.mrf.mxu0
      %v1501 = vadd.f32 %v1472, %v1500
      %v1502 = vpop.f32.mrf.mxu0
      %v1503 = vadd.f32 %v1474, %v1502
      %1504 = vdwg.mxu0
      %1505 = vmatpush.bf16.msra.mxu0 %v1422
      %1506 = vmatpush.bf16.msra.mxu0 %v1421
      %1507 = vmatpush.bf16.msra.mxu0 %v1420
      %1508 = vmatpush.bf16.msra.mxu0 %v1419
      %1509 = vmatpush.bf16.msra.mxu0 %v1418
      %1510 = vmatpush.bf16.msra.mxu0 %v1417
      %1511 = vmatpush.bf16.msra.mxu0 %v1416
      %1512 = vmatpush.bf16.msra.mxu0 %v1415
      %1513 = vmatmul.bf16.gmra.mxu0 %v1281
      %v1514 = vpop.f32.mrf.mxu0
      %v1515 = vadd.f32 %v1486, %v1514
      %v1516 = vpop.f32.mrf.mxu0
      %v1517 = vadd.f32 %v1488, %v1516
      %1518 = vmatmul.bf16.gmra.mxu0 %v1284
      %v1519 = vpop.f32.mrf.mxu0
      %v1520 = vadd.f32 %v1491, %v1519
      %v1521 = vpop.f32.mrf.mxu0
      %v1522 = vadd.f32 %v1493, %v1521
      %1523 = vmatmul.bf16.gmra.mxu0 %v1287
      %v1524 = vpop.f32.mrf.mxu0
      %v1525 = vadd.f32 %v1496, %v1524
      %v1526 = vpop.f32.mrf.mxu0
      %v1527 = vadd.f32 %v1498, %v1526
      %1528 = vmatmul.bf16.gmra.mxu0 %v1290
      %v1529 = vpop.f32.mrf.mxu0
      %v1530 = vadd.f32 %v1501, %v1529
      %v1531 = vpop.f32.mrf.mxu0
      %v1532 = vadd.f32 %v1503, %v1531
      %1533 = vdwg.mxu0
      %v1534 = vadd.f32 %v1203, %v1515
      %v1535 = vadd.f32 %v1205, %v1517
      %v1536 = vadd.f32 %v1208, %v1520
      %v1537 = vadd.f32 %v1210, %v1522
      %v1538 = vadd.f32 %v1213, %v1525
      %v1539 = vadd.f32 %v1215, %v1527
      %v1540 = vadd.f32 %v1218, %v1530
      %v1541 = vadd.f32 %v1220, %v1532
      %v1542 = vld [vmem:[%s213] sm:$0x1]
      %v1544 = vperm.slane %v1542, 0
      %v1546 = vadd.f32 %v1534, %v1544
      %v1547 = vadd.f32 %v1535, %v1544
      %v1548 = vadd.f32 %v1536, %v1544
      %v1549 = vadd.f32 %v1537, %v1544
      %v1550 = vadd.f32 %v1538, %v1544
      %v1551 = vadd.f32 %v1539, %v1544
      %v1552 = vadd.f32 %v1540, %v1544
      %v1553 = vadd.f32 %v1541, %v1544
      %v1554 = vmul.f32 %v1546, 0.5
      %v1555 = vmul.f32 %v1547, 0.5
      %v1556 = vmul.f32 %v1548, 0.5
      %v1557 = vmul.f32 %v1549, 0.5
      %v1558 = vmul.f32 %v1550, 0.5
      %v1559 = vmul.f32 %v1551, 0.5
      %v1560 = vmul.f32 %v1552, 0.5
      %v1561 = vmul.f32 %v1553, 0.5
      %v1562 = vmul.f32 %v1546, 0.70710677
      %v1563 = vmul.f32 %v1547, 0.70710677
      %v1564 = vmul.f32 %v1548, 0.70710677
      %v1565 = vmul.f32 %v1549, 0.70710677
      %v1566 = vmul.f32 %v1550, 0.70710677
      %v1567 = vmul.f32 %v1551, 0.70710677
      %v1568 = vmul.f32 %v1552, 0.70710677
      %v1569 = vmul.f32 %v1553, 0.70710677
      %v1570 = vsub.f32 0.0, %v1562
      %v1571 = vsub.f32 0.0, %v1563
      %v1572 = vsub.f32 0.0, %v1564
      %v1573 = vsub.f32 0.0, %v1565
      %v1574 = vsub.f32 0.0, %v1566
      %v1575 = vsub.f32 0.0, %v1567
      %v1576 = vsub.f32 0.0, %v1568
      %v1577 = vsub.f32 0.0, %v1569
      %v1578 = vmax.f32 %v1562, %v1570
      %v1579 = vmax.f32 %v1563, %v1571
      %v1580 = vmax.f32 %v1564, %v1572
      %v1581 = vmax.f32 %v1565, %v1573
      %v1582 = vmax.f32 %v1566, %v1574
      %v1583 = vmax.f32 %v1567, %v1575
      %v1584 = vmax.f32 %v1568, %v1576
      %v1585 = vmax.f32 %v1569, %v1577
      %v1586 = vmul.f32 %v1578, 0.3275911
      %v1587 = vmul.f32 %v1579, 0.3275911
      %v1588 = vmul.f32 %v1580, 0.3275911
      %v1589 = vmul.f32 %v1581, 0.3275911
      %v1590 = vmul.f32 %v1582, 0.3275911
      %v1591 = vmul.f32 %v1583, 0.3275911
      %v1592 = vmul.f32 %v1584, 0.3275911
      %v1593 = vmul.f32 %v1585, 0.3275911
      %v1594 = vadd.f32 %v1586, 1.0
      %v1595 = vadd.f32 %v1587, 1.0
      %v1596 = vadd.f32 %v1588, 1.0
      %v1597 = vadd.f32 %v1589, 1.0
      %v1598 = vadd.f32 %v1590, 1.0
      %v1599 = vadd.f32 %v1591, 1.0
      %v1600 = vadd.f32 %v1592, 1.0
      %v1601 = vadd.f32 %v1593, 1.0
      %v1602 = vrcp.pop %v1594
      %v1603 = vrcp.pop %v1595
      %v1604 = vrcp.pop %v1596
      %v1605 = vrcp.pop %v1597
      %v1606 = vrcp.pop %v1598
      %v1607 = vrcp.pop %v1599
      %v1608 = vrcp.pop %v1600
      %v1609 = vrcp.pop %v1601
      %v1610 = vmul.f32 %v1602, 1.0614054
      %v1611 = vmul.f32 %v1603, 1.0614054
      %v1612 = vmul.f32 %v1604, 1.0614054
      %v1613 = vmul.f32 %v1605, 1.0614054
      %v1614 = vmul.f32 %v1606, 1.0614054
      %v1615 = vmul.f32 %v1607, 1.0614054
      %v1616 = vmul.f32 %v1608, 1.0614054
      %v1617 = vmul.f32 %v1609, 1.0614054
      %v1618 = vsub.f32 %v1610, 1.4531521
      %v1619 = vsub.f32 %v1611, 1.4531521
      %v1620 = vsub.f32 %v1612, 1.4531521
      %v1621 = vsub.f32 %v1613, 1.4531521
      %v1622 = vsub.f32 %v1614, 1.4531521
      %v1623 = vsub.f32 %v1615, 1.4531521
      %v1624 = vsub.f32 %v1616, 1.4531521
      %v1625 = vsub.f32 %v1617, 1.4531521
      %v1626 = vmul.f32 %v1618, %v1602
      %v1627 = vmul.f32 %v1619, %v1603
      %v1628 = vmul.f32 %v1620, %v1604
      %v1629 = vmul.f32 %v1621, %v1605
      %v1630 = vmul.f32 %v1622, %v1606
      %v1631 = vmul.f32 %v1623, %v1607
      %v1632 = vmul.f32 %v1624, %v1608
      %v1633 = vmul.f32 %v1625, %v1609
      %v1634 = vadd.f32 %v1626, 1.4214138
      %v1635 = vadd.f32 %v1627, 1.4214138
      %v1636 = vadd.f32 %v1628, 1.4214138
      %v1637 = vadd.f32 %v1629, 1.4214138
      %v1638 = vadd.f32 %v1630, 1.4214138
      %v1639 = vadd.f32 %v1631, 1.4214138
      %v1640 = vadd.f32 %v1632, 1.4214138
      %v1641 = vadd.f32 %v1633, 1.4214138
      %v1642 = vmul.f32 %v1634, %v1602
      %v1643 = vmul.f32 %v1635, %v1603
      %v1644 = vmul.f32 %v1636, %v1604
      %v1645 = vmul.f32 %v1637, %v1605
      %v1646 = vmul.f32 %v1638, %v1606
      %v1647 = vmul.f32 %v1639, %v1607
      %v1648 = vmul.f32 %v1640, %v1608
      %v1649 = vmul.f32 %v1641, %v1609
      %v1650 = vsub.f32 %v1642, 0.28449672
      %v1651 = vsub.f32 %v1643, 0.28449672
      %v1652 = vsub.f32 %v1644, 0.28449672
      %v1653 = vsub.f32 %v1645, 0.28449672
      %v1654 = vsub.f32 %v1646, 0.28449672
      %v1655 = vsub.f32 %v1647, 0.28449672
      %v1656 = vsub.f32 %v1648, 0.28449672
      %v1657 = vsub.f32 %v1649, 0.28449672
      %v1658 = vmul.f32 %v1650, %v1602
      %v1659 = vmul.f32 %v1651, %v1603
      %v1660 = vmul.f32 %v1652, %v1604
      %v1661 = vmul.f32 %v1653, %v1605
      %v1662 = vmul.f32 %v1654, %v1606
      %v1663 = vmul.f32 %v1655, %v1607
      %v1664 = vmul.f32 %v1656, %v1608
      %v1665 = vmul.f32 %v1657, %v1609
      %v1666 = vadd.f32 %v1658, 0.2548296
      %v1667 = vadd.f32 %v1659, 0.2548296
      %v1668 = vadd.f32 %v1660, 0.2548296
      %v1669 = vadd.f32 %v1661, 0.2548296
      %v1670 = vadd.f32 %v1662, 0.2548296
      %v1671 = vadd.f32 %v1663, 0.2548296
      %v1672 = vadd.f32 %v1664, 0.2548296
      %v1673 = vadd.f32 %v1665, 0.2548296
      %v1674 = vmul.f32 %v1666, %v1602
      %v1675 = vmul.f32 %v1667, %v1603
      %v1676 = vmul.f32 %v1668, %v1604
      %v1677 = vmul.f32 %v1669, %v1605
      %v1678 = vmul.f32 %v1670, %v1606
      %v1679 = vmul.f32 %v1671, %v1607
      %v1680 = vmul.f32 %v1672, %v1608
      %v1681 = vmul.f32 %v1673, %v1609
      %v1682 = vmul.f32 %v1578, %v1578
      %v1683 = vmul.f32 %v1579, %v1579
      %v1684 = vmul.f32 %v1580, %v1580
      %v1685 = vmul.f32 %v1581, %v1581
      %v1686 = vmul.f32 %v1582, %v1582
      %v1687 = vmul.f32 %v1583, %v1583
      %v1688 = vmul.f32 %v1584, %v1584
      %v1689 = vmul.f32 %v1585, %v1585
      %v1690 = vsub.f32 0.0, %v1682
      %v1691 = vsub.f32 0.0, %v1683
      %v1692 = vsub.f32 0.0, %v1684
      %v1693 = vsub.f32 0.0, %v1685
      %v1694 = vsub.f32 0.0, %v1686
      %v1695 = vsub.f32 0.0, %v1687
      %v1696 = vsub.f32 0.0, %v1688
      %v1697 = vsub.f32 0.0, %v1689
      %v1698 = vmul.f32 %v1690, 1.442695
      %v1699 = vpow.pop %v1698
      %v1700 = vmul.f32 %v1691, 1.442695
      %v1701 = vpow.pop %v1700
      %v1702 = vmul.f32 %v1692, 1.442695
      %v1703 = vpow.pop %v1702
      %v1704 = vmul.f32 %v1693, 1.442695
      %v1705 = vpow.pop %v1704
      %v1706 = vmul.f32 %v1694, 1.442695
      %v1707 = vpow.pop %v1706
      %v1708 = vmul.f32 %v1695, 1.442695
      %v1709 = vpow.pop %v1708
      %v1710 = vmul.f32 %v1696, 1.442695
      %v1711 = vpow.pop %v1710
      %v1712 = vmul.f32 %v1697, 1.442695
      %v1713 = vpow.pop %v1712
      %v1714 = vmul.f32 %v1674, %v1699
      %v1715 = vmul.f32 %v1675, %v1701
      %v1716 = vmul.f32 %v1676, %v1703
      %v1717 = vmul.f32 %v1677, %v1705
      %v1718 = vmul.f32 %v1678, %v1707
      %v1719 = vmul.f32 %v1679, %v1709
      %v1720 = vmul.f32 %v1680, %v1711
      %v1721 = vmul.f32 %v1681, %v1713
      %v1722 = vsub.f32 1.0, %v1714
      %v1723 = vsub.f32 1.0, %v1715
      %v1724 = vsub.f32 1.0, %v1716
      %v1725 = vsub.f32 1.0, %v1717
      %v1726 = vsub.f32 1.0, %v1718
      %v1727 = vsub.f32 1.0, %v1719
      %v1728 = vsub.f32 1.0, %v1720
      %v1729 = vsub.f32 1.0, %v1721
      %vm1730 = vcmp.ge.f32.partialorder %v1562, 0.0
      %vm1731 = vcmp.ge.f32.partialorder %v1563, 0.0
      %vm1732 = vcmp.ge.f32.partialorder %v1564, 0.0
      %vm1733 = vcmp.ge.f32.partialorder %v1565, 0.0
      %vm1734 = vcmp.ge.f32.partialorder %v1566, 0.0
      %vm1735 = vcmp.ge.f32.partialorder %v1567, 0.0
      %vm1736 = vcmp.ge.f32.partialorder %v1568, 0.0
      %vm1737 = vcmp.ge.f32.partialorder %v1569, 0.0
      %v1738 = vsub.f32 0.0, %v1722
      %v1739 = vsub.f32 0.0, %v1723
      %v1740 = vsub.f32 0.0, %v1724
      %v1741 = vsub.f32 0.0, %v1725
      %v1742 = vsub.f32 0.0, %v1726
      %v1743 = vsub.f32 0.0, %v1727
      %v1744 = vsub.f32 0.0, %v1728
      %v1745 = vsub.f32 0.0, %v1729
      %v1746 = vsel %vm1730, %v1722, %v1738
      %v1747 = vsel %vm1731, %v1723, %v1739
      %v1748 = vsel %vm1732, %v1724, %v1740
      %v1749 = vsel %vm1733, %v1725, %v1741
      %v1750 = vsel %vm1734, %v1726, %v1742
      %v1751 = vsel %vm1735, %v1727, %v1743
      %v1752 = vsel %vm1736, %v1728, %v1744
      %v1753 = vsel %vm1737, %v1729, %v1745
      %v1754 = vadd.f32 %v1746, 1.0
      %v1755 = vadd.f32 %v1747, 1.0
      %v1756 = vadd.f32 %v1748, 1.0
      %v1757 = vadd.f32 %v1749, 1.0
      %v1758 = vadd.f32 %v1750, 1.0
      %v1759 = vadd.f32 %v1751, 1.0
      %v1760 = vadd.f32 %v1752, 1.0
      %v1761 = vadd.f32 %v1753, 1.0
      %v1762 = vmul.f32 %v1554, %v1754
      %v1763 = vmul.f32 %v1555, %v1755
      %v1764 = vmul.f32 %v1556, %v1756
      %v1765 = vmul.f32 %v1557, %v1757
      %v1766 = vmul.f32 %v1558, %v1758
      %v1767 = vmul.f32 %v1559, %v1759
      %v1768 = vmul.f32 %v1560, %v1760
      %v1769 = vmul.f32 %v1561, %v1761
      %1770 = vst [vmem:[%s221] sm:$0xff] %v1762
      %1771 = vst [vmem:[%s221 + $0x8] sm:$0xff] %v1763
      %1772 = vst [vmem:[%s221 + $0x10] sm:$0xff] %v1764
      %1773 = vst [vmem:[%s221 + $0x18] sm:$0xff] %v1765
      %1774 = vst [vmem:[%s221 + $0x20] sm:$0xff] %v1766
      %1775 = vst [vmem:[%s221 + $0x28] sm:$0xff] %v1767
      %1776 = vst [vmem:[%s221 + $0x30] sm:$0xff] %v1768
      %1777 = vst [vmem:[%s221 + $0x38] sm:$0xff] %v1769
      %p1778 = scmp.lt.s32.totalorder %s18, 1
      %s1779 = scalar_select %p1778, %s18, 1
      %p1780 = scmp.lt.s32.totalorder %s19, 0
      %s1781 = scalar_select %p1780, %s19, 0
      %s1782 = smul.addr %s1779, 8
      %s1783 = sadd.s32 %s1781, %s1782
      %s1784 = smul.addr %s1783, 8
      %s1785 = scalar_lea.vmem %s3, %s1784
      // Predicated region
      $region37: #{convblock_down.5} parent=31 // pred_check
        %p1786 = pneg %p124
      $region38: #{convblock_down.5} parent=31 // pred_check_branch
        %1788 = sbr.rel (%p1786) target = $region40
      $region39: #{convblock_down.5} parent=31 // pred_region
        _
      $region40: #{convblock_down.5} parent=31 // pred_fallthru
        _
    $region32: #{convblock_down.5} parent=5 // pred_fallthru
      _
    %p1789 = scmp.le.s32.totalorder 2, %s9
    // Predicated region
    $region41: #{convblock_down.5} parent=5 // pred_check
      %p1790 = pneg %p1789
    $region42: #{convblock_down.5} parent=5 // pred_check_branch
      %1792 = sbr.rel (%p1790) target = $region44
    $region43: #{convblock_down.5} parent=5 // pred_region
      %s1793 = ssub.s32 %s9, 2
      // Predicated region
      $region45: #{convblock_down.5} parent=43 // pred_check
        %p1794 = pneg %p130
      $region46: #{convblock_down.5} parent=43 // pred_check_branch
        %1796 = sbr.rel (%p1794) target = $region48
      $region47: #{convblock_down.5} parent=43 // pred_region
        %p1797 = scmp.lt.s32.totalorder %s20, 1
        %s1798 = scalar_select %p1797, %s20, 1
        %p1799 = scmp.lt.s32.totalorder %s21, 0
        %s1800 = scalar_select %p1799, %s21, 0
        %s1801 = smul.addr %s1798, 8
        %s1802 = sadd.s32 %s1800, %s1801
        %s1803 = smul.addr %s1802, 8
        %s1804 = scalar_lea.vmem %s3, %s1803
      $region48: #{convblock_down.5} parent=43 // pred_fallthru
        _
    $region44: #{convblock_down.5} parent=5 // pred_fallthru
      _
  $region6: #{convblock_down.5} parent=0 // loop_footer
    %s13 = sadd.s32 1, %s9
  $region7: #{convblock_down.5} parent=0 // loop_footer_branch
    %8 = sbr.rel target = $region3
  $region8: #{convblock_down.5} parent=0 // loop_exit
    _

</llo_original>
